<compile_context>
chip_gen: v7x
topology: tpu7x:2x2x1
jax: 0.10.0
libtpu: 0.0.40
codegen_flags: <defaults>
</compile_context>

<pallas_src>
import numpy as np

import jax
import jax.numpy as jnp
from jax.experimental import pallas as pl
from jax.experimental.pallas import tpu as pltpu


# ------------------------------ fused kernel -------------------------------

def _simple_net_kernel(x_ref, b1_ref, bias1_ref, s1_ref, b2_ref, bias2_ref,
                       s2_ref, w1c_ref, fc1b_ref, w2_ref, fc2b_ref, o_ref):
    f32 = jnp.float32
    x = x_ref[0]                                    # (64, 64), single channel

    # ---- conv1: 3 column phases x 5 row taps of dense Toeplitz matmuls ----
    # b1_ref[di*3+pj] is (64, 200); phase output [r, qo*10+co] = conv1[r, 3qo+pj, co]
    colmax = None
    for pj in range(3):
        acc = jnp.dot(x[0:60, :], b1_ref[pj], preferred_element_type=f32)
        for di in range(1, 5):
            acc = acc + jnp.dot(x[di:di + 60, :], b1_ref[di * 3 + pj],
                                preferred_element_type=f32)
        colmax = acc if pj == 0 else jnp.maximum(colmax, acc)   # (60, 200)

    # ---- maxpool1 (3x3 stride 3) + bias + ReLU ----
    wmax = jnp.maximum(jnp.maximum(colmax[0:58, :], colmax[1:59, :]),
                       colmax[2:60, :])                         # (58, 200)
    pool1 = jnp.dot(s1_ref[...], wmax, preferred_element_type=f32)  # (20, 200)
    pool1 = jnp.maximum(pool1 + bias1_ref[...], 0.0)            # NHWC rows, C minor

    # ---- conv2: same Toeplitz scheme, Cin=10 folded into the lane axis ----
    colmax2 = None
    for pj in range(3):
        acc = jnp.dot(pool1[0:16, :], b2_ref[pj], preferred_element_type=f32)
        for di in range(1, 5):
            acc = acc + jnp.dot(pool1[di:di + 16, :], b2_ref[di * 3 + pj],
                                preferred_element_type=f32)
        colmax2 = acc if pj == 0 else jnp.maximum(colmax2, acc)  # (16, 100)

    # ---- maxpool2 (3x3 stride 3) + bias + ReLU ----
    wmax2 = jnp.maximum(jnp.maximum(colmax2[0:14, :], colmax2[1:15, :]),
                        colmax2[2:16, :])                       # (14, 100)
    pool2 = jnp.dot(s2_ref[...], wmax2, preferred_element_type=f32)  # (5, 100)
    pool2 = jnp.maximum(pool2 + bias2_ref[...], 0.0)

    # ---- fc1 (+ReLU): torch channel-major flatten is folded into the weight
    #      layout; one lane-dense (5,100)@(100,640) matmul, then sum the five
    #      128-lane diagonal blocks ----
    g = jnp.dot(pool2, w1c_ref[...], preferred_element_type=f32)     # (5, 640)
    h = (g[0:1, 0:128] + g[1:2, 128:256] + g[2:3, 256:384]
         + g[3:4, 384:512] + g[4:5, 512:640])                        # (1, 128)
    h = jnp.maximum(h + fc1b_ref[...], 0.0)

    # ---- fc2 ----
    out = jnp.dot(h, w2_ref[...], preferred_element_type=f32) + fc2b_ref[...]
    o_ref[0] = out                                                   # (1, 15)


def simple_net_forward(x_nchw, prep):
    n, c, h, w = x_nchw.shape
    assert (c, h, w) == (1, 64, 64), "SimpleNet expects (N,1,64,64) inputs"
    x = x_nchw.reshape(n, 64, 64)
    out = pl.pallas_call(
        _simple_net_kernel,
        out_shape=jax.ShapeDtypeStruct((n, 1, 15), jnp.float32),
        grid=(n,),
        in_specs=[
            pl.BlockSpec((1, 64, 64), lambda i: (i, 0, 0)),        # x
            pl.BlockSpec((15, 64, 200), lambda i: (0, 0, 0)),      # conv1 Toeplitz
            pl.BlockSpec((1, 200), lambda i: (0, 0)),              # conv1 bias tiled
            pl.BlockSpec((20, 58), lambda i: (0, 0)),              # pool1 row select
            pl.BlockSpec((15, 200, 100), lambda i: (0, 0, 0)),     # conv2 Toeplitz
            pl.BlockSpec((1, 100), lambda i: (0, 0)),              # conv2 bias tiled
            pl.BlockSpec((5, 14), lambda i: (0, 0)),               # pool2 row select
            pl.BlockSpec((100, 640), lambda i: (0, 0)),            # fc1 weight (lane dense)
            pl.BlockSpec((1, 128), lambda i: (0, 0)),              # fc1 bias (padded)
            pl.BlockSpec((128, 15), lambda i: (0, 0)),             # fc2 weight (row padded)
            pl.BlockSpec((1, 15), lambda i: (0, 0)),               # fc2 bias
        ],
        out_specs=pl.BlockSpec((1, 1, 15), lambda i: (i, 0, 0)),
        compiler_params=pltpu.CompilerParams(
            dimension_semantics=("parallel",),   # batch axis -> both v7x cores
            vmem_limit_bytes=32 * 1024 * 1024),  # ~5 MB used; safe on 64 MiB v7x
    )(x, prep["b1t"], prep["bias1t"], prep["s1"], prep["b2t"], prep["bias2t"],
      prep["s2"], prep["fc1_wc"], prep["fc1_bp"], prep["fc2_wp"], prep["fc2_bp"])
    return out.reshape(n, 15)


# ----------------------- host-side weight preparation ----------------------

def prepare_params(params):
    """One-time repack of torch-layout weights into kernel-friendly operands."""
    w1 = np.asarray(params["conv1_w"], np.float32)   # (10,1,5,5)
    b1 = np.asarray(params["conv1_b"], np.float32)
    w2 = np.asarray(params["conv2_w"], np.float32)   # (20,10,5,5)
    b2 = np.asarray(params["conv2_b"], np.float32)
    fw1 = np.asarray(params["fc1_w"], np.float32)    # (500,100) stored (in,out)
    fb1 = np.asarray(params["fc1_b"], np.float32)
    fw2 = np.asarray(params["fc2_w"], np.float32)    # (100,15) stored (in,out)
    fb2 = np.asarray(params["fc2_b"], np.float32)

    # conv1 Toeplitz: B1[di*3+pj][j, qo*10+co] = w1[co,0,di, j-(3qo+pj)]
    B1 = np.zeros((15, 64, 200), np.float32)
    for di in range(5):
        for pj in range(3):
            for qo in range(20):
                for dj in range(5):
                    j = 3 * qo + pj + dj
                    B1[di * 3 + pj, j, qo * 10:(qo + 1) * 10] = w1[:, 0, di, dj]

    # conv2 Toeplitz: B2[di*3+pj][j*10+ci, qo*20+co] = w2[co,ci,di, j-(3qo+pj)]
    B2 = np.zeros((15, 200, 100), np.float32)
    for di in range(5):
        for pj in range(3):
            for qo in range(5):
                for dj in range(5):
                    j = 3 * qo + pj + dj
                    B2[di * 3 + pj, j * 10:(j + 1) * 10,
                       qo * 20:(qo + 1) * 20] = w2[:, :, di, dj].T

    # 0/1 row-selection matrices for the stride-3 row pooling
    S1 = np.zeros((20, 58), np.float32)
    S1[np.arange(20), 3 * np.arange(20)] = 1.0
    S2 = np.zeros((5, 14), np.float32)
    S2[np.arange(5), 3 * np.arange(5)] = 1.0

    # conv biases tiled to the (W*C) lane layout
    bias1t = np.tile(b1, 20)[None, :]                # (1,200)
    bias2t = np.tile(b2, 5)[None, :]                 # (1,100)

    # fc1: reorder rows from torch flatten order (co,po,qo) into the kernel's
    # (po,(qo,co)) layout and place the 5 po-blocks on a 640-lane axis.
    w4 = fw1.reshape(20, 5, 5, 100)                          # [co,po,qo,j]
    wr = np.transpose(w4, (1, 2, 0, 3)).reshape(5, 100, 100)  # [po, qo*20+co, j]
    W1c = np.zeros((100, 640), np.float32)
    for po in range(5):
        W1c[:, po * 128:po * 128 + 100] = wr[po]
    fb1p = np.zeros((1, 128), np.float32)
    fb1p[0, :100] = fb1

    # fc2: pad contraction dim 100 -> 128 with zero rows
    W2p = np.zeros((128, 15), np.float32)
    W2p[:100, :] = fw2
    fb2p = fb2[None, :]                              # (1,15)

    packed = dict(b1t=B1, bias1t=bias1t, s1=S1, b2t=B2, bias2t=bias2t, s2=S2,
                  fc1_wc=W1c, fc1_bp=fb1p, fc2_wp=W2p, fc2_bp=fb2p)
    return {k: jnp.asarray(v) for k, v in packed.items()}


# --------------------------- deterministic params --------------------------

def init_params(key):
    ks = jax.random.split(key, 8)

    def u(k, shape, fan_in):
        bound = 1.0 / float(fan_in) ** 0.5
        return jax.random.uniform(k, shape, jnp.float32, -bound, bound)

    return {
        "conv1_w": u(ks[0], (10, 1, 5, 5), 1 * 25),
        "conv1_b": u(ks[1], (10,), 1 * 25),
        "conv2_w": u(ks[2], (20, 10, 5, 5), 10 * 25),
        "conv2_b": u(ks[3], (20,), 10 * 25),
        "fc1_w":   u(ks[4], (500, 100), 500),
        "fc1_b":   u(ks[5], (100,), 500),
        "fc2_w":   u(ks[6], (100, 15), 100),
        "fc2_b":   u(ks[7], (15,), 100),
    }


# ---------------------- pure-JAX reference (self-check) --------------------

def _reference_forward(x_nchw, params):
    hi = jax.lax.Precision.HIGHEST
    x = jnp.transpose(x_nchw, (0, 2, 3, 1))

    def conv5(x, w, b):
        n, h, wd, cin = x.shape
        ho, wo = h - 4, wd - 4
        out = jnp.zeros((n, ho, wo, w.shape[0]), jnp.float32)
        for di in range(5):
            for dj in range(5):
                out = out + jnp.einsum("nhwc,oc->nhwo",
                                       x[:, di:di + ho, dj:dj + wo, :],
                                       w[:, :, di, dj], precision=hi)
        return out + b

    def pool3_relu(x):
        n, h, wd, c = x.shape
        ho, wo = (h - 3) // 3 + 1, (wd - 3) // 3 + 1
        taps = jnp.stack([x[:, i:i + 3 * ho:3, j:j + 3 * wo:3, :]
                          for i in range(3) for j in range(3)], axis=0)
        return jnp.maximum(jnp.max(taps, axis=0), 0.0)

    x = pool3_relu(conv5(x, params["conv1_w"], params["conv1_b"]))
    x = pool3_relu(conv5(x, params["conv2_w"], params["conv2_b"]))
    n = x.shape[0]
    x = jnp.transpose(x, (0, 3, 1, 2)).reshape(n, -1)
    x = jnp.maximum(jnp.dot(x, params["fc1_w"], precision=hi) + params["fc1_b"], 0.0)
    return jnp.dot(x, params["fc2_w"], precision=hi) + params["fc2_b"]


# TODO(synk): loss_criterion (CrossEntropyLoss) is not part of forward(); not implemented.

if __name__ == "__main__":
    key = jax.random.PRNGKey(0)
    pkey, xkey = jax.random.split(key)
    params = init_params(pkey)
    prep = prepare_params(params)
    # Input must be 64x64 so the flatten produces 500 features (20*5*5).
    x = jax.random.normal(xkey, (2, 1, 64, 64), jnp.float32)

    out = jax.block_until_ready(jax.jit(simple_net_forward)(x, prep))
    assert out.shape == (2, 15) and out.dtype == jnp.float32

    ref = jax.block_until_ready(jax.jit(_reference_forward)(x, params))
    err = float(jnp.max(jnp.abs(out - ref)))
    assert err < 2e-2, f"kernel/reference mismatch: max abs err = {err}"
    print("KERNEL_OK")
</pallas_src>

<mosaic_0001>
module attributes {stable_mosaic.version = 11 : i64} {
  func.func @_simple_net_kernel(%arg0: i32, %arg1: memref<1x64x64xf32, #tpu.memory_space<vmem>>, %arg2: memref<15x64x200xf32, #tpu.memory_space<vmem>>, %arg3: memref<1x200xf32, #tpu.memory_space<vmem>>, %arg4: memref<20x58xf32, #tpu.memory_space<vmem>>, %arg5: memref<15x200x100xf32, #tpu.memory_space<vmem>>, %arg6: memref<1x100xf32, #tpu.memory_space<vmem>>, %arg7: memref<5x14xf32, #tpu.memory_space<vmem>>, %arg8: memref<100x640xf32, #tpu.memory_space<vmem>>, %arg9: memref<1x128xf32, #tpu.memory_space<vmem>>, %arg10: memref<128x15xf32, #tpu.memory_space<vmem>>, %arg11: memref<1x15xf32, #tpu.memory_space<vmem>>, %arg12: memref<1x1x15xf32, #tpu.memory_space<vmem>>) attributes {dimension_semantics = [#tpu.dimension_semantics<parallel>], iteration_bounds = array<i64: 2>, scalar_prefetch = 0 : i64, scratch_operands = 0 : i64, tpu.core_type = #tpu.core_type<tc>, window_params = [{transform_indices = @transform_0, window_bounds = array<i64: 1, 64, 64>}, {pipeline_mode = #tpu.pipeline_mode<synchronous>, transform_indices = @transform_1, window_bounds = array<i64: 15, 64, 200>}, {pipeline_mode = #tpu.pipeline_mode<synchronous>, transform_indices = @transform_2, window_bounds = array<i64: 1, 200>}, {pipeline_mode = #tpu.pipeline_mode<synchronous>, transform_indices = @transform_3, window_bounds = array<i64: 20, 58>}, {pipeline_mode = #tpu.pipeline_mode<synchronous>, transform_indices = @transform_4, window_bounds = array<i64: 15, 200, 100>}, {pipeline_mode = #tpu.pipeline_mode<synchronous>, transform_indices = @transform_5, window_bounds = array<i64: 1, 100>}, {pipeline_mode = #tpu.pipeline_mode<synchronous>, transform_indices = @transform_6, window_bounds = array<i64: 5, 14>}, {pipeline_mode = #tpu.pipeline_mode<synchronous>, transform_indices = @transform_7, window_bounds = array<i64: 100, 640>}, {pipeline_mode = #tpu.pipeline_mode<synchronous>, transform_indices = @transform_8, window_bounds = array<i64: 1, 128>}, {pipeline_mode = #tpu.pipeline_mode<synchronous>, transform_indices = @transform_9, window_bounds = array<i64: 128, 15>}, {pipeline_mode = #tpu.pipeline_mode<synchronous>, transform_indices = @transform_10, window_bounds = array<i64: 1, 15>}, {transform_indices = @transform_11, window_bounds = array<i64: 1, 1, 15>}]} {
    %c0 = arith.constant 0 : index
    %c0_0 = arith.constant 0 : index
    %c0_1 = arith.constant 0 : index
    %0 = vector.load %arg1[%c0, %c0_0, %c0_1] : memref<1x64x64xf32, #tpu.memory_space<vmem>>, vector<1x64x64xf32>
    %1 = vector.shape_cast %0 : vector<1x64x64xf32> to vector<64x64xf32>
    %2 = vector.extract_strided_slice %1 {offsets = [0, 0], sizes = [60, 64], strides = [1, 1]} : vector<64x64xf32> to vector<60x64xf32>
    %c0_2 = arith.constant 0 : index
    %c0_3 = arith.constant 0 : index
    %c0_4 = arith.constant 0 : index
    %3 = vector.load %arg2[%c0_2, %c0_3, %c0_4] : memref<15x64x200xf32, #tpu.memory_space<vmem>>, vector<1x64x200xf32>
    %4 = vector.shape_cast %3 : vector<1x64x200xf32> to vector<64x200xf32>
    %cst = arith.constant dense<0.000000e+00> : vector<60x200xf32>
    %5 = tpu.matmul %2, %4, %cst {dimension_numbers = #tpu.dot_dimension_numbers<[1], [0], [0], [1], [0, 0, 1, 1], [], []>} : vector<60x64xf32>, vector<64x200xf32>, vector<60x200xf32> -> vector<60x200xf32>
    %6 = vector.extract_strided_slice %1 {offsets = [1, 0], sizes = [60, 64], strides = [1, 1]} : vector<64x64xf32> to vector<60x64xf32>
    %c3 = arith.constant 3 : index
    %c0_5 = arith.constant 0 : index
    %c0_6 = arith.constant 0 : index
    %7 = vector.load %arg2[%c3, %c0_5, %c0_6] : memref<15x64x200xf32, #tpu.memory_space<vmem>>, vector<1x64x200xf32>
    %8 = vector.shape_cast %7 : vector<1x64x200xf32> to vector<64x200xf32>
    %cst_7 = arith.constant dense<0.000000e+00> : vector<60x200xf32>
    %9 = tpu.matmul %6, %8, %cst_7 {dimension_numbers = #tpu.dot_dimension_numbers<[1], [0], [0], [1], [0, 0, 1, 1], [], []>} : vector<60x64xf32>, vector<64x200xf32>, vector<60x200xf32> -> vector<60x200xf32>
    %10 = arith.addf %5, %9 : vector<60x200xf32>
    %11 = vector.extract_strided_slice %1 {offsets = [2, 0], sizes = [60, 64], strides = [1, 1]} : vector<64x64xf32> to vector<60x64xf32>
    %c6 = arith.constant 6 : index
    %c0_8 = arith.constant 0 : index
    %c0_9 = arith.constant 0 : index
    %12 = vector.load %arg2[%c6, %c0_8, %c0_9] : memref<15x64x200xf32, #tpu.memory_space<vmem>>, vector<1x64x200xf32>
    %13 = vector.shape_cast %12 : vector<1x64x200xf32> to vector<64x200xf32>
    %cst_10 = arith.constant dense<0.000000e+00> : vector<60x200xf32>
    %14 = tpu.matmul %11, %13, %cst_10 {dimension_numbers = #tpu.dot_dimension_numbers<[1], [0], [0], [1], [0, 0, 1, 1], [], []>} : vector<60x64xf32>, vector<64x200xf32>, vector<60x200xf32> -> vector<60x200xf32>
    %15 = arith.addf %10, %14 : vector<60x200xf32>
    %16 = vector.extract_strided_slice %1 {offsets = [3, 0], sizes = [60, 64], strides = [1, 1]} : vector<64x64xf32> to vector<60x64xf32>
    %c9 = arith.constant 9 : index
    %c0_11 = arith.constant 0 : index
    %c0_12 = arith.constant 0 : index
    %17 = vector.load %arg2[%c9, %c0_11, %c0_12] : memref<15x64x200xf32, #tpu.memory_space<vmem>>, vector<1x64x200xf32>
    %18 = vector.shape_cast %17 : vector<1x64x200xf32> to vector<64x200xf32>
    %cst_13 = arith.constant dense<0.000000e+00> : vector<60x200xf32>
    %19 = tpu.matmul %16, %18, %cst_13 {dimension_numbers = #tpu.dot_dimension_numbers<[1], [0], [0], [1], [0, 0, 1, 1], [], []>} : vector<60x64xf32>, vector<64x200xf32>, vector<60x200xf32> -> vector<60x200xf32>
    %20 = arith.addf %15, %19 : vector<60x200xf32>
    %21 = vector.extract_strided_slice %1 {offsets = [4, 0], sizes = [60, 64], strides = [1, 1]} : vector<64x64xf32> to vector<60x64xf32>
    %c12 = arith.constant 12 : index
    %c0_14 = arith.constant 0 : index
    %c0_15 = arith.constant 0 : index
    %22 = vector.load %arg2[%c12, %c0_14, %c0_15] : memref<15x64x200xf32, #tpu.memory_space<vmem>>, vector<1x64x200xf32>
    %23 = vector.shape_cast %22 : vector<1x64x200xf32> to vector<64x200xf32>
    %cst_16 = arith.constant dense<0.000000e+00> : vector<60x200xf32>
    %24 = tpu.matmul %21, %23, %cst_16 {dimension_numbers = #tpu.dot_dimension_numbers<[1], [0], [0], [1], [0, 0, 1, 1], [], []>} : vector<60x64xf32>, vector<64x200xf32>, vector<60x200xf32> -> vector<60x200xf32>
    %25 = arith.addf %20, %24 : vector<60x200xf32>
    %26 = vector.extract_strided_slice %1 {offsets = [0, 0], sizes = [60, 64], strides = [1, 1]} : vector<64x64xf32> to vector<60x64xf32>
    %c1 = arith.constant 1 : index
    %c0_17 = arith.constant 0 : index
    %c0_18 = arith.constant 0 : index
    %27 = vector.load %arg2[%c1, %c0_17, %c0_18] : memref<15x64x200xf32, #tpu.memory_space<vmem>>, vector<1x64x200xf32>
    %28 = vector.shape_cast %27 : vector<1x64x200xf32> to vector<64x200xf32>
    %cst_19 = arith.constant dense<0.000000e+00> : vector<60x200xf32>
    %29 = tpu.matmul %26, %28, %cst_19 {dimension_numbers = #tpu.dot_dimension_numbers<[1], [0], [0], [1], [0, 0, 1, 1], [], []>} : vector<60x64xf32>, vector<64x200xf32>, vector<60x200xf32> -> vector<60x200xf32>
    %30 = vector.extract_strided_slice %1 {offsets = [1, 0], sizes = [60, 64], strides = [1, 1]} : vector<64x64xf32> to vector<60x64xf32>
    %c4 = arith.constant 4 : index
    %c0_20 = arith.constant 0 : index
    %c0_21 = arith.constant 0 : index
    %31 = vector.load %arg2[%c4, %c0_20, %c0_21] : memref<15x64x200xf32, #tpu.memory_space<vmem>>, vector<1x64x200xf32>
    %32 = vector.shape_cast %31 : vector<1x64x200xf32> to vector<64x200xf32>
    %cst_22 = arith.constant dense<0.000000e+00> : vector<60x200xf32>
    %33 = tpu.matmul %30, %32, %cst_22 {dimension_numbers = #tpu.dot_dimension_numbers<[1], [0], [0], [1], [0, 0, 1, 1], [], []>} : vector<60x64xf32>, vector<64x200xf32>, vector<60x200xf32> -> vector<60x200xf32>
    %34 = arith.addf %29, %33 : vector<60x200xf32>
    %35 = vector.extract_strided_slice %1 {offsets = [2, 0], sizes = [60, 64], strides = [1, 1]} : vector<64x64xf32> to vector<60x64xf32>
    %c7 = arith.constant 7 : index
    %c0_23 = arith.constant 0 : index
    %c0_24 = arith.constant 0 : index
    %36 = vector.load %arg2[%c7, %c0_23, %c0_24] : memref<15x64x200xf32, #tpu.memory_space<vmem>>, vector<1x64x200xf32>
    %37 = vector.shape_cast %36 : vector<1x64x200xf32> to vector<64x200xf32>
    %cst_25 = arith.constant dense<0.000000e+00> : vector<60x200xf32>
    %38 = tpu.matmul %35, %37, %cst_25 {dimension_numbers = #tpu.dot_dimension_numbers<[1], [0], [0], [1], [0, 0, 1, 1], [], []>} : vector<60x64xf32>, vector<64x200xf32>, vector<60x200xf32> -> vector<60x200xf32>
    %39 = arith.addf %34, %38 : vector<60x200xf32>
    %40 = vector.extract_strided_slice %1 {offsets = [3, 0], sizes = [60, 64], strides = [1, 1]} : vector<64x64xf32> to vector<60x64xf32>
    %c10 = arith.constant 10 : index
    %c0_26 = arith.constant 0 : index
    %c0_27 = arith.constant 0 : index
    %41 = vector.load %arg2[%c10, %c0_26, %c0_27] : memref<15x64x200xf32, #tpu.memory_space<vmem>>, vector<1x64x200xf32>
    %42 = vector.shape_cast %41 : vector<1x64x200xf32> to vector<64x200xf32>
    %cst_28 = arith.constant dense<0.000000e+00> : vector<60x200xf32>
    %43 = tpu.matmul %40, %42, %cst_28 {dimension_numbers = #tpu.dot_dimension_numbers<[1], [0], [0], [1], [0, 0, 1, 1], [], []>} : vector<60x64xf32>, vector<64x200xf32>, vector<60x200xf32> -> vector<60x200xf32>
    %44 = arith.addf %39, %43 : vector<60x200xf32>
    %45 = vector.extract_strided_slice %1 {offsets = [4, 0], sizes = [60, 64], strides = [1, 1]} : vector<64x64xf32> to vector<60x64xf32>
    %c13 = arith.constant 13 : index
    %c0_29 = arith.constant 0 : index
    %c0_30 = arith.constant 0 : index
    %46 = vector.load %arg2[%c13, %c0_29, %c0_30] : memref<15x64x200xf32, #tpu.memory_space<vmem>>, vector<1x64x200xf32>
    %47 = vector.shape_cast %46 : vector<1x64x200xf32> to vector<64x200xf32>
    %cst_31 = arith.constant dense<0.000000e+00> : vector<60x200xf32>
    %48 = tpu.matmul %45, %47, %cst_31 {dimension_numbers = #tpu.dot_dimension_numbers<[1], [0], [0], [1], [0, 0, 1, 1], [], []>} : vector<60x64xf32>, vector<64x200xf32>, vector<60x200xf32> -> vector<60x200xf32>
    %49 = arith.addf %44, %48 : vector<60x200xf32>
    %50 = arith.maximumf %25, %49 : vector<60x200xf32>
    %51 = vector.extract_strided_slice %1 {offsets = [0, 0], sizes = [60, 64], strides = [1, 1]} : vector<64x64xf32> to vector<60x64xf32>
    %c2 = arith.constant 2 : index
    %c0_32 = arith.constant 0 : index
    %c0_33 = arith.constant 0 : index
    %52 = vector.load %arg2[%c2, %c0_32, %c0_33] : memref<15x64x200xf32, #tpu.memory_space<vmem>>, vector<1x64x200xf32>
    %53 = vector.shape_cast %52 : vector<1x64x200xf32> to vector<64x200xf32>
    %cst_34 = arith.constant dense<0.000000e+00> : vector<60x200xf32>
    %54 = tpu.matmul %51, %53, %cst_34 {dimension_numbers = #tpu.dot_dimension_numbers<[1], [0], [0], [1], [0, 0, 1, 1], [], []>} : vector<60x64xf32>, vector<64x200xf32>, vector<60x200xf32> -> vector<60x200xf32>
    %55 = vector.extract_strided_slice %1 {offsets = [1, 0], sizes = [60, 64], strides = [1, 1]} : vector<64x64xf32> to vector<60x64xf32>
    %c5 = arith.constant 5 : index
    %c0_35 = arith.constant 0 : index
    %c0_36 = arith.constant 0 : index
    %56 = vector.load %arg2[%c5, %c0_35, %c0_36] : memref<15x64x200xf32, #tpu.memory_space<vmem>>, vector<1x64x200xf32>
    %57 = vector.shape_cast %56 : vector<1x64x200xf32> to vector<64x200xf32>
    %cst_37 = arith.constant dense<0.000000e+00> : vector<60x200xf32>
    %58 = tpu.matmul %55, %57, %cst_37 {dimension_numbers = #tpu.dot_dimension_numbers<[1], [0], [0], [1], [0, 0, 1, 1], [], []>} : vector<60x64xf32>, vector<64x200xf32>, vector<60x200xf32> -> vector<60x200xf32>
    %59 = arith.addf %54, %58 : vector<60x200xf32>
    %60 = vector.extract_strided_slice %1 {offsets = [2, 0], sizes = [60, 64], strides = [1, 1]} : vector<64x64xf32> to vector<60x64xf32>
    %c8 = arith.constant 8 : index
    %c0_38 = arith.constant 0 : index
    %c0_39 = arith.constant 0 : index
    %61 = vector.load %arg2[%c8, %c0_38, %c0_39] : memref<15x64x200xf32, #tpu.memory_space<vmem>>, vector<1x64x200xf32>
    %62 = vector.shape_cast %61 : vector<1x64x200xf32> to vector<64x200xf32>
    %cst_40 = arith.constant dense<0.000000e+00> : vector<60x200xf32>
    %63 = tpu.matmul %60, %62, %cst_40 {dimension_numbers = #tpu.dot_dimension_numbers<[1], [0], [0], [1], [0, 0, 1, 1], [], []>} : vector<60x64xf32>, vector<64x200xf32>, vector<60x200xf32> -> vector<60x200xf32>
    %64 = arith.addf %59, %63 : vector<60x200xf32>
    %65 = vector.extract_strided_slice %1 {offsets = [3, 0], sizes = [60, 64], strides = [1, 1]} : vector<64x64xf32> to vector<60x64xf32>
    %c11 = arith.constant 11 : index
    %c0_41 = arith.constant 0 : index
    %c0_42 = arith.constant 0 : index
    %66 = vector.load %arg2[%c11, %c0_41, %c0_42] : memref<15x64x200xf32, #tpu.memory_space<vmem>>, vector<1x64x200xf32>
    %67 = vector.shape_cast %66 : vector<1x64x200xf32> to vector<64x200xf32>
    %cst_43 = arith.constant dense<0.000000e+00> : vector<60x200xf32>
    %68 = tpu.matmul %65, %67, %cst_43 {dimension_numbers = #tpu.dot_dimension_numbers<[1], [0], [0], [1], [0, 0, 1, 1], [], []>} : vector<60x64xf32>, vector<64x200xf32>, vector<60x200xf32> -> vector<60x200xf32>
    %69 = arith.addf %64, %68 : vector<60x200xf32>
    %70 = vector.extract_strided_slice %1 {offsets = [4, 0], sizes = [60, 64], strides = [1, 1]} : vector<64x64xf32> to vector<60x64xf32>
    %c14 = arith.constant 14 : index
    %c0_44 = arith.constant 0 : index
    %c0_45 = arith.constant 0 : index
    %71 = vector.load %arg2[%c14, %c0_44, %c0_45] : memref<15x64x200xf32, #tpu.memory_space<vmem>>, vector<1x64x200xf32>
    %72 = vector.shape_cast %71 : vector<1x64x200xf32> to vector<64x200xf32>
    %cst_46 = arith.constant dense<0.000000e+00> : vector<60x200xf32>
    %73 = tpu.matmul %70, %72, %cst_46 {dimension_numbers = #tpu.dot_dimension_numbers<[1], [0], [0], [1], [0, 0, 1, 1], [], []>} : vector<60x64xf32>, vector<64x200xf32>, vector<60x200xf32> -> vector<60x200xf32>
    %74 = arith.addf %69, %73 : vector<60x200xf32>
    %75 = arith.maximumf %50, %74 : vector<60x200xf32>
    %76 = vector.extract_strided_slice %75 {offsets = [0, 0], sizes = [58, 200], strides = [1, 1]} : vector<60x200xf32> to vector<58x200xf32>
    %77 = vector.extract_strided_slice %75 {offsets = [1, 0], sizes = [58, 200], strides = [1, 1]} : vector<60x200xf32> to vector<58x200xf32>
    %78 = arith.maximumf %76, %77 : vector<58x200xf32>
    %79 = vector.extract_strided_slice %75 {offsets = [2, 0], sizes = [58, 200], strides = [1, 1]} : vector<60x200xf32> to vector<58x200xf32>
    %80 = arith.maximumf %78, %79 : vector<58x200xf32>
    %c0_47 = arith.constant 0 : index
    %c0_48 = arith.constant 0 : index
    %81 = vector.load %arg4[%c0_47, %c0_48] : memref<20x58xf32, #tpu.memory_space<vmem>>, vector<20x58xf32>
    %cst_49 = arith.constant dense<0.000000e+00> : vector<20x200xf32>
    %82 = tpu.matmul %81, %80, %cst_49 {dimension_numbers = #tpu.dot_dimension_numbers<[1], [0], [0], [1], [0, 0, 1, 1], [], []>} : vector<20x58xf32>, vector<58x200xf32>, vector<20x200xf32> -> vector<20x200xf32>
    %c0_50 = arith.constant 0 : index
    %c0_51 = arith.constant 0 : index
    %83 = vector.load %arg3[%c0_50, %c0_51] : memref<1x200xf32, #tpu.memory_space<vmem>>, vector<1x200xf32>
    %84 = vector.broadcast %83 : vector<1x200xf32> to vector<20x200xf32>
    %85 = arith.addf %82, %84 : vector<20x200xf32>
    %cst_52 = arith.constant 0.000000e+00 : f32
    %86 = vector.broadcast %cst_52 : f32 to vector<20x200xf32>
    %87 = arith.maximumf %85, %86 : vector<20x200xf32>
    %88 = vector.extract_strided_slice %87 {offsets = [0, 0], sizes = [16, 200], strides = [1, 1]} : vector<20x200xf32> to vector<16x200xf32>
    %c0_53 = arith.constant 0 : index
    %c0_54 = arith.constant 0 : index
    %c0_55 = arith.constant 0 : index
    %89 = vector.load %arg5[%c0_53, %c0_54, %c0_55] : memref<15x200x100xf32, #tpu.memory_space<vmem>>, vector<1x200x100xf32>
    %90 = vector.shape_cast %89 : vector<1x200x100xf32> to vector<200x100xf32>
    %cst_56 = arith.constant dense<0.000000e+00> : vector<16x100xf32>
    %91 = tpu.matmul %88, %90, %cst_56 {dimension_numbers = #tpu.dot_dimension_numbers<[1], [0], [0], [1], [0, 0, 1, 1], [], []>} : vector<16x200xf32>, vector<200x100xf32>, vector<16x100xf32> -> vector<16x100xf32>
    %92 = vector.extract_strided_slice %87 {offsets = [1, 0], sizes = [16, 200], strides = [1, 1]} : vector<20x200xf32> to vector<16x200xf32>
    %c3_57 = arith.constant 3 : index
    %c0_58 = arith.constant 0 : index
    %c0_59 = arith.constant 0 : index
    %93 = vector.load %arg5[%c3_57, %c0_58, %c0_59] : memref<15x200x100xf32, #tpu.memory_space<vmem>>, vector<1x200x100xf32>
    %94 = vector.shape_cast %93 : vector<1x200x100xf32> to vector<200x100xf32>
    %cst_60 = arith.constant dense<0.000000e+00> : vector<16x100xf32>
    %95 = tpu.matmul %92, %94, %cst_60 {dimension_numbers = #tpu.dot_dimension_numbers<[1], [0], [0], [1], [0, 0, 1, 1], [], []>} : vector<16x200xf32>, vector<200x100xf32>, vector<16x100xf32> -> vector<16x100xf32>
    %96 = arith.addf %91, %95 : vector<16x100xf32>
    %97 = vector.extract_strided_slice %87 {offsets = [2, 0], sizes = [16, 200], strides = [1, 1]} : vector<20x200xf32> to vector<16x200xf32>
    %c6_61 = arith.constant 6 : index
    %c0_62 = arith.constant 0 : index
    %c0_63 = arith.constant 0 : index
    %98 = vector.load %arg5[%c6_61, %c0_62, %c0_63] : memref<15x200x100xf32, #tpu.memory_space<vmem>>, vector<1x200x100xf32>
    %99 = vector.shape_cast %98 : vector<1x200x100xf32> to vector<200x100xf32>
    %cst_64 = arith.constant dense<0.000000e+00> : vector<16x100xf32>
    %100 = tpu.matmul %97, %99, %cst_64 {dimension_numbers = #tpu.dot_dimension_numbers<[1], [0], [0], [1], [0, 0, 1, 1], [], []>} : vector<16x200xf32>, vector<200x100xf32>, vector<16x100xf32> -> vector<16x100xf32>
    %101 = arith.addf %96, %100 : vector<16x100xf32>
    %102 = vector.extract_strided_slice %87 {offsets = [3, 0], sizes = [16, 200], strides = [1, 1]} : vector<20x200xf32> to vector<16x200xf32>
    %c9_65 = arith.constant 9 : index
    %c0_66 = arith.constant 0 : index
    %c0_67 = arith.constant 0 : index
    %103 = vector.load %arg5[%c9_65, %c0_66, %c0_67] : memref<15x200x100xf32, #tpu.memory_space<vmem>>, vector<1x200x100xf32>
    %104 = vector.shape_cast %103 : vector<1x200x100xf32> to vector<200x100xf32>
    %cst_68 = arith.constant dense<0.000000e+00> : vector<16x100xf32>
    %105 = tpu.matmul %102, %104, %cst_68 {dimension_numbers = #tpu.dot_dimension_numbers<[1], [0], [0], [1], [0, 0, 1, 1], [], []>} : vector<16x200xf32>, vector<200x100xf32>, vector<16x100xf32> -> vector<16x100xf32>
    %106 = arith.addf %101, %105 : vector<16x100xf32>
    %107 = vector.extract_strided_slice %87 {offsets = [4, 0], sizes = [16, 200], strides = [1, 1]} : vector<20x200xf32> to vector<16x200xf32>
    %c12_69 = arith.constant 12 : index
    %c0_70 = arith.constant 0 : index
    %c0_71 = arith.constant 0 : index
    %108 = vector.load %arg5[%c12_69, %c0_70, %c0_71] : memref<15x200x100xf32, #tpu.memory_space<vmem>>, vector<1x200x100xf32>
    %109 = vector.shape_cast %108 : vector<1x200x100xf32> to vector<200x100xf32>
    %cst_72 = arith.constant dense<0.000000e+00> : vector<16x100xf32>
    %110 = tpu.matmul %107, %109, %cst_72 {dimension_numbers = #tpu.dot_dimension_numbers<[1], [0], [0], [1], [0, 0, 1, 1], [], []>} : vector<16x200xf32>, vector<200x100xf32>, vector<16x100xf32> -> vector<16x100xf32>
    %111 = arith.addf %106, %110 : vector<16x100xf32>
    %112 = vector.extract_strided_slice %87 {offsets = [0, 0], sizes = [16, 200], strides = [1, 1]} : vector<20x200xf32> to vector<16x200xf32>
    %c1_73 = arith.constant 1 : index
    %c0_74 = arith.constant 0 : index
    %c0_75 = arith.constant 0 : index
    %113 = vector.load %arg5[%c1_73, %c0_74, %c0_75] : memref<15x200x100xf32, #tpu.memory_space<vmem>>, vector<1x200x100xf32>
    %114 = vector.shape_cast %113 : vector<1x200x100xf32> to vector<200x100xf32>
    %cst_76 = arith.constant dense<0.000000e+00> : vector<16x100xf32>
    %115 = tpu.matmul %112, %114, %cst_76 {dimension_numbers = #tpu.dot_dimension_numbers<[1], [0], [0], [1], [0, 0, 1, 1], [], []>} : vector<16x200xf32>, vector<200x100xf32>, vector<16x100xf32> -> vector<16x100xf32>
    %116 = vector.extract_strided_slice %87 {offsets = [1, 0], sizes = [16, 200], strides = [1, 1]} : vector<20x200xf32> to vector<16x200xf32>
    %c4_77 = arith.constant 4 : index
    %c0_78 = arith.constant 0 : index
    %c0_79 = arith.constant 0 : index
    %117 = vector.load %arg5[%c4_77, %c0_78, %c0_79] : memref<15x200x100xf32, #tpu.memory_space<vmem>>, vector<1x200x100xf32>
    %118 = vector.shape_cast %117 : vector<1x200x100xf32> to vector<200x100xf32>
    %cst_80 = arith.constant dense<0.000000e+00> : vector<16x100xf32>
    %119 = tpu.matmul %116, %118, %cst_80 {dimension_numbers = #tpu.dot_dimension_numbers<[1], [0], [0], [1], [0, 0, 1, 1], [], []>} : vector<16x200xf32>, vector<200x100xf32>, vector<16x100xf32> -> vector<16x100xf32>
    %120 = arith.addf %115, %119 : vector<16x100xf32>
    %121 = vector.extract_strided_slice %87 {offsets = [2, 0], sizes = [16, 200], strides = [1, 1]} : vector<20x200xf32> to vector<16x200xf32>
    %c7_81 = arith.constant 7 : index
    %c0_82 = arith.constant 0 : index
    %c0_83 = arith.constant 0 : index
    %122 = vector.load %arg5[%c7_81, %c0_82, %c0_83] : memref<15x200x100xf32, #tpu.memory_space<vmem>>, vector<1x200x100xf32>
    %123 = vector.shape_cast %122 : vector<1x200x100xf32> to vector<200x100xf32>
    %cst_84 = arith.constant dense<0.000000e+00> : vector<16x100xf32>
    %124 = tpu.matmul %121, %123, %cst_84 {dimension_numbers = #tpu.dot_dimension_numbers<[1], [0], [0], [1], [0, 0, 1, 1], [], []>} : vector<16x200xf32>, vector<200x100xf32>, vector<16x100xf32> -> vector<16x100xf32>
    %125 = arith.addf %120, %124 : vector<16x100xf32>
    %126 = vector.extract_strided_slice %87 {offsets = [3, 0], sizes = [16, 200], strides = [1, 1]} : vector<20x200xf32> to vector<16x200xf32>
    %c10_85 = arith.constant 10 : index
    %c0_86 = arith.constant 0 : index
    %c0_87 = arith.constant 0 : index
    %127 = vector.load %arg5[%c10_85, %c0_86, %c0_87] : memref<15x200x100xf32, #tpu.memory_space<vmem>>, vector<1x200x100xf32>
    %128 = vector.shape_cast %127 : vector<1x200x100xf32> to vector<200x100xf32>
    %cst_88 = arith.constant dense<0.000000e+00> : vector<16x100xf32>
    %129 = tpu.matmul %126, %128, %cst_88 {dimension_numbers = #tpu.dot_dimension_numbers<[1], [0], [0], [1], [0, 0, 1, 1], [], []>} : vector<16x200xf32>, vector<200x100xf32>, vector<16x100xf32> -> vector<16x100xf32>
    %130 = arith.addf %125, %129 : vector<16x100xf32>
    %131 = vector.extract_strided_slice %87 {offsets = [4, 0], sizes = [16, 200], strides = [1, 1]} : vector<20x200xf32> to vector<16x200xf32>
    %c13_89 = arith.constant 13 : index
    %c0_90 = arith.constant 0 : index
    %c0_91 = arith.constant 0 : index
    %132 = vector.load %arg5[%c13_89, %c0_90, %c0_91] : memref<15x200x100xf32, #tpu.memory_space<vmem>>, vector<1x200x100xf32>
    %133 = vector.shape_cast %132 : vector<1x200x100xf32> to vector<200x100xf32>
    %cst_92 = arith.constant dense<0.000000e+00> : vector<16x100xf32>
    %134 = tpu.matmul %131, %133, %cst_92 {dimension_numbers = #tpu.dot_dimension_numbers<[1], [0], [0], [1], [0, 0, 1, 1], [], []>} : vector<16x200xf32>, vector<200x100xf32>, vector<16x100xf32> -> vector<16x100xf32>
    %135 = arith.addf %130, %134 : vector<16x100xf32>
    %136 = arith.maximumf %111, %135 : vector<16x100xf32>
    %137 = vector.extract_strided_slice %87 {offsets = [0, 0], sizes = [16, 200], strides = [1, 1]} : vector<20x200xf32> to vector<16x200xf32>
    %c2_93 = arith.constant 2 : index
    %c0_94 = arith.constant 0 : index
    %c0_95 = arith.constant 0 : index
    %138 = vector.load %arg5[%c2_93, %c0_94, %c0_95] : memref<15x200x100xf32, #tpu.memory_space<vmem>>, vector<1x200x100xf32>
    %139 = vector.shape_cast %138 : vector<1x200x100xf32> to vector<200x100xf32>
    %cst_96 = arith.constant dense<0.000000e+00> : vector<16x100xf32>
    %140 = tpu.matmul %137, %139, %cst_96 {dimension_numbers = #tpu.dot_dimension_numbers<[1], [0], [0], [1], [0, 0, 1, 1], [], []>} : vector<16x200xf32>, vector<200x100xf32>, vector<16x100xf32> -> vector<16x100xf32>
    %141 = vector.extract_strided_slice %87 {offsets = [1, 0], sizes = [16, 200], strides = [1, 1]} : vector<20x200xf32> to vector<16x200xf32>
    %c5_97 = arith.constant 5 : index
    %c0_98 = arith.constant 0 : index
    %c0_99 = arith.constant 0 : index
    %142 = vector.load %arg5[%c5_97, %c0_98, %c0_99] : memref<15x200x100xf32, #tpu.memory_space<vmem>>, vector<1x200x100xf32>
    %143 = vector.shape_cast %142 : vector<1x200x100xf32> to vector<200x100xf32>
    %cst_100 = arith.constant dense<0.000000e+00> : vector<16x100xf32>
    %144 = tpu.matmul %141, %143, %cst_100 {dimension_numbers = #tpu.dot_dimension_numbers<[1], [0], [0], [1], [0, 0, 1, 1], [], []>} : vector<16x200xf32>, vector<200x100xf32>, vector<16x100xf32> -> vector<16x100xf32>
    %145 = arith.addf %140, %144 : vector<16x100xf32>
    %146 = vector.extract_strided_slice %87 {offsets = [2, 0], sizes = [16, 200], strides = [1, 1]} : vector<20x200xf32> to vector<16x200xf32>
    %c8_101 = arith.constant 8 : index
    %c0_102 = arith.constant 0 : index
    %c0_103 = arith.constant 0 : index
    %147 = vector.load %arg5[%c8_101, %c0_102, %c0_103] : memref<15x200x100xf32, #tpu.memory_space<vmem>>, vector<1x200x100xf32>
    %148 = vector.shape_cast %147 : vector<1x200x100xf32> to vector<200x100xf32>
    %cst_104 = arith.constant dense<0.000000e+00> : vector<16x100xf32>
    %149 = tpu.matmul %146, %148, %cst_104 {dimension_numbers = #tpu.dot_dimension_numbers<[1], [0], [0], [1], [0, 0, 1, 1], [], []>} : vector<16x200xf32>, vector<200x100xf32>, vector<16x100xf32> -> vector<16x100xf32>
    %150 = arith.addf %145, %149 : vector<16x100xf32>
    %151 = vector.extract_strided_slice %87 {offsets = [3, 0], sizes = [16, 200], strides = [1, 1]} : vector<20x200xf32> to vector<16x200xf32>
    %c11_105 = arith.constant 11 : index
    %c0_106 = arith.constant 0 : index
    %c0_107 = arith.constant 0 : index
    %152 = vector.load %arg5[%c11_105, %c0_106, %c0_107] : memref<15x200x100xf32, #tpu.memory_space<vmem>>, vector<1x200x100xf32>
    %153 = vector.shape_cast %152 : vector<1x200x100xf32> to vector<200x100xf32>
    %cst_108 = arith.constant dense<0.000000e+00> : vector<16x100xf32>
    %154 = tpu.matmul %151, %153, %cst_108 {dimension_numbers = #tpu.dot_dimension_numbers<[1], [0], [0], [1], [0, 0, 1, 1], [], []>} : vector<16x200xf32>, vector<200x100xf32>, vector<16x100xf32> -> vector<16x100xf32>
    %155 = arith.addf %150, %154 : vector<16x100xf32>
    %156 = vector.extract_strided_slice %87 {offsets = [4, 0], sizes = [16, 200], strides = [1, 1]} : vector<20x200xf32> to vector<16x200xf32>
    %c14_109 = arith.constant 14 : index
    %c0_110 = arith.constant 0 : index
    %c0_111 = arith.constant 0 : index
    %157 = vector.load %arg5[%c14_109, %c0_110, %c0_111] : memref<15x200x100xf32, #tpu.memory_space<vmem>>, vector<1x200x100xf32>
    %158 = vector.shape_cast %157 : vector<1x200x100xf32> to vector<200x100xf32>
    %cst_112 = arith.constant dense<0.000000e+00> : vector<16x100xf32>
    %159 = tpu.matmul %156, %158, %cst_112 {dimension_numbers = #tpu.dot_dimension_numbers<[1], [0], [0], [1], [0, 0, 1, 1], [], []>} : vector<16x200xf32>, vector<200x100xf32>, vector<16x100xf32> -> vector<16x100xf32>
    %160 = arith.addf %155, %159 : vector<16x100xf32>
    %161 = arith.maximumf %136, %160 : vector<16x100xf32>
    %162 = vector.extract_strided_slice %161 {offsets = [0, 0], sizes = [14, 100], strides = [1, 1]} : vector<16x100xf32> to vector<14x100xf32>
    %163 = vector.extract_strided_slice %161 {offsets = [1, 0], sizes = [14, 100], strides = [1, 1]} : vector<16x100xf32> to vector<14x100xf32>
    %164 = arith.maximumf %162, %163 : vector<14x100xf32>
    %165 = vector.extract_strided_slice %161 {offsets = [2, 0], sizes = [14, 100], strides = [1, 1]} : vector<16x100xf32> to vector<14x100xf32>
    %166 = arith.maximumf %164, %165 : vector<14x100xf32>
    %c0_113 = arith.constant 0 : index
    %c0_114 = arith.constant 0 : index
    %167 = vector.load %arg7[%c0_113, %c0_114] : memref<5x14xf32, #tpu.memory_space<vmem>>, vector<5x14xf32>
    %cst_115 = arith.constant dense<0.000000e+00> : vector<5x100xf32>
    %168 = tpu.matmul %167, %166, %cst_115 {dimension_numbers = #tpu.dot_dimension_numbers<[1], [0], [0], [1], [0, 0, 1, 1], [], []>} : vector<5x14xf32>, vector<14x100xf32>, vector<5x100xf32> -> vector<5x100xf32>
    %c0_116 = arith.constant 0 : index
    %c0_117 = arith.constant 0 : index
    %169 = vector.load %arg6[%c0_116, %c0_117] : memref<1x100xf32, #tpu.memory_space<vmem>>, vector<1x100xf32>
    %170 = vector.broadcast %169 : vector<1x100xf32> to vector<5x100xf32>
    %171 = arith.addf %168, %170 : vector<5x100xf32>
    %cst_118 = arith.constant 0.000000e+00 : f32
    %172 = vector.broadcast %cst_118 : f32 to vector<5x100xf32>
    %173 = arith.maximumf %171, %172 : vector<5x100xf32>
    %c0_119 = arith.constant 0 : index
    %c0_120 = arith.constant 0 : index
    %174 = vector.load %arg8[%c0_119, %c0_120] : memref<100x640xf32, #tpu.memory_space<vmem>>, vector<100x640xf32>
    %cst_121 = arith.constant dense<0.000000e+00> : vector<5x640xf32>
    %175 = tpu.matmul %173, %174, %cst_121 {dimension_numbers = #tpu.dot_dimension_numbers<[1], [0], [0], [1], [0, 0, 1, 1], [], []>} : vector<5x100xf32>, vector<100x640xf32>, vector<5x640xf32> -> vector<5x640xf32>
    %176 = vector.extract_strided_slice %175 {offsets = [0, 0], sizes = [1, 128], strides = [1, 1]} : vector<5x640xf32> to vector<1x128xf32>
    %177 = vector.extract_strided_slice %175 {offsets = [1, 128], sizes = [1, 128], strides = [1, 1]} : vector<5x640xf32> to vector<1x128xf32>
    %178 = arith.addf %176, %177 : vector<1x128xf32>
    %179 = vector.extract_strided_slice %175 {offsets = [2, 256], sizes = [1, 128], strides = [1, 1]} : vector<5x640xf32> to vector<1x128xf32>
    %180 = arith.addf %178, %179 : vector<1x128xf32>
    %181 = vector.extract_strided_slice %175 {offsets = [3, 384], sizes = [1, 128], strides = [1, 1]} : vector<5x640xf32> to vector<1x128xf32>
    %182 = arith.addf %180, %181 : vector<1x128xf32>
    %183 = vector.extract_strided_slice %175 {offsets = [4, 512], sizes = [1, 128], strides = [1, 1]} : vector<5x640xf32> to vector<1x128xf32>
    %184 = arith.addf %182, %183 : vector<1x128xf32>
    %c0_122 = arith.constant 0 : index
    %c0_123 = arith.constant 0 : index
    %185 = vector.load %arg9[%c0_122, %c0_123] : memref<1x128xf32, #tpu.memory_space<vmem>>, vector<1x128xf32>
    %186 = arith.addf %184, %185 : vector<1x128xf32>
    %cst_124 = arith.constant 0.000000e+00 : f32
    %187 = vector.broadcast %cst_124 : f32 to vector<1x128xf32>
    %188 = arith.maximumf %186, %187 : vector<1x128xf32>
    %c0_125 = arith.constant 0 : index
    %c0_126 = arith.constant 0 : index
    %189 = vector.load %arg10[%c0_125, %c0_126] : memref<128x15xf32, #tpu.memory_space<vmem>>, vector<128x15xf32>
    %cst_127 = arith.constant dense<0.000000e+00> : vector<1x15xf32>
    %190 = tpu.matmul %188, %189, %cst_127 {dimension_numbers = #tpu.dot_dimension_numbers<[1], [0], [0], [1], [0, 0, 1, 1], [], []>} : vector<1x128xf32>, vector<128x15xf32>, vector<1x15xf32> -> vector<1x15xf32>
    %c0_128 = arith.constant 0 : index
    %c0_129 = arith.constant 0 : index
    %191 = vector.load %arg11[%c0_128, %c0_129] : memref<1x15xf32, #tpu.memory_space<vmem>>, vector<1x15xf32>
    %192 = arith.addf %190, %191 : vector<1x15xf32>
    %c0_130 = arith.constant 0 : index
    %c0_131 = arith.constant 0 : index
    %c0_132 = arith.constant 0 : index
    %193 = vector.load %arg12[%c0_130, %c0_131, %c0_132] : memref<1x1x15xf32, #tpu.memory_space<vmem>>, vector<1x1x15xf32>
    %194 = vector.shape_cast %193 : vector<1x1x15xf32> to vector<1x15xf32>
    %195 = vector.shape_cast %192 : vector<1x15xf32> to vector<1x1x15xf32>
    tpu.vector_store %arg12[%c0_130, %c0_131, %c0_132], %195 {strides = array<i32>} : memref<1x1x15xf32, #tpu.memory_space<vmem>>, vector<1x1x15xf32>,
    return
  }
  func.func @transform_0(%arg0: i32) -> (i32, i32, i32) {
    %c0_i32 = arith.constant 0 : i32
    %c0_i32_0 = arith.constant 0 : i32
    %c0_i32_1 = arith.constant 0 : i32
    return %arg0, %c0_i32, %c0_i32_0 : i32, i32, i32
  }
  func.func @transform_1(%arg0: i32) -> (i32, i32, i32) {
    %c0_i32 = arith.constant 0 : i32
    %c0_i32_0 = arith.constant 0 : i32
    %c0_i32_1 = arith.constant 0 : i32
    %c0_i32_2 = arith.constant 0 : i32
    return %c0_i32, %c0_i32_0, %c0_i32_1 : i32, i32, i32
  }
  func.func @transform_2(%arg0: i32) -> (i32, i32) {
    %c0_i32 = arith.constant 0 : i32
    %c0_i32_0 = arith.constant 0 : i32
    %c0_i32_1 = arith.constant 0 : i32
    return %c0_i32, %c0_i32_0 : i32, i32
  }
  func.func @transform_3(%arg0: i32) -> (i32, i32) {
    %c0_i32 = arith.constant 0 : i32
    %c0_i32_0 = arith.constant 0 : i32
    %c0_i32_1 = arith.constant 0 : i32
    return %c0_i32, %c0_i32_0 : i32, i32
  }
  func.func @transform_4(%arg0: i32) -> (i32, i32, i32) {
    %c0_i32 = arith.constant 0 : i32
    %c0_i32_0 = arith.constant 0 : i32
    %c0_i32_1 = arith.constant 0 : i32
    %c0_i32_2 = arith.constant 0 : i32
    return %c0_i32, %c0_i32_0, %c0_i32_1 : i32, i32, i32
  }
  func.func @transform_5(%arg0: i32) -> (i32, i32) {
    %c0_i32 = arith.constant 0 : i32
    %c0_i32_0 = arith.constant 0 : i32
    %c0_i32_1 = arith.constant 0 : i32
    return %c0_i32, %c0_i32_0 : i32, i32
  }
  func.func @transform_6(%arg0: i32) -> (i32, i32) {
    %c0_i32 = arith.constant 0 : i32
    %c0_i32_0 = arith.constant 0 : i32
    %c0_i32_1 = arith.constant 0 : i32
    return %c0_i32, %c0_i32_0 : i32, i32
  }
  func.func @transform_7(%arg0: i32) -> (i32, i32) {
    %c0_i32 = arith.constant 0 : i32
    %c0_i32_0 = arith.constant 0 : i32
    %c0_i32_1 = arith.constant 0 : i32
    return %c0_i32, %c0_i32_0 : i32, i32
  }
  func.func @transform_8(%arg0: i32) -> (i32, i32) {
    %c0_i32 = arith.constant 0 : i32
    %c0_i32_0 = arith.constant 0 : i32
    %c0_i32_1 = arith.constant 0 : i32
    return %c0_i32, %c0_i32_0 : i32, i32
  }
  func.func @transform_9(%arg0: i32) -> (i32, i32) {
    %c0_i32 = arith.constant 0 : i32
    %c0_i32_0 = arith.constant 0 : i32
    %c0_i32_1 = arith.constant 0 : i32
    return %c0_i32, %c0_i32_0 : i32, i32
  }
  func.func @transform_10(%arg0: i32) -> (i32, i32) {
    %c0_i32 = arith.constant 0 : i32
    %c0_i32_0 = arith.constant 0 : i32
    %c0_i32_1 = arith.constant 0 : i32
    return %c0_i32, %c0_i32_0 : i32, i32
  }
  func.func @transform_11(%arg0: i32) -> (i32, i32, i32) {
    %c0_i32 = arith.constant 0 : i32
    %c0_i32_0 = arith.constant 0 : i32
    %c0_i32_1 = arith.constant 0 : i32
    return %arg0, %c0_i32, %c0_i32_0 : i32, i32, i32
  }
}

</mosaic_0001>

<llo_original>
// kernel: simple_net_forward.1
$region0: #{simple_net_forward.1}
  #allocation0 [shape = 'u32[]', space=smem, size = 0x4, offset = 0x4, fixed_abs, tag = 'smem constant byte address 0x4 - core index']
  #allocation1 [shape = 'u32[144,128]{1,0:T(1,128)}', space=vmem, size = 0x12000, scoped, tag = 'internal scratch']
  %s0 = inlined_call_operand.hbm [shape: f32[2,64,64], index: 0, kind: input, shape index: {}]
  %s1 = inlined_call_operand.hbm [shape: f32[15,64,200], index: 1, kind: input, shape index: {}]
  %s2 = inlined_call_operand.hbm [shape: f32[1,200], index: 2, kind: input, shape index: {}]
  %s3 = inlined_call_operand.hbm [shape: f32[20,58], index: 3, kind: input, shape index: {}]
  %s4 = inlined_call_operand.hbm [shape: f32[15,200,100], index: 4, kind: input, shape index: {}]
  %s5 = inlined_call_operand.hbm [shape: f32[1,100], index: 5, kind: input, shape index: {}]
  %s6 = inlined_call_operand.hbm [shape: f32[5,14], index: 6, kind: input, shape index: {}]
  %s7 = inlined_call_operand.hbm [shape: f32[100,640], index: 7, kind: input, shape index: {}]
  %s8 = inlined_call_operand.hbm [shape: f32[1,128], index: 8, kind: input, shape index: {}]
  %s9 = inlined_call_operand.vmem [shape: f32[128,15], index: 9, kind: input, shape index: {}]
  %s10 = inlined_call_operand.hbm [shape: f32[1,15], index: 10, kind: input, shape index: {}]
  %s11 = inlined_call_operand.hbm [shape: f32[2,1,15], index: 11, kind: output, shape index: {}]
  %s12 = sld [smem:[#allocation0]]
  $region117: #{simple_net_forward.1} parent=0
    _
  %s14 = ssub.s32 1, %s12
  %s15 = scalar_select 0, %s14, %s12
  $region1: #{simple_net_forward.1} parent=0
    #allocation2 [shape = 'u8[65536]{0}', space=vmem, size = 0x10000, scoped, tag = 'input window, operand 0']
    #allocation3 [shape = 's32[2]{0}', space=sflag, size = 0x8, scoped, tag = 'scoped memory for simple_net_forward.1']
    #allocation4 [shape = 's32[2]{0}', space=sflag, size = 0x8, scoped, tag = 'scoped memory for simple_net_forward.1']
    #allocation5 [shape = 'u8[983040]{0}', space=vmem, size = 0xf0000, scoped, tag = 'input window, operand 1, single buffered']
    #allocation6 [shape = 's32[1]{0}', space=sflag, size = 0x4, scoped, tag = 'scoped memory for simple_net_forward.1']
    #allocation7 [shape = 'u8[1024]{0}', space=vmem, size = 0x400, scoped, tag = 'input window, operand 2, single buffered']
    #allocation8 [shape = 'u8[12288]{0}', space=vmem, size = 0x3000, scoped, tag = 'input window, operand 3, single buffered']
    #allocation9 [shape = 's32[1]{0}', space=sflag, size = 0x4, scoped, tag = 'scoped memory for simple_net_forward.1']
    #allocation10 [shape = 'u8[1536000]{0}', space=vmem, size = 0x177000, scoped, tag = 'input window, operand 4, single buffered']
    #allocation11 [shape = 'u8[512]{0}', space=vmem, size = 0x400, scoped, tag = 'input window, operand 5, single buffered']
    #allocation12 [shape = 's32[1]{0}', space=sflag, size = 0x4, scoped, tag = 'scoped memory for simple_net_forward.1']
    #allocation13 [shape = 'u8[4096]{0}', space=vmem, size = 0x1000, scoped, tag = 'input window, operand 6, single buffered']
    #allocation14 [shape = 'u8[266240]{0}', space=vmem, size = 0x41000, scoped, tag = 'input window, operand 7, single buffered']
    #allocation15 [shape = 's32[1]{0}', space=sflag, size = 0x4, scoped, tag = 'scoped memory for simple_net_forward.1']
    #allocation16 [shape = 'u8[512]{0}', space=vmem, size = 0x400, scoped, tag = 'input window, operand 8, single buffered']
    #allocation17 [shape = 'u8[512]{0}', space=vmem, size = 0x400, scoped, tag = 'input window, operand 10, single buffered']
    #allocation18 [shape = 's32[1]{0}', space=sflag, size = 0x4, scoped, tag = 'scoped memory for simple_net_forward.1']
    #allocation19 [shape = 'u8[1024]{0}', space=vmem, size = 0x400, scoped, tag = 'output window, operand 0']
    %16 = vsyncpa [#allocation3], 0
    %s17 = scalar_lea.sflag [#allocation3], 1
    %18 = vsyncpa %s17, 0
    %19 = vsyncpa [#allocation6], 0
    %20 = vsyncpa [#allocation9], 0
    %21 = vsyncpa [#allocation12], 0
    %22 = vsyncpa [#allocation15], 0
    %23 = vsyncpa [#allocation18], 0
    %24 = vsyncpa [#allocation4], 0
    %s25 = scalar_lea.sflag [#allocation4], 1
    %26 = vsyncpa %s25, 0
    loop: start=0, step=1, limit=4
    $region2: #{simple_net_forward.1} parent=1 // loop_pre_header
      _
    $region3: #{simple_net_forward.1} parent=1 // loop_header
      %s28 = sphi 0, %s32
      %p29 = scmp.ge.s32.totalorder %s28, 4
      %s38 = sphi 0, %s40
      %s41 = sphi 0, %s38
      %s42 = sphi 0, %s41
      %s58 = sphi 0, %s42
      %s62 = sphi 0, %s62
      %s64 = sphi 0, %s62
      %s65 = sphi 0, %s64
      %s79 = sphi 0, %s65
      %s83 = sphi 0, %s83
      %s85 = sphi 0, %s83
      %s86 = sphi 0, %s85
      %s100 = sphi 0, %s86
      %s104 = sphi 0, %s104
      %s106 = sphi 0, %s104
      %s107 = sphi 0, %s106
      %s121 = sphi 0, %s107
      %s125 = sphi 0, %s125
      %s127 = sphi 0, %s125
      %s128 = sphi 0, %s127
      %s142 = sphi 0, %s128
      %s146 = sphi 0, %s146
      %s148 = sphi 0, %s146
      %s149 = sphi 0, %s148
      %s163 = sphi 0, %s149
      %s167 = sphi 0, %s167
      %s169 = sphi 0, %s167
      %s170 = sphi 0, %s169
      %s184 = sphi 0, %s170
      %s188 = sphi 0, %s188
      %s190 = sphi 0, %s188
      %s191 = sphi 0, %s190
      %s205 = sphi 0, %s191
      %s209 = sphi 0, %s209
      %s211 = sphi 0, %s209
      %s212 = sphi 0, %s211
      %s226 = sphi 0, %s212
      %s230 = sphi 0, %s230
      %s232 = sphi 0, %s230
      %s233 = sphi 0, %s232
      %s247 = sphi 0, %s233
      %s251 = sphi 0, %s251
      %s253 = sphi 0, %s251
      %s254 = sphi 0, %s253
      %s268 = sphi 0, %s254
      %s274 = sphi 0, %s276
      %s277 = sphi 0, %s274
      %s278 = sphi 0, %s277
      %s294 = sphi 0, %s278
    $region4: #{simple_net_forward.1} parent=1 // loop_header_branch
      %31 = sbr.rel (%p29) target = $region8
    $region5: #{simple_net_forward.1} parent=1 // loop_body
      %s33 = ssub.s32 %s28, 1
      %s34 = ssub.s32 %s28, 2
      %s35 = sadd.s32 %s28, 1
      %s36 = ssub.s32 %s28, %s35
      %p37 = scmp.eq.s32.totalorder %s36, 0
      %s39 = sadd.s32 %s38, 1
      %s40 = scalar_select %p37, %s38, %s39
      %p43 = pneg %p37
      %p44 = scmp.eq.s32.totalorder %s28, 1
      %p45 = por %p43, %p44
      %p46 = scmp.ne.s32.totalorder %s38, %s41
      %p47 = scmp.eq.s32.totalorder %s28, 0
      %p48 = por %p46, %p47
      %p49 = scmp.ne.s32.totalorder %s38, %s41
      %p50 = scmp.eq.s32.totalorder %s33, 1
      %p51 = por %p49, %p50
      %p52 = scmp.ne.s32.totalorder %s41, %s42
      %p53 = scmp.eq.s32.totalorder %s33, 0
      %p54 = por %p52, %p53
      %p55 = scmp.ne.s32.totalorder %s41, %s42
      %p56 = scmp.eq.s32.totalorder %s34, 1
      %p57 = por %p55, %p56
      %p59 = scmp.ne.s32.totalorder %s42, %s58
      %p60 = scmp.eq.s32.totalorder %s34, 0
      %p61 = por %p59, %p60
      %s63 = sadd.s32 %s62, 1
      %p66 = scmp.eq.s32.totalorder %s28, 1
      %p67 = scmp.ne.s32.totalorder %s62, %s64
      %p68 = scmp.eq.s32.totalorder %s28, 0
      %p69 = por %p67, %p68
      %p70 = scmp.ne.s32.totalorder %s62, %s64
      %p71 = scmp.eq.s32.totalorder %s33, 1
      %p72 = por %p70, %p71
      %p73 = scmp.ne.s32.totalorder %s64, %s65
      %p74 = scmp.eq.s32.totalorder %s33, 0
      %p75 = por %p73, %p74
      %p76 = scmp.ne.s32.totalorder %s64, %s65
      %p77 = scmp.eq.s32.totalorder %s34, 1
      %p78 = por %p76, %p77
      %p80 = scmp.ne.s32.totalorder %s65, %s79
      %p81 = scmp.eq.s32.totalorder %s34, 0
      %p82 = por %p80, %p81
      %s84 = sadd.s32 %s83, 1
      %p87 = scmp.eq.s32.totalorder %s28, 1
      %p88 = scmp.ne.s32.totalorder %s83, %s85
      %p89 = scmp.eq.s32.totalorder %s28, 0
      %p90 = por %p88, %p89
      %p91 = scmp.ne.s32.totalorder %s83, %s85
      %p92 = scmp.eq.s32.totalorder %s33, 1
      %p93 = por %p91, %p92
      %p94 = scmp.ne.s32.totalorder %s85, %s86
      %p95 = scmp.eq.s32.totalorder %s33, 0
      %p96 = por %p94, %p95
      %p97 = scmp.ne.s32.totalorder %s85, %s86
      %p98 = scmp.eq.s32.totalorder %s34, 1
      %p99 = por %p97, %p98
      %p101 = scmp.ne.s32.totalorder %s86, %s100
      %p102 = scmp.eq.s32.totalorder %s34, 0
      %p103 = por %p101, %p102
      %s105 = sadd.s32 %s104, 1
      %p108 = scmp.eq.s32.totalorder %s28, 1
      %p109 = scmp.ne.s32.totalorder %s104, %s106
      %p110 = scmp.eq.s32.totalorder %s28, 0
      %p111 = por %p109, %p110
      %p112 = scmp.ne.s32.totalorder %s104, %s106
      %p113 = scmp.eq.s32.totalorder %s33, 1
      %p114 = por %p112, %p113
      %p115 = scmp.ne.s32.totalorder %s106, %s107
      %p116 = scmp.eq.s32.totalorder %s33, 0
      %p117 = por %p115, %p116
      %p118 = scmp.ne.s32.totalorder %s106, %s107
      %p119 = scmp.eq.s32.totalorder %s34, 1
      %p120 = por %p118, %p119
      %p122 = scmp.ne.s32.totalorder %s107, %s121
      %p123 = scmp.eq.s32.totalorder %s34, 0
      %p124 = por %p122, %p123
      %s126 = sadd.s32 %s125, 1
      %p129 = scmp.eq.s32.totalorder %s28, 1
      %p130 = scmp.ne.s32.totalorder %s125, %s127
      %p131 = scmp.eq.s32.totalorder %s28, 0
      %p132 = por %p130, %p131
      %p133 = scmp.ne.s32.totalorder %s125, %s127
      %p134 = scmp.eq.s32.totalorder %s33, 1
      %p135 = por %p133, %p134
      %p136 = scmp.ne.s32.totalorder %s127, %s128
      %p137 = scmp.eq.s32.totalorder %s33, 0
      %p138 = por %p136, %p137
      %p139 = scmp.ne.s32.totalorder %s127, %s128
      %p140 = scmp.eq.s32.totalorder %s34, 1
      %p141 = por %p139, %p140
      %p143 = scmp.ne.s32.totalorder %s128, %s142
      %p144 = scmp.eq.s32.totalorder %s34, 0
      %p145 = por %p143, %p144
      %s147 = sadd.s32 %s146, 1
      %p150 = scmp.eq.s32.totalorder %s28, 1
      %p151 = scmp.ne.s32.totalorder %s146, %s148
      %p152 = scmp.eq.s32.totalorder %s28, 0
      %p153 = por %p151, %p152
      %p154 = scmp.ne.s32.totalorder %s146, %s148
      %p155 = scmp.eq.s32.totalorder %s33, 1
      %p156 = por %p154, %p155
      %p157 = scmp.ne.s32.totalorder %s148, %s149
      %p158 = scmp.eq.s32.totalorder %s33, 0
      %p159 = por %p157, %p158
      %p160 = scmp.ne.s32.totalorder %s148, %s149
      %p161 = scmp.eq.s32.totalorder %s34, 1
      %p162 = por %p160, %p161
      %p164 = scmp.ne.s32.totalorder %s149, %s163
      %p165 = scmp.eq.s32.totalorder %s34, 0
      %p166 = por %p164, %p165
      %s168 = sadd.s32 %s167, 1
      %p171 = scmp.eq.s32.totalorder %s28, 1
      %p172 = scmp.ne.s32.totalorder %s167, %s169
      %p173 = scmp.eq.s32.totalorder %s28, 0
      %p174 = por %p172, %p173
      %p175 = scmp.ne.s32.totalorder %s167, %s169
      %p176 = scmp.eq.s32.totalorder %s33, 1
      %p177 = por %p175, %p176
      %p178 = scmp.ne.s32.totalorder %s169, %s170
      %p179 = scmp.eq.s32.totalorder %s33, 0
      %p180 = por %p178, %p179
      %p181 = scmp.ne.s32.totalorder %s169, %s170
      %p182 = scmp.eq.s32.totalorder %s34, 1
      %p183 = por %p181, %p182
      %p185 = scmp.ne.s32.totalorder %s170, %s184
      %p186 = scmp.eq.s32.totalorder %s34, 0
      %p187 = por %p185, %p186
      %s189 = sadd.s32 %s188, 1
      %p192 = scmp.eq.s32.totalorder %s28, 1
      %p193 = scmp.ne.s32.totalorder %s188, %s190
      %p194 = scmp.eq.s32.totalorder %s28, 0
      %p195 = por %p193, %p194
      %p196 = scmp.ne.s32.totalorder %s188, %s190
      %p197 = scmp.eq.s32.totalorder %s33, 1
      %p198 = por %p196, %p197
      %p199 = scmp.ne.s32.totalorder %s190, %s191
      %p200 = scmp.eq.s32.totalorder %s33, 0
      %p201 = por %p199, %p200
      %p202 = scmp.ne.s32.totalorder %s190, %s191
      %p203 = scmp.eq.s32.totalorder %s34, 1
      %p204 = por %p202, %p203
      %p206 = scmp.ne.s32.totalorder %s191, %s205
      %p207 = scmp.eq.s32.totalorder %s34, 0
      %p208 = por %p206, %p207
      %s210 = sadd.s32 %s209, 1
      %p213 = scmp.eq.s32.totalorder %s28, 1
      %p214 = scmp.ne.s32.totalorder %s209, %s211
      %p215 = scmp.eq.s32.totalorder %s28, 0
      %p216 = por %p214, %p215
      %p217 = scmp.ne.s32.totalorder %s209, %s211
      %p218 = scmp.eq.s32.totalorder %s33, 1
      %p219 = por %p217, %p218
      %p220 = scmp.ne.s32.totalorder %s211, %s212
      %p221 = scmp.eq.s32.totalorder %s33, 0
      %p222 = por %p220, %p221
      %p223 = scmp.ne.s32.totalorder %s211, %s212
      %p224 = scmp.eq.s32.totalorder %s34, 1
      %p225 = por %p223, %p224
      %p227 = scmp.ne.s32.totalorder %s212, %s226
      %p228 = scmp.eq.s32.totalorder %s34, 0
      %p229 = por %p227, %p228
      %s231 = sadd.s32 %s230, 1
      %p234 = scmp.eq.s32.totalorder %s28, 1
      %p235 = scmp.ne.s32.totalorder %s230, %s232
      %p236 = scmp.eq.s32.totalorder %s28, 0
      %p237 = por %p235, %p236
      %p238 = scmp.ne.s32.totalorder %s230, %s232
      %p239 = scmp.eq.s32.totalorder %s33, 1
      %p240 = por %p238, %p239
      %p241 = scmp.ne.s32.totalorder %s232, %s233
      %p242 = scmp.eq.s32.totalorder %s33, 0
      %p243 = por %p241, %p242
      %p244 = scmp.ne.s32.totalorder %s232, %s233
      %p245 = scmp.eq.s32.totalorder %s34, 1
      %p246 = por %p244, %p245
      %p248 = scmp.ne.s32.totalorder %s233, %s247
      %p249 = scmp.eq.s32.totalorder %s34, 0
      %p250 = por %p248, %p249
      %s252 = sadd.s32 %s251, 1
      %p255 = scmp.eq.s32.totalorder %s28, 1
      %p256 = scmp.ne.s32.totalorder %s251, %s253
      %p257 = scmp.eq.s32.totalorder %s28, 0
      %p258 = por %p256, %p257
      %p259 = scmp.ne.s32.totalorder %s251, %s253
      %p260 = scmp.eq.s32.totalorder %s33, 1
      %p261 = por %p259, %p260
      %p262 = scmp.ne.s32.totalorder %s253, %s254
      %p263 = scmp.eq.s32.totalorder %s33, 0
      %p264 = por %p262, %p263
      %p265 = scmp.ne.s32.totalorder %s253, %s254
      %p266 = scmp.eq.s32.totalorder %s34, 1
      %p267 = por %p265, %p266
      %p269 = scmp.ne.s32.totalorder %s254, %s268
      %p270 = scmp.eq.s32.totalorder %s34, 0
      %p271 = por %p269, %p270
      %s272 = ssub.s32 %s28, %s35
      %p273 = scmp.eq.s32.totalorder %s272, 0
      %s275 = sadd.s32 %s274, 1
      %s276 = scalar_select %p273, %s274, %s275
      %p279 = pneg %p273
      %p280 = scmp.eq.s32.totalorder %s28, 1
      %p281 = por %p279, %p280
      %p282 = scmp.ne.s32.totalorder %s274, %s277
      %p283 = scmp.eq.s32.totalorder %s28, 0
      %p284 = por %p282, %p283
      %p285 = scmp.ne.s32.totalorder %s274, %s277
      %p286 = scmp.eq.s32.totalorder %s33, 1
      %p287 = por %p285, %p286
      %p288 = scmp.ne.s32.totalorder %s277, %s278
      %p289 = scmp.eq.s32.totalorder %s33, 0
      %p290 = por %p288, %p289
      %p291 = scmp.ne.s32.totalorder %s277, %s278
      %p292 = scmp.eq.s32.totalorder %s34, 1
      %p293 = por %p291, %p292
      %p295 = scmp.ne.s32.totalorder %s278, %s294
      %p296 = scmp.eq.s32.totalorder %s34, 0
      %p297 = por %p295, %p296
      %p298 = scmp.le.s32.totalorder 1, %s28
      %p299 = scmp.lt.s32.totalorder %s28, 3
      %p300 = pnand %p298, %p299
      %p301 = pneg %p300
      // Predicated region
      $region9: #{simple_net_forward.1} parent=5 // pred_check
        _
      $region10: #{simple_net_forward.1} parent=5 // pred_check_branch
        %303 = sbr.rel (%p300) target = $region12
      $region11: #{simple_net_forward.1} parent=5 // pred_region
        %s304 = ssub.s32 %s28, 1
        // Predicated region
        $region13: #{simple_net_forward.1} parent=11 // pred_check
          %p305 = pneg %p75
        $region14: #{simple_net_forward.1} parent=11 // pred_check_branch
          %307 = sbr.rel (%p305) target = $region16
        $region15: #{simple_net_forward.1} parent=11 // pred_region
          %s309 = ssub.s32 30720, 30720
          %310 = vsyncadd [#allocation6], %s309
          %s311 = sshll.u32 [#allocation5], 4
          %s312 = int_to_ptr.vmem [resolvable:$true] %s311
          %317 = dma.hbm_to_vmem [thread:$0]  %s1, 30720, %s312, [#allocation6], 256, 256, 16
        $region16: #{simple_net_forward.1} parent=11 // pred_fallthru
          _
        // Predicated region
        $region17: #{simple_net_forward.1} parent=11 // pred_check
          %p318 = pneg %p96
        $region18: #{simple_net_forward.1} parent=11 // pred_check_branch
          %320 = sbr.rel (%p318) target = $region20
        $region19: #{simple_net_forward.1} parent=11 // pred_region
          %s322 = ssub.s32 32, 32
          %323 = vsyncadd [#allocation6], %s322
          %s325 = sshll.u32 [#allocation7], 4
          %s326 = int_to_ptr.vmem [resolvable:$true] %s325
          %328 = dma.hbm_to_vmem [thread:$0]  %s2, 32, %s326, [#allocation6]
        $region20: #{simple_net_forward.1} parent=11 // pred_fallthru
          _
        // Predicated region
        $region21: #{simple_net_forward.1} parent=11 // pred_check
          %p329 = pneg %p117
        $region22: #{simple_net_forward.1} parent=11 // pred_check_branch
          %331 = sbr.rel (%p329) target = $region24
        $region23: #{simple_net_forward.1} parent=11 // pred_region
          %s333 = ssub.s32 384, 384
          %334 = vsyncadd [#allocation9], %s333
          %s335 = sshll.u32 [#allocation8], 4
          %s336 = int_to_ptr.vmem [resolvable:$true] %s335
          %341 = dma.hbm_to_vmem [thread:$0]  %s3, 384, %s336, [#allocation9], 128, 128, 8
        $region24: #{simple_net_forward.1} parent=11 // pred_fallthru
          _
        // Predicated region
        $region25: #{simple_net_forward.1} parent=11 // pred_check
          %p342 = pneg %p138
        $region26: #{simple_net_forward.1} parent=11 // pred_check_branch
          %344 = sbr.rel (%p342) target = $region28
        $region27: #{simple_net_forward.1} parent=11 // pred_region
          %s346 = ssub.s32 48000, 48000
          %347 = vsyncadd [#allocation9], %s346
          %s348 = sshll.u32 [#allocation10], 4
          %s349 = int_to_ptr.vmem [resolvable:$true] %s348
          %354 = dma.hbm_to_vmem [thread:$0]  %s4, 48000, %s349, [#allocation9], 128, 128, 8
        $region28: #{simple_net_forward.1} parent=11 // pred_fallthru
          _
        // Predicated region
        $region29: #{simple_net_forward.1} parent=11 // pred_check
          %p355 = pneg %p159
        $region30: #{simple_net_forward.1} parent=11 // pred_check_branch
          %357 = sbr.rel (%p355) target = $region32
        $region31: #{simple_net_forward.1} parent=11 // pred_region
          %s359 = ssub.s32 16, 16
          %360 = vsyncadd [#allocation12], %s359
          %s362 = sshll.u32 [#allocation11], 4
          %s363 = int_to_ptr.vmem [resolvable:$true] %s362
          %365 = dma.hbm_to_vmem [thread:$0]  %s5, 16, %s363, [#allocation12]
        $region32: #{simple_net_forward.1} parent=11 // pred_fallthru
          _
        // Predicated region
        $region33: #{simple_net_forward.1} parent=11 // pred_check
          %p366 = pneg %p180
        $region34: #{simple_net_forward.1} parent=11 // pred_check_branch
          %368 = sbr.rel (%p366) target = $region36
        $region35: #{simple_net_forward.1} parent=11 // pred_region
          %s370 = ssub.s32 128, 128
          %371 = vsyncadd [#allocation12], %s370
          %s373 = sshll.u32 [#allocation13], 4
          %s374 = int_to_ptr.vmem [resolvable:$true] %s373
          %376 = dma.hbm_to_vmem [thread:$0]  %s6, 128, %s374, [#allocation12]
        $region36: #{simple_net_forward.1} parent=11 // pred_fallthru
          _
        // Predicated region
        $region37: #{simple_net_forward.1} parent=11 // pred_check
          %p377 = pneg %p201
        $region38: #{simple_net_forward.1} parent=11 // pred_check_branch
          %379 = sbr.rel (%p377) target = $region40
        $region39: #{simple_net_forward.1} parent=11 // pred_region
          %s381 = ssub.s32 8320, 8320
          %382 = vsyncadd [#allocation15], %s381
          %s383 = sshll.u32 [#allocation14], 4
          %s384 = int_to_ptr.vmem [resolvable:$true] %s383
          %389 = dma.hbm_to_vmem [thread:$0]  %s7, 8320, %s384, [#allocation15], 640, 640, 40
        $region40: #{simple_net_forward.1} parent=11 // pred_fallthru
          _
        // Predicated region
        $region41: #{simple_net_forward.1} parent=11 // pred_check
          %p390 = pneg %p222
        $region42: #{simple_net_forward.1} parent=11 // pred_check_branch
          %392 = sbr.rel (%p390) target = $region44
        $region43: #{simple_net_forward.1} parent=11 // pred_region
          %s394 = ssub.s32 16, 16
          %395 = vsyncadd [#allocation15], %s394
          %s397 = sshll.u32 [#allocation16], 4
          %s398 = int_to_ptr.vmem [resolvable:$true] %s397
          %400 = dma.hbm_to_vmem [thread:$0]  %s8, 16, %s398, [#allocation15]
        $region44: #{simple_net_forward.1} parent=11 // pred_fallthru
          _
        // Predicated region
        $region45: #{simple_net_forward.1} parent=11 // pred_check
          %p401 = pneg %p243
        $region46: #{simple_net_forward.1} parent=11 // pred_check_branch
          %403 = sbr.rel (%p401) target = $region48
        $region47: #{simple_net_forward.1} parent=11 // pred_region
          _
        $region48: #{simple_net_forward.1} parent=11 // pred_fallthru
          _
        // Predicated region
        $region49: #{simple_net_forward.1} parent=11 // pred_check
          %p404 = pneg %p264
        $region50: #{simple_net_forward.1} parent=11 // pred_check_branch
          %406 = sbr.rel (%p404) target = $region52
        $region51: #{simple_net_forward.1} parent=11 // pred_region
          %s408 = ssub.s32 16, 16
          %409 = vsyncadd [#allocation18], %s408
          %s411 = sshll.u32 [#allocation17], 4
          %s412 = int_to_ptr.vmem [resolvable:$true] %s411
          %414 = dma.hbm_to_vmem [thread:$0]  %s10, 16, %s412, [#allocation18]
        $region52: #{simple_net_forward.1} parent=11 // pred_fallthru
          _
      $region12: #{simple_net_forward.1} parent=5 // pred_fallthru
        _
      %p415 = scmp.lt.s32.totalorder %s28, 2
      // Predicated region
      $region53: #{simple_net_forward.1} parent=5 // pred_check
        %p416 = pneg %p415
      $region54: #{simple_net_forward.1} parent=5 // pred_check_branch
        %418 = sbr.rel (%p416) target = $region56
      $region55: #{simple_net_forward.1} parent=5 // pred_region
        // Predicated region
        $region57: #{simple_net_forward.1} parent=55 // pred_check
          %p419 = pneg %p48
        $region58: #{simple_net_forward.1} parent=55 // pred_check_branch
          %421 = sbr.rel (%p419) target = $region60
        $region59: #{simple_net_forward.1} parent=55 // pred_region
          %s422 = sand.u32 %s38, 1
          %s423 = scalar_lea.sflag [#allocation3], %s422
          %s424 = sand.u32 %s38, 1
          %s425 = smul.addr %s424, 64
          %s426 = scalar_lea.vmem [#allocation2], %s425
          %s428 = ssub.s32 1024, 1024
          %429 = vsyncadd %s423, %s428
          %s430 = smul.addr %s28, 8
          %s431 = smul.addr %s430, 128
          %s432 = scalar_lea.hbm %s0, %s431
          %s433 = sshll.u32 %s426, 4
          %s434 = int_to_ptr.vmem [resolvable:$true] %s433
          %439 = dma.hbm_to_vmem [thread:$0]  %s432, 1024, %s434, %s423, 128, 128, 8
        $region60: #{simple_net_forward.1} parent=55 // pred_fallthru
          _
      $region56: #{simple_net_forward.1} parent=5 // pred_fallthru
        _
      %p440 = scmp.le.s32.totalorder 1, %s28
      %p441 = scmp.lt.s32.totalorder %s28, 3
      %p442 = pnand %p440, %p441
      %p443 = pneg %p442
      // Predicated region
      $region61: #{simple_net_forward.1} parent=5 // pred_check
        _
      $region62: #{simple_net_forward.1} parent=5 // pred_check_branch
        %445 = sbr.rel (%p442) target = $region64
      $region63: #{simple_net_forward.1} parent=5 // pred_region
        %s446 = ssub.s32 %s28, 1
        %s447 = sand.u32 %s41, 1
        %s448 = scalar_lea.sflag [#allocation3], %s447
        %s449 = sand.u32 %s41, 1
        %s450 = smul.addr %s449, 64
        %s451 = scalar_lea.vmem [#allocation2], %s450
        // Predicated region
        $region65: #{simple_net_forward.1} parent=63 // pred_check
          %p452 = pneg %p54
        $region66: #{simple_net_forward.1} parent=63 // pred_check_branch
          %454 = sbr.rel (%p452) target = $region68
        $region67: #{simple_net_forward.1} parent=63 // pred_region
          %455 = dma.done %s448, 1024
        $region68: #{simple_net_forward.1} parent=63 // pred_fallthru
          _
        // Predicated region
        $region69: #{simple_net_forward.1} parent=63 // pred_check
          %p456 = pneg %p75
        $region70: #{simple_net_forward.1} parent=63 // pred_check_branch
          %458 = sbr.rel (%p456) target = $region72
        $region71: #{simple_net_forward.1} parent=63 // pred_region
          %459 = dma.done [#allocation6], 30720
        $region72: #{simple_net_forward.1} parent=63 // pred_fallthru
          _
        // Predicated region
        $region73: #{simple_net_forward.1} parent=63 // pred_check
          %p460 = pneg %p96
        $region74: #{simple_net_forward.1} parent=63 // pred_check_branch
          %462 = sbr.rel (%p460) target = $region76
        $region75: #{simple_net_forward.1} parent=63 // pred_region
          %463 = dma.done [#allocation6], 32
        $region76: #{simple_net_forward.1} parent=63 // pred_fallthru
          _
        // Predicated region
        $region77: #{simple_net_forward.1} parent=63 // pred_check
          %p464 = pneg %p117
        $region78: #{simple_net_forward.1} parent=63 // pred_check_branch
          %466 = sbr.rel (%p464) target = $region80
        $region79: #{simple_net_forward.1} parent=63 // pred_region
          %467 = dma.done [#allocation9], 384
        $region80: #{simple_net_forward.1} parent=63 // pred_fallthru
          _
        // Predicated region
        $region81: #{simple_net_forward.1} parent=63 // pred_check
          %p468 = pneg %p138
        $region82: #{simple_net_forward.1} parent=63 // pred_check_branch
          %470 = sbr.rel (%p468) target = $region84
        $region83: #{simple_net_forward.1} parent=63 // pred_region
          %471 = dma.done [#allocation9], 48000
        $region84: #{simple_net_forward.1} parent=63 // pred_fallthru
          _
        // Predicated region
        $region85: #{simple_net_forward.1} parent=63 // pred_check
          %p472 = pneg %p159
        $region86: #{simple_net_forward.1} parent=63 // pred_check_branch
          %474 = sbr.rel (%p472) target = $region88
        $region87: #{simple_net_forward.1} parent=63 // pred_region
          %475 = dma.done [#allocation12], 16
        $region88: #{simple_net_forward.1} parent=63 // pred_fallthru
          _
        // Predicated region
        $region89: #{simple_net_forward.1} parent=63 // pred_check
          %p476 = pneg %p180
        $region90: #{simple_net_forward.1} parent=63 // pred_check_branch
          %478 = sbr.rel (%p476) target = $region92
        $region91: #{simple_net_forward.1} parent=63 // pred_region
          %479 = dma.done [#allocation12], 128
        $region92: #{simple_net_forward.1} parent=63 // pred_fallthru
          _
        // Predicated region
        $region93: #{simple_net_forward.1} parent=63 // pred_check
          %p480 = pneg %p201
        $region94: #{simple_net_forward.1} parent=63 // pred_check_branch
          %482 = sbr.rel (%p480) target = $region96
        $region95: #{simple_net_forward.1} parent=63 // pred_region
          %483 = dma.done [#allocation15], 8320
        $region96: #{simple_net_forward.1} parent=63 // pred_fallthru
          _
        // Predicated region
        $region97: #{simple_net_forward.1} parent=63 // pred_check
          %p484 = pneg %p222
        $region98: #{simple_net_forward.1} parent=63 // pred_check_branch
          %486 = sbr.rel (%p484) target = $region100
        $region99: #{simple_net_forward.1} parent=63 // pred_region
          %487 = dma.done [#allocation15], 16
        $region100: #{simple_net_forward.1} parent=63 // pred_fallthru
          _
        // Predicated region
        $region101: #{simple_net_forward.1} parent=63 // pred_check
          %p488 = pneg %p264
        $region102: #{simple_net_forward.1} parent=63 // pred_check_branch
          %490 = sbr.rel (%p488) target = $region104
        $region103: #{simple_net_forward.1} parent=63 // pred_region
          %491 = dma.done [#allocation18], 16
        $region104: #{simple_net_forward.1} parent=63 // pred_fallthru
          _
        %s492 = sand.u32 %s41, 1
        %s493 = scalar_lea.sflag [#allocation3], %s492
        %s494 = sand.u32 %s41, 1
        %s495 = smul.addr %s494, 64
        %s496 = scalar_lea.vmem [#allocation2], %s495
        %p497 = pneg %p54
        %p498 = pneg %p51
        %p499 = pneg %p75
        %p500 = pneg %p72
        %p501 = pneg %p96
        %p502 = pneg %p93
        %p503 = pneg %p117
        %p504 = pneg %p114
        %p505 = pneg %p138
        %p506 = pneg %p135
        %p507 = pneg %p159
        %p508 = pneg %p156
        %p509 = pneg %p180
        %p510 = pneg %p177
        %p511 = pneg %p201
        %p512 = pneg %p198
        %p513 = pneg %p222
        %p514 = pneg %p219
        %p515 = pneg %p243
        %p516 = pneg %p240
        %p517 = pneg %p264
        %p518 = pneg %p261
        %p519 = pneg %p290
        %p520 = pneg %p287
        %s521 = sand.u32 %s277, 1
        %s522 = scalar_lea.sflag [#allocation4], %s521
        %s523 = sand.u32 %s277, 1
        %s524 = scalar_lea.vmem [#allocation19], %s523
        %v525 = vld [vmem:[%s451] sm:$0xff]
        %v526 = vld [vmem:[%s451 + $0x8] sm:$0xff]
        %v527 = vld [vmem:[%s451 + $0x10] sm:$0xff]
        %v528 = vld [vmem:[%s451 + $0x18] sm:$0xff]
        %v529 = vld [vmem:[%s451 + $0x20] sm:$0xff]
        %v530 = vld [vmem:[%s451 + $0x28] sm:$0xff]
        %v531 = vld [vmem:[%s451 + $0x30] sm:$0xff]
        %v532 = vld [vmem:[%s451 + $0x38] sm:$0xff]
        %v533 = vld [vmem:[#allocation5] sm:$0xff]
        %v534 = vld [vmem:[#allocation5 + $0x8] sm:$0xff]
        %v535 = vld [vmem:[#allocation5 + $0x10] sm:$0xff]
        %v536 = vld [vmem:[#allocation5 + $0x18] sm:$0xff]
        %v537 = vld [vmem:[#allocation5 + $0x20] sm:$0xff]
        %v538 = vld [vmem:[#allocation5 + $0x28] sm:$0xff]
        %v539 = vld [vmem:[#allocation5 + $0x30] sm:$0xff]
        %v540 = vld [vmem:[#allocation5 + $0x38] sm:$0xff]
        %v541 = vld [vmem:[#allocation5 + $0x40] sm:$0xff]
        %v542 = vld [vmem:[#allocation5 + $0x48] sm:$0xff]
        %v543 = vld [vmem:[#allocation5 + $0x50] sm:$0xff]
        %v544 = vld [vmem:[#allocation5 + $0x58] sm:$0xff]
        %v545 = vld [vmem:[#allocation5 + $0x60] sm:$0xff]
        %v546 = vld [vmem:[#allocation5 + $0x68] sm:$0xff]
        %v547 = vld [vmem:[#allocation5 + $0x70] sm:$0xff]
        %v548 = vld [vmem:[#allocation5 + $0x78] sm:$0xff]
        %s549 = scalar_lea.vmem [#allocation5], 384
        %v550 = vld [vmem:[%s549] sm:$0xff]
        %v551 = vld [vmem:[%s549 + $0x8] sm:$0xff]
        %v552 = vld [vmem:[%s549 + $0x10] sm:$0xff]
        %v553 = vld [vmem:[%s549 + $0x18] sm:$0xff]
        %v554 = vld [vmem:[%s549 + $0x20] sm:$0xff]
        %v555 = vld [vmem:[%s549 + $0x28] sm:$0xff]
        %v556 = vld [vmem:[%s549 + $0x30] sm:$0xff]
        %v557 = vld [vmem:[%s549 + $0x38] sm:$0xff]
        %v558 = vld [vmem:[%s549 + $0x40] sm:$0xff]
        %v559 = vld [vmem:[%s549 + $0x48] sm:$0xff]
        %v560 = vld [vmem:[%s549 + $0x50] sm:$0xff]
        %v561 = vld [vmem:[%s549 + $0x58] sm:$0xff]
        %v562 = vld [vmem:[%s549 + $0x60] sm:$0xff]
        %v563 = vld [vmem:[%s549 + $0x68] sm:$0xff]
        %v564 = vld [vmem:[%s549 + $0x70] sm:$0xff]
        %v565 = vld [vmem:[%s549 + $0x78] sm:$0xff]
        %vm574 = vcmask 1046528
        %v575 = vrot.slane %v525, 1
        %v576 = vrot.slane %v526, 1
        %v577 = vsel %vm574, %v575, %v576
        %v578 = vrot.slane %v527, 1
        %v579 = vsel %vm574, %v576, %v578
        %v580 = vrot.slane %v528, 1
        %v581 = vsel %vm574, %v578, %v580
        %v582 = vrot.slane %v529, 1
        %v583 = vsel %vm574, %v580, %v582
        %v584 = vrot.slane %v530, 1
        %v585 = vsel %vm574, %v582, %v584
        %v586 = vrot.slane %v531, 1
        %v587 = vsel %vm574, %v584, %v586
        %v588 = vrot.slane %v532, 1
        %v589 = vsel %vm574, %v586, %v588
        %vm590 = vcmask 523264
        %v591 = vsel %vm590, %v577, 0
        %v593 = vsel %vm590, %v579, 0
        %v595 = vsel %vm590, %v581, 0
        %v597 = vsel %vm590, %v583, 0
        %v599 = vsel %vm590, %v585, 0
        %v601 = vsel %vm590, %v587, 0
        %v603 = vsel %vm590, %v589, 0
        %v605 = vsel %vm590, %v588, 0
        %607 = vmatprep.subr.mxu0 %v551
        %608 = vmatpush1.msra.mxu0 %v550
        %609 = vmatprep.subr.mxu0 %v553
        %610 = vmatpush1.msra.mxu0 %v552
        %611 = vmatprep.subr.mxu0 %v555
        %612 = vmatpush1.msra.mxu0 %v554
        %613 = vmatprep.subr.mxu0 %v557
        %614 = vmatpush1.msra.mxu0 %v556
        %615 = vmatprep.subr.mxu0 %v559
        %616 = vmatpush1.msra.mxu0 %v558
        %617 = vmatprep.subr.mxu0 %v561
        %618 = vmatpush1.msra.mxu0 %v560
        %619 = vmatprep.subr.mxu0 %v563
        %620 = vmatpush1.msra.mxu0 %v562
        %621 = vmatprep.subr.mxu0 %v565
        %622 = vmatpush1.msra.mxu0 %v564
        %623 = vmatprep.subr.mxu0 0.0
        %624 = vmatpush1.msra.mxu0 0.0
        %625 = vmatprep.subr.mxu0 0.0
        %626 = vmatpush1.msra.mxu0 0.0
        %627 = vmatprep.subr.mxu0 0.0
        %628 = vmatpush1.msra.mxu0 0.0
        %629 = vmatprep.subr.mxu0 0.0
        %630 = vmatpush1.msra.mxu0 0.0
        %631 = vmatprep.subr.mxu0 0.0
        %632 = vmatpush1.msra.mxu0 0.0
        %633 = vmatprep.subr.mxu0 0.0
        %634 = vmatpush1.msra.mxu0 0.0
        %635 = vmatprep.subr.mxu0 0.0
        %636 = vmatpush1.msra.mxu0 0.0
        %637 = vmatprep.subr.mxu0 0.0
        %638 = vmatpush1.msra.mxu0 0.0
        %639 = vmatprep.subr.mxu0 0.0
        %640 = vmatpush1.msra.mxu0 0.0
        %641 = vmatprep.subr.mxu0 0.0
        %642 = vmatpush1.msra.mxu0 0.0
        %643 = vmatprep.subr.mxu0 0.0
        %644 = vmatpush1.msra.mxu0 0.0
        %645 = vmatprep.subr.mxu0 0.0
        %646 = vmatpush1.msra.mxu0 0.0
        %647 = vmatprep.subr.mxu0 0.0
        %648 = vmatpush1.msra.mxu0 0.0
        %649 = vmatprep.subr.mxu0 0.0
        %650 = vmatpush1.msra.mxu0 0.0
        %651 = vmatprep.subr.mxu0 0.0
        %652 = vmatpush1.msra.mxu0 0.0
        %653 = vmatprep.subr.mxu0 0.0
        %654 = vmatpush1.msra.mxu0 0.0
        %655 = vmatprep.subr.mxu0 0.0
        %656 = vmatpush1.msra.mxu0 0.0
        %657 = vmatprep.subr.mxu0 0.0
        %658 = vmatpush1.msra.mxu0 0.0
        %659 = vmatprep.subr.mxu0 0.0
        %660 = vmatpush1.msra.mxu0 0.0
        %661 = vmatprep.subr.mxu0 0.0
        %662 = vmatpush1.msra.mxu0 0.0
        %663 = vmatprep.subr.mxu0 0.0
        %664 = vmatpush1.msra.mxu0 0.0
        %665 = vmatprep.subr.mxu0 0.0
        %666 = vmatpush1.msra.mxu0 0.0
        %667 = vmatprep.subr.mxu0 0.0
        %668 = vmatpush1.msra.mxu0 0.0
        %669 = vmatprep.subr.mxu0 0.0
        %670 = vmatpush1.msra.mxu0 0.0
        %671 = vmatprep.mubr.f32.mxu0 0.0
        %672 = vmatmul.mubr.f32.gmra.mrb[0].mxu0 %v591
        %v673 = vpop.f32.mrb[0].mxu0
        %v674 = vadd.f32 0.0, %v673
        %v675 = vpop.f32.mrb[0].mxu0
        %v676 = vadd.f32 0.0, %v675
        %677 = vmatprep.mubr.f32.mxu0 0.0
        %678 = vmatmul.mubr.f32.gmra.mrb[0].mxu0 %v593
        %v679 = vpop.f32.mrb[0].mxu0
        %v680 = vadd.f32 0.0, %v679
        %v681 = vpop.f32.mrb[0].mxu0
        %v682 = vadd.f32 0.0, %v681
        %683 = vmatprep.mubr.f32.mxu0 0.0
        %684 = vmatmul.mubr.f32.gmra.mrb[0].mxu0 %v595
        %v685 = vpop.f32.mrb[0].mxu0
        %v686 = vadd.f32 0.0, %v685
        %v687 = vpop.f32.mrb[0].mxu0
        %v688 = vadd.f32 0.0, %v687
        %689 = vmatprep.mubr.f32.mxu0 0.0
        %690 = vmatmul.mubr.f32.gmra.mrb[0].mxu0 %v597
        %v691 = vpop.f32.mrb[0].mxu0
        %v692 = vadd.f32 0.0, %v691
        %v693 = vpop.f32.mrb[0].mxu0
        %v694 = vadd.f32 0.0, %v693
        %695 = vmatprep.mubr.f32.mxu0 0.0
        %696 = vmatmul.mubr.f32.gmra.mrb[0].mxu0 %v599
        %v697 = vpop.f32.mrb[0].mxu0
        %v698 = vadd.f32 0.0, %v697
        %v699 = vpop.f32.mrb[0].mxu0
        %v700 = vadd.f32 0.0, %v699
        %701 = vmatprep.mubr.f32.mxu0 0.0
        %702 = vmatmul.mubr.f32.gmra.mrb[0].mxu0 %v601
        %v703 = vpop.f32.mrb[0].mxu0
        %v704 = vadd.f32 0.0, %v703
        %v705 = vpop.f32.mrb[0].mxu0
        %v706 = vadd.f32 0.0, %v705
        %707 = vmatprep.mubr.f32.mxu0 0.0
        %708 = vmatmul.mubr.f32.gmra.mrb[0].mxu0 %v603
        %v709 = vpop.f32.mrb[0].mxu0
        %v710 = vadd.f32 0.0, %v709
        %v711 = vpop.f32.mrb[0].mxu0
        %v712 = vadd.f32 0.0, %v711
        %713 = vmatprep.mubr.f32.mxu0 0.0
        %714 = vmatmul.mubr.f32.gmra.mrb[0].mxu0 %v605
        %v715 = vpop.f32.mrb[0].mxu0
        %v716 = vadd.f32 0.0, %v715
        %v717 = vpop.f32.mrb[0].mxu0
        %v718 = vadd.f32 0.0, %v717
        %719 = vdwg.mxu0
        %v720 = vsel %vm590, %v525, 0
        %v722 = vsel %vm590, %v526, 0
        %v724 = vsel %vm590, %v527, 0
        %v726 = vsel %vm590, %v528, 0
        %v728 = vsel %vm590, %v529, 0
        %v730 = vsel %vm590, %v530, 0
        %v732 = vsel %vm590, %v531, 0
        %v734 = vsel %vm590, %v532, 0
        %736 = vmatprep.subr.mxu0 %v534
        %737 = vmatpush1.msra.mxu0 %v533
        %738 = vmatprep.subr.mxu0 %v536
        %739 = vmatpush1.msra.mxu0 %v535
        %740 = vmatprep.subr.mxu0 %v538
        %741 = vmatpush1.msra.mxu0 %v537
        %742 = vmatprep.subr.mxu0 %v540
        %743 = vmatpush1.msra.mxu0 %v539
        %744 = vmatprep.subr.mxu0 %v542
        %745 = vmatpush1.msra.mxu0 %v541
        %746 = vmatprep.subr.mxu0 %v544
        %747 = vmatpush1.msra.mxu0 %v543
        %748 = vmatprep.subr.mxu0 %v546
        %749 = vmatpush1.msra.mxu0 %v545
        %750 = vmatprep.subr.mxu0 %v548
        %751 = vmatpush1.msra.mxu0 %v547
        %752 = vmatprep.subr.mxu0 0.0
        %753 = vmatpush1.msra.mxu0 0.0
        %754 = vmatprep.subr.mxu0 0.0
        %755 = vmatpush1.msra.mxu0 0.0
        %756 = vmatprep.subr.mxu0 0.0
        %757 = vmatpush1.msra.mxu0 0.0
        %758 = vmatprep.subr.mxu0 0.0
        %759 = vmatpush1.msra.mxu0 0.0
        %760 = vmatprep.subr.mxu0 0.0
        %761 = vmatpush1.msra.mxu0 0.0
        %762 = vmatprep.subr.mxu0 0.0
        %763 = vmatpush1.msra.mxu0 0.0
        %764 = vmatprep.subr.mxu0 0.0
        %765 = vmatpush1.msra.mxu0 0.0
        %766 = vmatprep.subr.mxu0 0.0
        %767 = vmatpush1.msra.mxu0 0.0
        %768 = vmatprep.subr.mxu0 0.0
        %769 = vmatpush1.msra.mxu0 0.0
        %770 = vmatprep.subr.mxu0 0.0
        %771 = vmatpush1.msra.mxu0 0.0
        %772 = vmatprep.subr.mxu0 0.0
        %773 = vmatpush1.msra.mxu0 0.0
        %774 = vmatprep.subr.mxu0 0.0
        %775 = vmatpush1.msra.mxu0 0.0
        %776 = vmatprep.subr.mxu0 0.0
        %777 = vmatpush1.msra.mxu0 0.0
        %778 = vmatprep.subr.mxu0 0.0
        %779 = vmatpush1.msra.mxu0 0.0
        %780 = vmatprep.subr.mxu0 0.0
        %781 = vmatpush1.msra.mxu0 0.0
        %782 = vmatprep.subr.mxu0 0.0
        %783 = vmatpush1.msra.mxu0 0.0
        %784 = vmatprep.subr.mxu0 0.0
        %785 = vmatpush1.msra.mxu0 0.0
        %786 = vmatprep.subr.mxu0 0.0
        %787 = vmatpush1.msra.mxu0 0.0
        %788 = vmatprep.subr.mxu0 0.0
        %789 = vmatpush1.msra.mxu0 0.0
        %790 = vmatprep.subr.mxu0 0.0
        %791 = vmatpush1.msra.mxu0 0.0
        %792 = vmatprep.subr.mxu0 0.0
        %793 = vmatpush1.msra.mxu0 0.0
        %794 = vmatprep.subr.mxu0 0.0
        %795 = vmatpush1.msra.mxu0 0.0
        %796 = vmatprep.subr.mxu0 0.0
        %797 = vmatpush1.msra.mxu0 0.0
        %798 = vmatprep.subr.mxu0 0.0
        %799 = vmatpush1.msra.mxu0 0.0
        %800 = vmatprep.mubr.f32.mxu0 0.0
        %801 = vmatmul.mubr.f32.gmra.mrb[0].mxu0 %v720
        %v802 = vpop.f32.mrb[0].mxu0
        %v803 = vadd.f32 %v674, %v802
        %v804 = vpop.f32.mrb[0].mxu0
        %v805 = vadd.f32 %v676, %v804
        %806 = vmatprep.mubr.f32.mxu0 0.0
        %807 = vmatmul.mubr.f32.gmra.mrb[0].mxu0 %v722
        %v808 = vpop.f32.mrb[0].mxu0
        %v809 = vadd.f32 %v680, %v808
        %v810 = vpop.f32.mrb[0].mxu0
        %v811 = vadd.f32 %v682, %v810
        %812 = vmatprep.mubr.f32.mxu0 0.0
        %813 = vmatmul.mubr.f32.gmra.mrb[0].mxu0 %v724
        %v814 = vpop.f32.mrb[0].mxu0
        %v815 = vadd.f32 %v686, %v814
        %v816 = vpop.f32.mrb[0].mxu0
        %v817 = vadd.f32 %v688, %v816
        %818 = vmatprep.mubr.f32.mxu0 0.0
        %819 = vmatmul.mubr.f32.gmra.mrb[0].mxu0 %v726
        %v820 = vpop.f32.mrb[0].mxu0
        %v821 = vadd.f32 %v692, %v820
        %v822 = vpop.f32.mrb[0].mxu0
        %v823 = vadd.f32 %v694, %v822
        %824 = vmatprep.mubr.f32.mxu0 0.0
        %825 = vmatmul.mubr.f32.gmra.mrb[0].mxu0 %v728
        %v826 = vpop.f32.mrb[0].mxu0
        %v827 = vadd.f32 %v698, %v826
        %v828 = vpop.f32.mrb[0].mxu0
        %v829 = vadd.f32 %v700, %v828
        %830 = vmatprep.mubr.f32.mxu0 0.0
        %831 = vmatmul.mubr.f32.gmra.mrb[0].mxu0 %v730
        %v832 = vpop.f32.mrb[0].mxu0
        %v833 = vadd.f32 %v704, %v832
        %v834 = vpop.f32.mrb[0].mxu0
        %v835 = vadd.f32 %v706, %v834
        %836 = vmatprep.mubr.f32.mxu0 0.0
        %837 = vmatmul.mubr.f32.gmra.mrb[0].mxu0 %v732
        %v838 = vpop.f32.mrb[0].mxu0
        %v839 = vadd.f32 %v710, %v838
        %v840 = vpop.f32.mrb[0].mxu0
        %v841 = vadd.f32 %v712, %v840
        %842 = vmatprep.mubr.f32.mxu0 0.0
        %843 = vmatmul.mubr.f32.gmra.mrb[0].mxu0 %v734
        %v844 = vpop.f32.mrb[0].mxu0
        %v845 = vadd.f32 %v716, %v844
        %v846 = vpop.f32.mrb[0].mxu0
        %v847 = vadd.f32 %v718, %v846
        %848 = vdwg.mxu0
        %s849 = scalar_lea.vmem [#allocation5], 768
        %v850 = vld [vmem:[%s849] sm:$0xff]
        %v851 = vld [vmem:[%s849 + $0x8] sm:$0xff]
        %v852 = vld [vmem:[%s849 + $0x10] sm:$0xff]
        %v853 = vld [vmem:[%s849 + $0x18] sm:$0xff]
        %v854 = vld [vmem:[%s849 + $0x20] sm:$0xff]
        %v855 = vld [vmem:[%s849 + $0x28] sm:$0xff]
        %v856 = vld [vmem:[%s849 + $0x30] sm:$0xff]
        %v857 = vld [vmem:[%s849 + $0x38] sm:$0xff]
        %v858 = vld [vmem:[%s849 + $0x40] sm:$0xff]
        %v859 = vld [vmem:[%s849 + $0x48] sm:$0xff]
        %v860 = vld [vmem:[%s849 + $0x50] sm:$0xff]
        %v861 = vld [vmem:[%s849 + $0x58] sm:$0xff]
        %v862 = vld [vmem:[%s849 + $0x60] sm:$0xff]
        %v863 = vld [vmem:[%s849 + $0x68] sm:$0xff]
        %v864 = vld [vmem:[%s849 + $0x70] sm:$0xff]
        %v865 = vld [vmem:[%s849 + $0x78] sm:$0xff]
        %vm866 = vcmask 1045504
        %v867 = vrot.slane %v525, 2
        %v868 = vrot.slane %v526, 2
        %v869 = vsel %vm866, %v867, %v868
        %v870 = vrot.slane %v527, 2
        %v871 = vsel %vm866, %v868, %v870
        %v872 = vrot.slane %v528, 2
        %v873 = vsel %vm866, %v870, %v872
        %v874 = vrot.slane %v529, 2
        %v875 = vsel %vm866, %v872, %v874
        %v876 = vrot.slane %v530, 2
        %v877 = vsel %vm866, %v874, %v876
        %v878 = vrot.slane %v531, 2
        %v879 = vsel %vm866, %v876, %v878
        %v880 = vrot.slane %v532, 2
        %v881 = vsel %vm866, %v878, %v880
        %v882 = vsel %vm590, %v869, 0
        %v884 = vsel %vm590, %v871, 0
        %v886 = vsel %vm590, %v873, 0
        %v888 = vsel %vm590, %v875, 0
        %v890 = vsel %vm590, %v877, 0
        %v892 = vsel %vm590, %v879, 0
        %v894 = vsel %vm590, %v881, 0
        %v896 = vsel %vm590, %v880, 0
        %898 = vmatprep.subr.mxu0 %v851
        %899 = vmatpush1.msra.mxu0 %v850
        %900 = vmatprep.subr.mxu0 %v853
        %901 = vmatpush1.msra.mxu0 %v852
        %902 = vmatprep.subr.mxu0 %v855
        %903 = vmatpush1.msra.mxu0 %v854
        %904 = vmatprep.subr.mxu0 %v857
        %905 = vmatpush1.msra.mxu0 %v856
        %906 = vmatprep.subr.mxu0 %v859
        %907 = vmatpush1.msra.mxu0 %v858
        %908 = vmatprep.subr.mxu0 %v861
        %909 = vmatpush1.msra.mxu0 %v860
        %910 = vmatprep.subr.mxu0 %v863
        %911 = vmatpush1.msra.mxu0 %v862
        %912 = vmatprep.subr.mxu0 %v865
        %913 = vmatpush1.msra.mxu0 %v864
        %914 = vmatprep.subr.mxu0 0.0
        %915 = vmatpush1.msra.mxu0 0.0
        %916 = vmatprep.subr.mxu0 0.0
        %917 = vmatpush1.msra.mxu0 0.0
        %918 = vmatprep.subr.mxu0 0.0
        %919 = vmatpush1.msra.mxu0 0.0
        %920 = vmatprep.subr.mxu0 0.0
        %921 = vmatpush1.msra.mxu0 0.0
        %922 = vmatprep.subr.mxu0 0.0
        %923 = vmatpush1.msra.mxu0 0.0
        %924 = vmatprep.subr.mxu0 0.0
        %925 = vmatpush1.msra.mxu0 0.0
        %926 = vmatprep.subr.mxu0 0.0
        %927 = vmatpush1.msra.mxu0 0.0
        %928 = vmatprep.subr.mxu0 0.0
        %929 = vmatpush1.msra.mxu0 0.0
        %930 = vmatprep.subr.mxu0 0.0
        %931 = vmatpush1.msra.mxu0 0.0
        %932 = vmatprep.subr.mxu0 0.0
        %933 = vmatpush1.msra.mxu0 0.0
        %934 = vmatprep.subr.mxu0 0.0
        %935 = vmatpush1.msra.mxu0 0.0
        %936 = vmatprep.subr.mxu0 0.0
        %937 = vmatpush1.msra.mxu0 0.0
        %938 = vmatprep.subr.mxu0 0.0
        %939 = vmatpush1.msra.mxu0 0.0
        %940 = vmatprep.subr.mxu0 0.0
        %941 = vmatpush1.msra.mxu0 0.0
        %942 = vmatprep.subr.mxu0 0.0
        %943 = vmatpush1.msra.mxu0 0.0
        %944 = vmatprep.subr.mxu0 0.0
        %945 = vmatpush1.msra.mxu0 0.0
        %946 = vmatprep.subr.mxu0 0.0
        %947 = vmatpush1.msra.mxu0 0.0
        %948 = vmatprep.subr.mxu0 0.0
        %949 = vmatpush1.msra.mxu0 0.0
        %950 = vmatprep.subr.mxu0 0.0
        %951 = vmatpush1.msra.mxu0 0.0
        %952 = vmatprep.subr.mxu0 0.0
        %953 = vmatpush1.msra.mxu0 0.0
        %954 = vmatprep.subr.mxu0 0.0
        %955 = vmatpush1.msra.mxu0 0.0
        %956 = vmatprep.subr.mxu0 0.0
        %957 = vmatpush1.msra.mxu0 0.0
        %958 = vmatprep.subr.mxu0 0.0
        %959 = vmatpush1.msra.mxu0 0.0
        %960 = vmatprep.subr.mxu0 0.0
        %961 = vmatpush1.msra.mxu0 0.0
        %962 = vmatprep.mubr.f32.mxu0 0.0
        %963 = vmatmul.mubr.f32.gmra.mrb[0].mxu0 %v882
        %v964 = vpop.f32.mrb[0].mxu0
        %v965 = vadd.f32 0.0, %v964
        %v966 = vpop.f32.mrb[0].mxu0
        %v967 = vadd.f32 0.0, %v966
        %968 = vmatprep.mubr.f32.mxu0 0.0
        %969 = vmatmul.mubr.f32.gmra.mrb[0].mxu0 %v884
        %v970 = vpop.f32.mrb[0].mxu0
        %v971 = vadd.f32 0.0, %v970
        %v972 = vpop.f32.mrb[0].mxu0
        %v973 = vadd.f32 0.0, %v972
        %974 = vmatprep.mubr.f32.mxu0 0.0
        %975 = vmatmul.mubr.f32.gmra.mrb[0].mxu0 %v886
        %v976 = vpop.f32.mrb[0].mxu0
        %v977 = vadd.f32 0.0, %v976
        %v978 = vpop.f32.mrb[0].mxu0
        %v979 = vadd.f32 0.0, %v978
        %980 = vmatprep.mubr.f32.mxu0 0.0
        %981 = vmatmul.mubr.f32.gmra.mrb[0].mxu0 %v888
        %v982 = vpop.f32.mrb[0].mxu0
        %v983 = vadd.f32 0.0, %v982
        %v984 = vpop.f32.mrb[0].mxu0
        %v985 = vadd.f32 0.0, %v984
        %986 = vmatprep.mubr.f32.mxu0 0.0
        %987 = vmatmul.mubr.f32.gmra.mrb[0].mxu0 %v890
        %v988 = vpop.f32.mrb[0].mxu0
        %v989 = vadd.f32 0.0, %v988
        %v990 = vpop.f32.mrb[0].mxu0
        %v991 = vadd.f32 0.0, %v990
        %992 = vmatprep.mubr.f32.mxu0 0.0
        %993 = vmatmul.mubr.f32.gmra.mrb[0].mxu0 %v892
        %v994 = vpop.f32.mrb[0].mxu0
        %v995 = vadd.f32 0.0, %v994
        %v996 = vpop.f32.mrb[0].mxu0
        %v997 = vadd.f32 0.0, %v996
        %998 = vmatprep.mubr.f32.mxu0 0.0
        %999 = vmatmul.mubr.f32.gmra.mrb[0].mxu0 %v894
        %v1000 = vpop.f32.mrb[0].mxu0
        %v1001 = vadd.f32 0.0, %v1000
        %v1002 = vpop.f32.mrb[0].mxu0
        %v1003 = vadd.f32 0.0, %v1002
        %1004 = vmatprep.mubr.f32.mxu0 0.0
        %1005 = vmatmul.mubr.f32.gmra.mrb[0].mxu0 %v896
        %v1006 = vpop.f32.mrb[0].mxu0
        %v1007 = vadd.f32 0.0, %v1006
        %v1008 = vpop.f32.mrb[0].mxu0
        %v1009 = vadd.f32 0.0, %v1008
        %1010 = vdwg.mxu0
        %v1011 = vadd.f32 %v803, %v965
        %v1012 = vadd.f32 %v805, %v967
        %v1013 = vadd.f32 %v809, %v971
        %v1014 = vadd.f32 %v811, %v973
        %v1015 = vadd.f32 %v815, %v977
        %v1016 = vadd.f32 %v817, %v979
        %v1017 = vadd.f32 %v821, %v983
        %v1018 = vadd.f32 %v823, %v985
        %v1019 = vadd.f32 %v827, %v989
        %v1020 = vadd.f32 %v829, %v991
        %v1021 = vadd.f32 %v833, %v995
        %v1022 = vadd.f32 %v835, %v997
        %v1023 = vadd.f32 %v839, %v1001
        %v1024 = vadd.f32 %v841, %v1003
        %v1025 = vadd.f32 %v845, %v1007
        %v1026 = vadd.f32 %v847, %v1009
        %s1027 = scalar_lea.vmem [#allocation5], 1152
        %v1028 = vld [vmem:[%s1027] sm:$0xff]
        %v1029 = vld [vmem:[%s1027 + $0x8] sm:$0xff]
        %v1030 = vld [vmem:[%s1027 + $0x10] sm:$0xff]
        %v1031 = vld [vmem:[%s1027 + $0x18] sm:$0xff]
        %v1032 = vld [vmem:[%s1027 + $0x20] sm:$0xff]
        %v1033 = vld [vmem:[%s1027 + $0x28] sm:$0xff]
        %v1034 = vld [vmem:[%s1027 + $0x30] sm:$0xff]
        %v1035 = vld [vmem:[%s1027 + $0x38] sm:$0xff]
        %v1036 = vld [vmem:[%s1027 + $0x40] sm:$0xff]
        %v1037 = vld [vmem:[%s1027 + $0x48] sm:$0xff]
        %v1038 = vld [vmem:[%s1027 + $0x50] sm:$0xff]
        %v1039 = vld [vmem:[%s1027 + $0x58] sm:$0xff]
        %v1040 = vld [vmem:[%s1027 + $0x60] sm:$0xff]
        %v1041 = vld [vmem:[%s1027 + $0x68] sm:$0xff]
        %v1042 = vld [vmem:[%s1027 + $0x70] sm:$0xff]
        %v1043 = vld [vmem:[%s1027 + $0x78] sm:$0xff]
        %vm1044 = vcmask 1044480
        %v1045 = vrot.slane %v525, 3
        %v1046 = vrot.slane %v526, 3
        %v1047 = vsel %vm1044, %v1045, %v1046
        %v1048 = vrot.slane %v527, 3
        %v1049 = vsel %vm1044, %v1046, %v1048
        %v1050 = vrot.slane %v528, 3
        %v1051 = vsel %vm1044, %v1048, %v1050
        %v1052 = vrot.slane %v529, 3
        %v1053 = vsel %vm1044, %v1050, %v1052
        %v1054 = vrot.slane %v530, 3
        %v1055 = vsel %vm1044, %v1052, %v1054
        %v1056 = vrot.slane %v531, 3
        %v1057 = vsel %vm1044, %v1054, %v1056
        %v1058 = vrot.slane %v532, 3
        %v1059 = vsel %vm1044, %v1056, %v1058
        %v1060 = vsel %vm590, %v1047, 0
        %v1062 = vsel %vm590, %v1049, 0
        %v1064 = vsel %vm590, %v1051, 0
        %v1066 = vsel %vm590, %v1053, 0
        %v1068 = vsel %vm590, %v1055, 0
        %v1070 = vsel %vm590, %v1057, 0
        %v1072 = vsel %vm590, %v1059, 0
        %v1074 = vsel %vm590, %v1058, 0
        %1076 = vmatprep.subr.mxu0 %v1029
        %1077 = vmatpush1.msra.mxu0 %v1028
        %1078 = vmatprep.subr.mxu0 %v1031
        %1079 = vmatpush1.msra.mxu0 %v1030
        %1080 = vmatprep.subr.mxu0 %v1033
        %1081 = vmatpush1.msra.mxu0 %v1032
        %1082 = vmatprep.subr.mxu0 %v1035
        %1083 = vmatpush1.msra.mxu0 %v1034
        %1084 = vmatprep.subr.mxu0 %v1037
        %1085 = vmatpush1.msra.mxu0 %v1036
        %1086 = vmatprep.subr.mxu0 %v1039
        %1087 = vmatpush1.msra.mxu0 %v1038
        %1088 = vmatprep.subr.mxu0 %v1041
        %1089 = vmatpush1.msra.mxu0 %v1040
        %1090 = vmatprep.subr.mxu0 %v1043
        %1091 = vmatpush1.msra.mxu0 %v1042
        %1092 = vmatprep.subr.mxu0 0.0
        %1093 = vmatpush1.msra.mxu0 0.0
        %1094 = vmatprep.subr.mxu0 0.0
        %1095 = vmatpush1.msra.mxu0 0.0
        %1096 = vmatprep.subr.mxu0 0.0
        %1097 = vmatpush1.msra.mxu0 0.0
        %1098 = vmatprep.subr.mxu0 0.0
        %1099 = vmatpush1.msra.mxu0 0.0
        %1100 = vmatprep.subr.mxu0 0.0
        %1101 = vmatpush1.msra.mxu0 0.0
        %1102 = vmatprep.subr.mxu0 0.0
        %1103 = vmatpush1.msra.mxu0 0.0
        %1104 = vmatprep.subr.mxu0 0.0
        %1105 = vmatpush1.msra.mxu0 0.0
        %1106 = vmatprep.subr.mxu0 0.0
        %1107 = vmatpush1.msra.mxu0 0.0
        %1108 = vmatprep.subr.mxu0 0.0
        %1109 = vmatpush1.msra.mxu0 0.0
        %1110 = vmatprep.subr.mxu0 0.0
        %1111 = vmatpush1.msra.mxu0 0.0
        %1112 = vmatprep.subr.mxu0 0.0
        %1113 = vmatpush1.msra.mxu0 0.0
        %1114 = vmatprep.subr.mxu0 0.0
        %1115 = vmatpush1.msra.mxu0 0.0
        %1116 = vmatprep.subr.mxu0 0.0
        %1117 = vmatpush1.msra.mxu0 0.0
        %1118 = vmatprep.subr.mxu0 0.0
        %1119 = vmatpush1.msra.mxu0 0.0
        %1120 = vmatprep.subr.mxu0 0.0
        %1121 = vmatpush1.msra.mxu0 0.0
        %1122 = vmatprep.subr.mxu0 0.0
        %1123 = vmatpush1.msra.mxu0 0.0
        %1124 = vmatprep.subr.mxu0 0.0
        %1125 = vmatpush1.msra.mxu0 0.0
        %1126 = vmatprep.subr.mxu0 0.0
        %1127 = vmatpush1.msra.mxu0 0.0
        %1128 = vmatprep.subr.mxu0 0.0
        %1129 = vmatpush1.msra.mxu0 0.0
        %1130 = vmatprep.subr.mxu0 0.0
        %1131 = vmatpush1.msra.mxu0 0.0
        %1132 = vmatprep.subr.mxu0 0.0
        %1133 = vmatpush1.msra.mxu0 0.0
        %1134 = vmatprep.subr.mxu0 0.0
        %1135 = vmatpush1.msra.mxu0 0.0
        %1136 = vmatprep.subr.mxu0 0.0
        %1137 = vmatpush1.msra.mxu0 0.0
        %1138 = vmatprep.subr.mxu0 0.0
        %1139 = vmatpush1.msra.mxu0 0.0
        %1140 = vmatprep.mubr.f32.mxu0 0.0
        %1141 = vmatmul.mubr.f32.gmra.mrb[0].mxu0 %v1060
        %v1142 = vpop.f32.mrb[0].mxu0
        %v1143 = vadd.f32 0.0, %v1142
        %v1144 = vpop.f32.mrb[0].mxu0
        %v1145 = vadd.f32 0.0, %v1144
        %1146 = vmatprep.mubr.f32.mxu0 0.0
        %1147 = vmatmul.mubr.f32.gmra.mrb[0].mxu0 %v1062
        %v1148 = vpop.f32.mrb[0].mxu0
        %v1149 = vadd.f32 0.0, %v1148
        %v1150 = vpop.f32.mrb[0].mxu0
        %v1151 = vadd.f32 0.0, %v1150
        %1152 = vmatprep.mubr.f32.mxu0 0.0
        %1153 = vmatmul.mubr.f32.gmra.mrb[0].mxu0 %v1064
        %v1154 = vpop.f32.mrb[0].mxu0
        %v1155 = vadd.f32 0.0, %v1154
        %v1156 = vpop.f32.mrb[0].mxu0
        %v1157 = vadd.f32 0.0, %v1156
        %1158 = vmatprep.mubr.f32.mxu0 0.0
        %1159 = vmatmul.mubr.f32.gmra.mrb[0].mxu0 %v1066
        %v1160 = vpop.f32.mrb[0].mxu0
        %v1161 = vadd.f32 0.0, %v1160
        %v1162 = vpop.f32.mrb[0].mxu0
        %v1163 = vadd.f32 0.0, %v1162
        %1164 = vmatprep.mubr.f32.mxu0 0.0
        %1165 = vmatmul.mubr.f32.gmra.mrb[0].mxu0 %v1068
        %v1166 = vpop.f32.mrb[0].mxu0
        %v1167 = vadd.f32 0.0, %v1166
        %v1168 = vpop.f32.mrb[0].mxu0
        %v1169 = vadd.f32 0.0, %v1168
        %1170 = vmatprep.mubr.f32.mxu0 0.0
        %1171 = vmatmul.mubr.f32.gmra.mrb[0].mxu0 %v1070
        %v1172 = vpop.f32.mrb[0].mxu0
        %v1173 = vadd.f32 0.0, %v1172
        %v1174 = vpop.f32.mrb[0].mxu0
        %v1175 = vadd.f32 0.0, %v1174
        %1176 = vmatprep.mubr.f32.mxu0 0.0
        %1177 = vmatmul.mubr.f32.gmra.mrb[0].mxu0 %v1072
        %v1178 = vpop.f32.mrb[0].mxu0
        %v1179 = vadd.f32 0.0, %v1178
        %v1180 = vpop.f32.mrb[0].mxu0
        %v1181 = vadd.f32 0.0, %v1180
        %1182 = vmatprep.mubr.f32.mxu0 0.0
        %1183 = vmatmul.mubr.f32.gmra.mrb[0].mxu0 %v1074
        %v1184 = vpop.f32.mrb[0].mxu0
        %v1185 = vadd.f32 0.0, %v1184
        %v1186 = vpop.f32.mrb[0].mxu0
        %v1187 = vadd.f32 0.0, %v1186
        %1188 = vdwg.mxu0
        %v1189 = vadd.f32 %v1011, %v1143
        %v1190 = vadd.f32 %v1012, %v1145
        %v1191 = vadd.f32 %v1013, %v1149
        %v1192 = vadd.f32 %v1014, %v1151
        %v1193 = vadd.f32 %v1015, %v1155
        %v1194 = vadd.f32 %v1016, %v1157
        %v1195 = vadd.f32 %v1017, %v1161
        %v1196 = vadd.f32 %v1018, %v1163
        %v1197 = vadd.f32 %v1019, %v1167
        %v1198 = vadd.f32 %v1020, %v1169
        %v1199 = vadd.f32 %v1021, %v1173
        %v1200 = vadd.f32 %v1022, %v1175
        %v1201 = vadd.f32 %v1023, %v1179
        %v1202 = vadd.f32 %v1024, %v1181
        %v1203 = vadd.f32 %v1025, %v1185
        %v1204 = vadd.f32 %v1026, %v1187
        %s1205 = scalar_lea.vmem [#allocation5], 1536
        %v1206 = vld [vmem:[%s1205] sm:$0xff]
        %v1207 = vld [vmem:[%s1205 + $0x8] sm:$0xff]
        %v1208 = vld [vmem:[%s1205 + $0x10] sm:$0xff]
        %v1209 = vld [vmem:[%s1205 + $0x18] sm:$0xff]
        %v1210 = vld [vmem:[%s1205 + $0x20] sm:$0xff]
        %v1211 = vld [vmem:[%s1205 + $0x28] sm:$0xff]
        %v1212 = vld [vmem:[%s1205 + $0x30] sm:$0xff]
        %v1213 = vld [vmem:[%s1205 + $0x38] sm:$0xff]
        %v1214 = vld [vmem:[%s1205 + $0x40] sm:$0xff]
        %v1215 = vld [vmem:[%s1205 + $0x48] sm:$0xff]
        %v1216 = vld [vmem:[%s1205 + $0x50] sm:$0xff]
        %v1217 = vld [vmem:[%s1205 + $0x58] sm:$0xff]
        %v1218 = vld [vmem:[%s1205 + $0x60] sm:$0xff]
        %v1219 = vld [vmem:[%s1205 + $0x68] sm:$0xff]
        %v1220 = vld [vmem:[%s1205 + $0x70] sm:$0xff]
        %v1221 = vld [vmem:[%s1205 + $0x78] sm:$0xff]
        %vm1222 = vcmask 1043456
        %v1223 = vrot.slane %v525, 4
        %v1224 = vrot.slane %v526, 4
        %v1225 = vsel %vm1222, %v1223, %v1224
        %v1226 = vrot.slane %v527, 4
        %v1227 = vsel %vm1222, %v1224, %v1226
        %v1228 = vrot.slane %v528, 4
        %v1229 = vsel %vm1222, %v1226, %v1228
        %v1230 = vrot.slane %v529, 4
        %v1231 = vsel %vm1222, %v1228, %v1230
        %v1232 = vrot.slane %v530, 4
        %v1233 = vsel %vm1222, %v1230, %v1232
        %v1234 = vrot.slane %v531, 4
        %v1235 = vsel %vm1222, %v1232, %v1234
        %v1236 = vrot.slane %v532, 4
        %v1237 = vsel %vm1222, %v1234, %v1236
        %v1238 = vsel %vm590, %v1225, 0
        %v1240 = vsel %vm590, %v1227, 0
        %v1242 = vsel %vm590, %v1229, 0
        %v1244 = vsel %vm590, %v1231, 0
        %v1246 = vsel %vm590, %v1233, 0
        %v1248 = vsel %vm590, %v1235, 0
        %v1250 = vsel %vm590, %v1237, 0
        %v1252 = vsel %vm590, %v1236, 0
        %1254 = vmatprep.subr.mxu0 %v1207
        %1255 = vmatpush1.msra.mxu0 %v1206
        %1256 = vmatprep.subr.mxu0 %v1209
        %1257 = vmatpush1.msra.mxu0 %v1208
        %1258 = vmatprep.subr.mxu0 %v1211
        %1259 = vmatpush1.msra.mxu0 %v1210
        %1260 = vmatprep.subr.mxu0 %v1213
        %1261 = vmatpush1.msra.mxu0 %v1212
        %1262 = vmatprep.subr.mxu0 %v1215
        %1263 = vmatpush1.msra.mxu0 %v1214
        %1264 = vmatprep.subr.mxu0 %v1217
        %1265 = vmatpush1.msra.mxu0 %v1216
        %1266 = vmatprep.subr.mxu0 %v1219
        %1267 = vmatpush1.msra.mxu0 %v1218
        %1268 = vmatprep.subr.mxu0 %v1221
        %1269 = vmatpush1.msra.mxu0 %v1220
        %1270 = vmatprep.subr.mxu0 0.0
        %1271 = vmatpush1.msra.mxu0 0.0
        %1272 = vmatprep.subr.mxu0 0.0
        %1273 = vmatpush1.msra.mxu0 0.0
        %1274 = vmatprep.subr.mxu0 0.0
        %1275 = vmatpush1.msra.mxu0 0.0
        %1276 = vmatprep.subr.mxu0 0.0
        %1277 = vmatpush1.msra.mxu0 0.0
        %1278 = vmatprep.subr.mxu0 0.0
        %1279 = vmatpush1.msra.mxu0 0.0
        %1280 = vmatprep.subr.mxu0 0.0
        %1281 = vmatpush1.msra.mxu0 0.0
        %1282 = vmatprep.subr.mxu0 0.0
        %1283 = vmatpush1.msra.mxu0 0.0
        %1284 = vmatprep.subr.mxu0 0.0
        %1285 = vmatpush1.msra.mxu0 0.0
        %1286 = vmatprep.subr.mxu0 0.0
        %1287 = vmatpush1.msra.mxu0 0.0
        %1288 = vmatprep.subr.mxu0 0.0
        %1289 = vmatpush1.msra.mxu0 0.0
        %1290 = vmatprep.subr.mxu0 0.0
        %1291 = vmatpush1.msra.mxu0 0.0
        %1292 = vmatprep.subr.mxu0 0.0
        %1293 = vmatpush1.msra.mxu0 0.0
        %1294 = vmatprep.subr.mxu0 0.0
        %1295 = vmatpush1.msra.mxu0 0.0
        %1296 = vmatprep.subr.mxu0 0.0
        %1297 = vmatpush1.msra.mxu0 0.0
        %1298 = vmatprep.subr.mxu0 0.0
        %1299 = vmatpush1.msra.mxu0 0.0
        %1300 = vmatprep.subr.mxu0 0.0
        %1301 = vmatpush1.msra.mxu0 0.0
        %1302 = vmatprep.subr.mxu0 0.0
        %1303 = vmatpush1.msra.mxu0 0.0
        %1304 = vmatprep.subr.mxu0 0.0
        %1305 = vmatpush1.msra.mxu0 0.0
        %1306 = vmatprep.subr.mxu0 0.0
        %1307 = vmatpush1.msra.mxu0 0.0
        %1308 = vmatprep.subr.mxu0 0.0
        %1309 = vmatpush1.msra.mxu0 0.0
        %1310 = vmatprep.subr.mxu0 0.0
        %1311 = vmatpush1.msra.mxu0 0.0
        %1312 = vmatprep.subr.mxu0 0.0
        %1313 = vmatpush1.msra.mxu0 0.0
        %1314 = vmatprep.subr.mxu0 0.0
        %1315 = vmatpush1.msra.mxu0 0.0
        %1316 = vmatprep.subr.mxu0 0.0
        %1317 = vmatpush1.msra.mxu0 0.0
        %1318 = vmatprep.mubr.f32.mxu0 0.0
        %1319 = vmatmul.mubr.f32.gmra.mrb[0].mxu0 %v1238
        %v1320 = vpop.f32.mrb[0].mxu0
        %v1321 = vadd.f32 0.0, %v1320
        %v1322 = vpop.f32.mrb[0].mxu0
        %v1323 = vadd.f32 0.0, %v1322
        %1324 = vmatprep.mubr.f32.mxu0 0.0
        %1325 = vmatmul.mubr.f32.gmra.mrb[0].mxu0 %v1240
        %v1326 = vpop.f32.mrb[0].mxu0
        %v1327 = vadd.f32 0.0, %v1326
        %v1328 = vpop.f32.mrb[0].mxu0
        %v1329 = vadd.f32 0.0, %v1328
        %1330 = vmatprep.mubr.f32.mxu0 0.0
        %1331 = vmatmul.mubr.f32.gmra.mrb[0].mxu0 %v1242
        %v1332 = vpop.f32.mrb[0].mxu0
        %v1333 = vadd.f32 0.0, %v1332
        %v1334 = vpop.f32.mrb[0].mxu0
        %v1335 = vadd.f32 0.0, %v1334
        %1336 = vmatprep.mubr.f32.mxu0 0.0
        %1337 = vmatmul.mubr.f32.gmra.mrb[0].mxu0 %v1244
        %v1338 = vpop.f32.mrb[0].mxu0
        %v1339 = vadd.f32 0.0, %v1338
        %v1340 = vpop.f32.mrb[0].mxu0
        %v1341 = vadd.f32 0.0, %v1340
        %1342 = vmatprep.mubr.f32.mxu0 0.0
        %1343 = vmatmul.mubr.f32.gmra.mrb[0].mxu0 %v1246
        %v1344 = vpop.f32.mrb[0].mxu0
        %v1345 = vadd.f32 0.0, %v1344
        %v1346 = vpop.f32.mrb[0].mxu0
        %v1347 = vadd.f32 0.0, %v1346
        %1348 = vmatprep.mubr.f32.mxu0 0.0
        %1349 = vmatmul.mubr.f32.gmra.mrb[0].mxu0 %v1248
        %v1350 = vpop.f32.mrb[0].mxu0
        %v1351 = vadd.f32 0.0, %v1350
        %v1352 = vpop.f32.mrb[0].mxu0
        %v1353 = vadd.f32 0.0, %v1352
        %1354 = vmatprep.mubr.f32.mxu0 0.0
        %1355 = vmatmul.mubr.f32.gmra.mrb[0].mxu0 %v1250
        %v1356 = vpop.f32.mrb[0].mxu0
        %v1357 = vadd.f32 0.0, %v1356
        %v1358 = vpop.f32.mrb[0].mxu0
        %v1359 = vadd.f32 0.0, %v1358
        %1360 = vmatprep.mubr.f32.mxu0 0.0
        %1361 = vmatmul.mubr.f32.gmra.mrb[0].mxu0 %v1252
        %v1362 = vpop.f32.mrb[0].mxu0
        %v1363 = vadd.f32 0.0, %v1362
        %v1364 = vpop.f32.mrb[0].mxu0
        %v1365 = vadd.f32 0.0, %v1364
        %1366 = vdwg.mxu0
        %v1367 = vadd.f32 %v1189, %v1321
        %v1368 = vadd.f32 %v1190, %v1323
        %v1369 = vadd.f32 %v1191, %v1327
        %v1370 = vadd.f32 %v1192, %v1329
        %v1371 = vadd.f32 %v1193, %v1333
        %v1372 = vadd.f32 %v1194, %v1335
        %v1373 = vadd.f32 %v1195, %v1339
        %v1374 = vadd.f32 %v1196, %v1341
        %v1375 = vadd.f32 %v1197, %v1345
        %v1376 = vadd.f32 %v1198, %v1347
        %v1377 = vadd.f32 %v1199, %v1351
        %v1378 = vadd.f32 %v1200, %v1353
        %v1379 = vadd.f32 %v1201, %v1357
        %v1380 = vadd.f32 %v1202, %v1359
        %v1381 = vadd.f32 %v1203, %v1363
        %v1382 = vadd.f32 %v1204, %v1365
        %s1383 = scalar_lea.vmem [#allocation5], 128
        %v1384 = vld [vmem:[%s1383] sm:$0xff]
        %v1385 = vld [vmem:[%s1383 + $0x8] sm:$0xff]
        %v1386 = vld [vmem:[%s1383 + $0x10] sm:$0xff]
        %v1387 = vld [vmem:[%s1383 + $0x18] sm:$0xff]
        %v1388 = vld [vmem:[%s1383 + $0x20] sm:$0xff]
        %v1389 = vld [vmem:[%s1383 + $0x28] sm:$0xff]
        %v1390 = vld [vmem:[%s1383 + $0x30] sm:$0xff]
        %v1391 = vld [vmem:[%s1383 + $0x38] sm:$0xff]
        %v1392 = vld [vmem:[%s1383 + $0x40] sm:$0xff]
        %v1393 = vld [vmem:[%s1383 + $0x48] sm:$0xff]
        %v1394 = vld [vmem:[%s1383 + $0x50] sm:$0xff]
        %v1395 = vld [vmem:[%s1383 + $0x58] sm:$0xff]
        %v1396 = vld [vmem:[%s1383 + $0x60] sm:$0xff]
        %v1397 = vld [vmem:[%s1383 + $0x68] sm:$0xff]
        %v1398 = vld [vmem:[%s1383 + $0x70] sm:$0xff]
        %v1399 = vld [vmem:[%s1383 + $0x78] sm:$0xff]
        %s1400 = scalar_lea.vmem [#allocation5], 512
        %v1401 = vld [vmem:[%s1400] sm:$0xff]
        %v1402 = vld [vmem:[%s1400 + $0x8] sm:$0xff]
        %v1403 = vld [vmem:[%s1400 + $0x10] sm:$0xff]
        %v1404 = vld [vmem:[%s1400 + $0x18] sm:$0xff]
        %v1405 = vld [vmem:[%s1400 + $0x20] sm:$0xff]
        %v1406 = vld [vmem:[%s1400 + $0x28] sm:$0xff]
        %v1407 = vld [vmem:[%s1400 + $0x30] sm:$0xff]
        %v1408 = vld [vmem:[%s1400 + $0x38] sm:$0xff]
        %v1409 = vld [vmem:[%s1400 + $0x40] sm:$0xff]
        %v1410 = vld [vmem:[%s1400 + $0x48] sm:$0xff]
        %v1411 = vld [vmem:[%s1400 + $0x50] sm:$0xff]
        %v1412 = vld [vmem:[%s1400 + $0x58] sm:$0xff]
        %v1413 = vld [vmem:[%s1400 + $0x60] sm:$0xff]
        %v1414 = vld [vmem:[%s1400 + $0x68] sm:$0xff]
        %v1415 = vld [vmem:[%s1400 + $0x70] sm:$0xff]
        %v1416 = vld [vmem:[%s1400 + $0x78] sm:$0xff]
        %1417 = vmatprep.subr.mxu0 %v1402
        %1418 = vmatpush1.msra.mxu0 %v1401
        %1419 = vmatprep.subr.mxu0 %v1404
        %1420 = vmatpush1.msra.mxu0 %v1403
        %1421 = vmatprep.subr.mxu0 %v1406
        %1422 = vmatpush1.msra.mxu0 %v1405
        %1423 = vmatprep.subr.mxu0 %v1408
        %1424 = vmatpush1.msra.mxu0 %v1407
        %1425 = vmatprep.subr.mxu0 %v1410
        %1426 = vmatpush1.msra.mxu0 %v1409
        %1427 = vmatprep.subr.mxu0 %v1412
        %1428 = vmatpush1.msra.mxu0 %v1411
        %1429 = vmatprep.subr.mxu0 %v1414
        %1430 = vmatpush1.msra.mxu0 %v1413
        %1431 = vmatprep.subr.mxu0 %v1416
        %1432 = vmatpush1.msra.mxu0 %v1415
        %1433 = vmatprep.subr.mxu0 0.0
        %1434 = vmatpush1.msra.mxu0 0.0
        %1435 = vmatprep.subr.mxu0 0.0
        %1436 = vmatpush1.msra.mxu0 0.0
        %1437 = vmatprep.subr.mxu0 0.0
        %1438 = vmatpush1.msra.mxu0 0.0
        %1439 = vmatprep.subr.mxu0 0.0
        %1440 = vmatpush1.msra.mxu0 0.0
        %1441 = vmatprep.subr.mxu0 0.0
        %1442 = vmatpush1.msra.mxu0 0.0
        %1443 = vmatprep.subr.mxu0 0.0
        %1444 = vmatpush1.msra.mxu0 0.0
        %1445 = vmatprep.subr.mxu0 0.0
        %1446 = vmatpush1.msra.mxu0 0.0
        %1447 = vmatprep.subr.mxu0 0.0
        %1448 = vmatpush1.msra.mxu0 0.0
        %1449 = vmatprep.subr.mxu0 0.0
        %1450 = vmatpush1.msra.mxu0 0.0
        %1451 = vmatprep.subr.mxu0 0.0
        %1452 = vmatpush1.msra.mxu0 0.0
        %1453 = vmatprep.subr.mxu0 0.0
        %1454 = vmatpush1.msra.mxu0 0.0
        %1455 = vmatprep.subr.mxu0 0.0
        %1456 = vmatpush1.msra.mxu0 0.0
        %1457 = vmatprep.subr.mxu0 0.0
        %1458 = vmatpush1.msra.mxu0 0.0
        %1459 = vmatprep.subr.mxu0 0.0
        %1460 = vmatpush1.msra.mxu0 0.0
        %1461 = vmatprep.subr.mxu0 0.0
        %1462 = vmatpush1.msra.mxu0 0.0
        %1463 = vmatprep.subr.mxu0 0.0
        %1464 = vmatpush1.msra.mxu0 0.0
        %1465 = vmatprep.subr.mxu0 0.0
        %1466 = vmatpush1.msra.mxu0 0.0
        %1467 = vmatprep.subr.mxu0 0.0
        %1468 = vmatpush1.msra.mxu0 0.0
        %1469 = vmatprep.subr.mxu0 0.0
        %1470 = vmatpush1.msra.mxu0 0.0
        %1471 = vmatprep.subr.mxu0 0.0
        %1472 = vmatpush1.msra.mxu0 0.0
        %1473 = vmatprep.subr.mxu0 0.0
        %1474 = vmatpush1.msra.mxu0 0.0
        %1475 = vmatprep.subr.mxu0 0.0
        %1476 = vmatpush1.msra.mxu0 0.0
        %1477 = vmatprep.subr.mxu0 0.0
        %1478 = vmatpush1.msra.mxu0 0.0
        %1479 = vmatprep.subr.mxu0 0.0
        %1480 = vmatpush1.msra.mxu0 0.0
        %1481 = vmatprep.mubr.f32.mxu0 0.0
        %1482 = vmatmul.mubr.f32.gmra.mrb[0].mxu0 %v591
        %v1483 = vpop.f32.mrb[0].mxu0
        %v1484 = vadd.f32 0.0, %v1483
        %v1485 = vpop.f32.mrb[0].mxu0
        %v1486 = vadd.f32 0.0, %v1485
        %1487 = vmatprep.mubr.f32.mxu0 0.0
        %1488 = vmatmul.mubr.f32.gmra.mrb[0].mxu0 %v593
        %v1489 = vpop.f32.mrb[0].mxu0
        %v1490 = vadd.f32 0.0, %v1489
        %v1491 = vpop.f32.mrb[0].mxu0
        %v1492 = vadd.f32 0.0, %v1491
        %1493 = vmatprep.mubr.f32.mxu0 0.0
        %1494 = vmatmul.mubr.f32.gmra.mrb[0].mxu0 %v595
        %v1495 = vpop.f32.mrb[0].mxu0
        %v1496 = vadd.f32 0.0, %v1495
        %v1497 = vpop.f32.mrb[0].mxu0
        %v1498 = vadd.f32 0.0, %v1497
        %1499 = vmatprep.mubr.f32.mxu0 0.0
        %1500 = vmatmul.mubr.f32.gmra.mrb[0].mxu0 %v597
        %v1501 = vpop.f32.mrb[0].mxu0
        %v1502 = vadd.f32 0.0, %v1501
        %v1503 = vpop.f32.mrb[0].mxu0
        %v1504 = vadd.f32 0.0, %v1503
        %1505 = vmatprep.mubr.f32.mxu0 0.0
        %1506 = vmatmul.mubr.f32.gmra.mrb[0].mxu0 %v599
        %v1507 = vpop.f32.mrb[0].mxu0
        %v1508 = vadd.f32 0.0, %v1507
        %v1509 = vpop.f32.mrb[0].mxu0
        %v1510 = vadd.f32 0.0, %v1509
        %1511 = vmatprep.mubr.f32.mxu0 0.0
        %1512 = vmatmul.mubr.f32.gmra.mrb[0].mxu0 %v601
        %v1513 = vpop.f32.mrb[0].mxu0
        %v1514 = vadd.f32 0.0, %v1513
        %v1515 = vpop.f32.mrb[0].mxu0
        %v1516 = vadd.f32 0.0, %v1515
        %1517 = vmatprep.mubr.f32.mxu0 0.0
        %1518 = vmatmul.mubr.f32.gmra.mrb[0].mxu0 %v603
        %v1519 = vpop.f32.mrb[0].mxu0
        %v1520 = vadd.f32 0.0, %v1519
        %v1521 = vpop.f32.mrb[0].mxu0
        %v1522 = vadd.f32 0.0, %v1521
        %1523 = vmatprep.mubr.f32.mxu0 0.0
        %1524 = vmatmul.mubr.f32.gmra.mrb[0].mxu0 %v605
        %v1525 = vpop.f32.mrb[0].mxu0
        %v1526 = vadd.f32 0.0, %v1525
        %v1527 = vpop.f32.mrb[0].mxu0
        %v1528 = vadd.f32 0.0, %v1527
        %1529 = vdwg.mxu0
        %1530 = vmatprep.subr.mxu0 %v1385
        %1531 = vmatpush1.msra.mxu0 %v1384
        %1532 = vmatprep.subr.mxu0 %v1387
        %1533 = vmatpush1.msra.mxu0 %v1386
        %1534 = vmatprep.subr.mxu0 %v1389
        %1535 = vmatpush1.msra.mxu0 %v1388
        %1536 = vmatprep.subr.mxu0 %v1391
        %1537 = vmatpush1.msra.mxu0 %v1390
        %1538 = vmatprep.subr.mxu0 %v1393
        %1539 = vmatpush1.msra.mxu0 %v1392
        %1540 = vmatprep.subr.mxu0 %v1395
        %1541 = vmatpush1.msra.mxu0 %v1394
        %1542 = vmatprep.subr.mxu0 %v1397
        %1543 = vmatpush1.msra.mxu0 %v1396
        %1544 = vmatprep.subr.mxu0 %v1399
        %1545 = vmatpush1.msra.mxu0 %v1398
        %1546 = vmatprep.subr.mxu0 0.0
        %1547 = vmatpush1.msra.mxu0 0.0
        %1548 = vmatprep.subr.mxu0 0.0
        %1549 = vmatpush1.msra.mxu0 0.0
        %1550 = vmatprep.subr.mxu0 0.0
        %1551 = vmatpush1.msra.mxu0 0.0
        %1552 = vmatprep.subr.mxu0 0.0
        %1553 = vmatpush1.msra.mxu0 0.0
        %1554 = vmatprep.subr.mxu0 0.0
        %1555 = vmatpush1.msra.mxu0 0.0
        %1556 = vmatprep.subr.mxu0 0.0
        %1557 = vmatpush1.msra.mxu0 0.0
        %1558 = vmatprep.subr.mxu0 0.0
        %1559 = vmatpush1.msra.mxu0 0.0
        %1560 = vmatprep.subr.mxu0 0.0
        %1561 = vmatpush1.msra.mxu0 0.0
        %1562 = vmatprep.subr.mxu0 0.0
        %1563 = vmatpush1.msra.mxu0 0.0
        %1564 = vmatprep.subr.mxu0 0.0
        %1565 = vmatpush1.msra.mxu0 0.0
        %1566 = vmatprep.subr.mxu0 0.0
        %1567 = vmatpush1.msra.mxu0 0.0
        %1568 = vmatprep.subr.mxu0 0.0
        %1569 = vmatpush1.msra.mxu0 0.0
        %1570 = vmatprep.subr.mxu0 0.0
        %1571 = vmatpush1.msra.mxu0 0.0
        %1572 = vmatprep.subr.mxu0 0.0
        %1573 = vmatpush1.msra.mxu0 0.0
        %1574 = vmatprep.subr.mxu0 0.0
        %1575 = vmatpush1.msra.mxu0 0.0
        %1576 = vmatprep.subr.mxu0 0.0
        %1577 = vmatpush1.msra.mxu0 0.0
        %1578 = vmatprep.subr.mxu0 0.0
        %1579 = vmatpush1.msra.mxu0 0.0
        %1580 = vmatprep.subr.mxu0 0.0
        %1581 = vmatpush1.msra.mxu0 0.0
        %1582 = vmatprep.subr.mxu0 0.0
        %1583 = vmatpush1.msra.mxu0 0.0
        %1584 = vmatprep.subr.mxu0 0.0
        %1585 = vmatpush1.msra.mxu0 0.0
        %1586 = vmatprep.subr.mxu0 0.0
        %1587 = vmatpush1.msra.mxu0 0.0
        %1588 = vmatprep.subr.mxu0 0.0
        %1589 = vmatpush1.msra.mxu0 0.0
        %1590 = vmatprep.subr.mxu0 0.0
        %1591 = vmatpush1.msra.mxu0 0.0
        %1592 = vmatprep.subr.mxu0 0.0
        %1593 = vmatpush1.msra.mxu0 0.0
        %1594 = vmatprep.mubr.f32.mxu0 0.0
        %1595 = vmatmul.mubr.f32.gmra.mrb[0].mxu0 %v720
        %v1596 = vpop.f32.mrb[0].mxu0
        %v1597 = vadd.f32 %v1484, %v1596
        %v1598 = vpop.f32.mrb[0].mxu0
        %v1599 = vadd.f32 %v1486, %v1598
        %1600 = vmatprep.mubr.f32.mxu0 0.0
        %1601 = vmatmul.mubr.f32.gmra.mrb[0].mxu0 %v722
        %v1602 = vpop.f32.mrb[0].mxu0
        %v1603 = vadd.f32 %v1490, %v1602
        %v1604 = vpop.f32.mrb[0].mxu0
        %v1605 = vadd.f32 %v1492, %v1604
        %1606 = vmatprep.mubr.f32.mxu0 0.0
        %1607 = vmatmul.mubr.f32.gmra.mrb[0].mxu0 %v724
        %v1608 = vpop.f32.mrb[0].mxu0
        %v1609 = vadd.f32 %v1496, %v1608
        %v1610 = vpop.f32.mrb[0].mxu0
        %v1611 = vadd.f32 %v1498, %v1610
        %1612 = vmatprep.mubr.f32.mxu0 0.0
        %1613 = vmatmul.mubr.f32.gmra.mrb[0].mxu0 %v726
        %v1614 = vpop.f32.mrb[0].mxu0
        %v1615 = vadd.f32 %v1502, %v1614
        %v1616 = vpop.f32.mrb[0].mxu0
        %v1617 = vadd.f32 %v1504, %v1616
        %1618 = vmatprep.mubr.f32.mxu0 0.0
        %1619 = vmatmul.mubr.f32.gmra.mrb[0].mxu0 %v728
        %v1620 = vpop.f32.mrb[0].mxu0
        %v1621 = vadd.f32 %v1508, %v1620
        %v1622 = vpop.f32.mrb[0].mxu0
        %v1623 = vadd.f32 %v1510, %v1622
        %1624 = vmatprep.mubr.f32.mxu0 0.0
        %1625 = vmatmul.mubr.f32.gmra.mrb[0].mxu0 %v730
        %v1626 = vpop.f32.mrb[0].mxu0
        %v1627 = vadd.f32 %v1514, %v1626
        %v1628 = vpop.f32.mrb[0].mxu0
        %v1629 = vadd.f32 %v1516, %v1628
        %1630 = vmatprep.mubr.f32.mxu0 0.0
        %1631 = vmatmul.mubr.f32.gmra.mrb[0].mxu0 %v732
        %v1632 = vpop.f32.mrb[0].mxu0
        %v1633 = vadd.f32 %v1520, %v1632
        %v1634 = vpop.f32.mrb[0].mxu0
        %v1635 = vadd.f32 %v1522, %v1634
        %1636 = vmatprep.mubr.f32.mxu0 0.0
        %1637 = vmatmul.mubr.f32.gmra.mrb[0].mxu0 %v734
        %v1638 = vpop.f32.mrb[0].mxu0
        %v1639 = vadd.f32 %v1526, %v1638
        %v1640 = vpop.f32.mrb[0].mxu0
        %v1641 = vadd.f32 %v1528, %v1640
        %1642 = vdwg.mxu0
        %s1643 = scalar_lea.vmem [#allocation5], 896
        %v1644 = vld [vmem:[%s1643] sm:$0xff]
        %v1645 = vld [vmem:[%s1643 + $0x8] sm:$0xff]
        %v1646 = vld [vmem:[%s1643 + $0x10] sm:$0xff]
        %v1647 = vld [vmem:[%s1643 + $0x18] sm:$0xff]
        %v1648 = vld [vmem:[%s1643 + $0x20] sm:$0xff]
        %v1649 = vld [vmem:[%s1643 + $0x28] sm:$0xff]
        %v1650 = vld [vmem:[%s1643 + $0x30] sm:$0xff]
        %v1651 = vld [vmem:[%s1643 + $0x38] sm:$0xff]
        %v1652 = vld [vmem:[%s1643 + $0x40] sm:$0xff]
        %v1653 = vld [vmem:[%s1643 + $0x48] sm:$0xff]
        %v1654 = vld [vmem:[%s1643 + $0x50] sm:$0xff]
        %v1655 = vld [vmem:[%s1643 + $0x58] sm:$0xff]
        %v1656 = vld [vmem:[%s1643 + $0x60] sm:$0xff]
        %v1657 = vld [vmem:[%s1643 + $0x68] sm:$0xff]
        %v1658 = vld [vmem:[%s1643 + $0x70] sm:$0xff]
        %v1659 = vld [vmem:[%s1643 + $0x78] sm:$0xff]
        %1660 = vmatprep.subr.mxu0 %v1645
        %1661 = vmatpush1.msra.mxu0 %v1644
        %1662 = vmatprep.subr.mxu0 %v1647
        %1663 = vmatpush1.msra.mxu0 %v1646
        %1664 = vmatprep.subr.mxu0 %v1649
        %1665 = vmatpush1.msra.mxu0 %v1648
        %1666 = vmatprep.subr.mxu0 %v1651
        %1667 = vmatpush1.msra.mxu0 %v1650
        %1668 = vmatprep.subr.mxu0 %v1653
        %1669 = vmatpush1.msra.mxu0 %v1652
        %1670 = vmatprep.subr.mxu0 %v1655
        %1671 = vmatpush1.msra.mxu0 %v1654
        %1672 = vmatprep.subr.mxu0 %v1657
        %1673 = vmatpush1.msra.mxu0 %v1656
        %1674 = vmatprep.subr.mxu0 %v1659
        %1675 = vmatpush1.msra.mxu0 %v1658
        %1676 = vmatprep.subr.mxu0 0.0
        %1677 = vmatpush1.msra.mxu0 0.0
        %1678 = vmatprep.subr.mxu0 0.0
        %1679 = vmatpush1.msra.mxu0 0.0
        %1680 = vmatprep.subr.mxu0 0.0
        %1681 = vmatpush1.msra.mxu0 0.0
        %1682 = vmatprep.subr.mxu0 0.0
        %1683 = vmatpush1.msra.mxu0 0.0
        %1684 = vmatprep.subr.mxu0 0.0
        %1685 = vmatpush1.msra.mxu0 0.0
        %1686 = vmatprep.subr.mxu0 0.0
        %1687 = vmatpush1.msra.mxu0 0.0
        %1688 = vmatprep.subr.mxu0 0.0
        %1689 = vmatpush1.msra.mxu0 0.0
        %1690 = vmatprep.subr.mxu0 0.0
        %1691 = vmatpush1.msra.mxu0 0.0
        %1692 = vmatprep.subr.mxu0 0.0
        %1693 = vmatpush1.msra.mxu0 0.0
        %1694 = vmatprep.subr.mxu0 0.0
        %1695 = vmatpush1.msra.mxu0 0.0
        %1696 = vmatprep.subr.mxu0 0.0
        %1697 = vmatpush1.msra.mxu0 0.0
        %1698 = vmatprep.subr.mxu0 0.0
        %1699 = vmatpush1.msra.mxu0 0.0
        %1700 = vmatprep.subr.mxu0 0.0
        %1701 = vmatpush1.msra.mxu0 0.0
        %1702 = vmatprep.subr.mxu0 0.0
        %1703 = vmatpush1.msra.mxu0 0.0
        %1704 = vmatprep.subr.mxu0 0.0
        %1705 = vmatpush1.msra.mxu0 0.0
        %1706 = vmatprep.subr.mxu0 0.0
        %1707 = vmatpush1.msra.mxu0 0.0
        %1708 = vmatprep.subr.mxu0 0.0
        %1709 = vmatpush1.msra.mxu0 0.0
        %1710 = vmatprep.subr.mxu0 0.0
        %1711 = vmatpush1.msra.mxu0 0.0
        %1712 = vmatprep.subr.mxu0 0.0
        %1713 = vmatpush1.msra.mxu0 0.0
        %1714 = vmatprep.subr.mxu0 0.0
        %1715 = vmatpush1.msra.mxu0 0.0
        %1716 = vmatprep.subr.mxu0 0.0
        %1717 = vmatpush1.msra.mxu0 0.0
        %1718 = vmatprep.subr.mxu0 0.0
        %1719 = vmatpush1.msra.mxu0 0.0
        %1720 = vmatprep.subr.mxu0 0.0
        %1721 = vmatpush1.msra.mxu0 0.0
        %1722 = vmatprep.subr.mxu0 0.0
        %1723 = vmatpush1.msra.mxu0 0.0
        %1724 = vmatprep.mubr.f32.mxu0 0.0
        %1725 = vmatmul.mubr.f32.gmra.mrb[0].mxu0 %v882
        %v1726 = vpop.f32.mrb[0].mxu0
        %v1727 = vadd.f32 0.0, %v1726
        %v1728 = vpop.f32.mrb[0].mxu0
        %v1729 = vadd.f32 0.0, %v1728
        %1730 = vmatprep.mubr.f32.mxu0 0.0
        %1731 = vmatmul.mubr.f32.gmra.mrb[0].mxu0 %v884
        %v1732 = vpop.f32.mrb[0].mxu0
        %v1733 = vadd.f32 0.0, %v1732
        %v1734 = vpop.f32.mrb[0].mxu0
        %v1735 = vadd.f32 0.0, %v1734
        %1736 = vmatprep.mubr.f32.mxu0 0.0
        %1737 = vmatmul.mubr.f32.gmra.mrb[0].mxu0 %v886
        %v1738 = vpop.f32.mrb[0].mxu0
        %v1739 = vadd.f32 0.0, %v1738
        %v1740 = vpop.f32.mrb[0].mxu0
        %v1741 = vadd.f32 0.0, %v1740
        %1742 = vmatprep.mubr.f32.mxu0 0.0
        %1743 = vmatmul.mubr.f32.gmra.mrb[0].mxu0 %v888
        %v1744 = vpop.f32.mrb[0].mxu0
        %v1745 = vadd.f32 0.0, %v1744
        %v1746 = vpop.f32.mrb[0].mxu0
        %v1747 = vadd.f32 0.0, %v1746
        %1748 = vmatprep.mubr.f32.mxu0 0.0
        %1749 = vmatmul.mubr.f32.gmra.mrb[0].mxu0 %v890
        %v1750 = vpop.f32.mrb[0].mxu0
        %v1751 = vadd.f32 0.0, %v1750
        %v1752 = vpop.f32.mrb[0].mxu0
        %v1753 = vadd.f32 0.0, %v1752
        %1754 = vmatprep.mubr.f32.mxu0 0.0
        %1755 = vmatmul.mubr.f32.gmra.mrb[0].mxu0 %v892
        %v1756 = vpop.f32.mrb[0].mxu0
        %v1757 = vadd.f32 0.0, %v1756
        %v1758 = vpop.f32.mrb[0].mxu0
        %v1759 = vadd.f32 0.0, %v1758
        %1760 = vmatprep.mubr.f32.mxu0 0.0
        %1761 = vmatmul.mubr.f32.gmra.mrb[0].mxu0 %v894
        %v1762 = vpop.f32.mrb[0].mxu0
        %v1763 = vadd.f32 0.0, %v1762
        %v1764 = vpop.f32.mrb[0].mxu0
        %v1765 = vadd.f32 0.0, %v1764
        %1766 = vmatprep.mubr.f32.mxu0 0.0
        %1767 = vmatmul.mubr.f32.gmra.mrb[0].mxu0 %v896
        %v1768 = vpop.f32.mrb[0].mxu0
        %v1769 = vadd.f32 0.0, %v1768
        %v1770 = vpop.f32.mrb[0].mxu0
        %v1771 = vadd.f32 0.0, %v1770
        %1772 = vdwg.mxu0
        %v1773 = vadd.f32 %v1597, %v1727
        %v1774 = vadd.f32 %v1599, %v1729
        %v1775 = vadd.f32 %v1603, %v1733
        %v1776 = vadd.f32 %v1605, %v1735
        %v1777 = vadd.f32 %v1609, %v1739
        %v1778 = vadd.f32 %v1611, %v1741
        %v1779 = vadd.f32 %v1615, %v1745
        %v1780 = vadd.f32 %v1617, %v1747
        %v1781 = vadd.f32 %v1621, %v1751
        %v1782 = vadd.f32 %v1623, %v1753
        %v1783 = vadd.f32 %v1627, %v1757
        %v1784 = vadd.f32 %v1629, %v1759
        %v1785 = vadd.f32 %v1633, %v1763
        %v1786 = vadd.f32 %v1635, %v1765
        %v1787 = vadd.f32 %v1639, %v1769
        %v1788 = vadd.f32 %v1641, %v1771
        %s1789 = scalar_lea.vmem [#allocation5], 1280
        %v1790 = vld [vmem:[%s1789] sm:$0xff]
        %v1791 = vld [vmem:[%s1789 + $0x8] sm:$0xff]
        %v1792 = vld [vmem:[%s1789 + $0x10] sm:$0xff]
        %v1793 = vld [vmem:[%s1789 + $0x18] sm:$0xff]
        %v1794 = vld [vmem:[%s1789 + $0x20] sm:$0xff]
        %v1795 = vld [vmem:[%s1789 + $0x28] sm:$0xff]
        %v1796 = vld [vmem:[%s1789 + $0x30] sm:$0xff]
        %v1797 = vld [vmem:[%s1789 + $0x38] sm:$0xff]
        %v1798 = vld [vmem:[%s1789 + $0x40] sm:$0xff]
        %v1799 = vld [vmem:[%s1789 + $0x48] sm:$0xff]
        %v1800 = vld [vmem:[%s1789 + $0x50] sm:$0xff]
        %v1801 = vld [vmem:[%s1789 + $0x58] sm:$0xff]
        %v1802 = vld [vmem:[%s1789 + $0x60] sm:$0xff]
        %v1803 = vld [vmem:[%s1789 + $0x68] sm:$0xff]
        %v1804 = vld [vmem:[%s1789 + $0x70] sm:$0xff]
        %v1805 = vld [vmem:[%s1789 + $0x78] sm:$0xff]
        %1806 = vmatprep.subr.mxu0 %v1791
        %1807 = vmatpush1.msra.mxu0 %v1790
        %1808 = vmatprep.subr.mxu0 %v1793
        %1809 = vmatpush1.msra.mxu0 %v1792
        %1810 = vmatprep.subr.mxu0 %v1795
        %1811 = vmatpush1.msra.mxu0 %v1794
        %1812 = vmatprep.subr.mxu0 %v1797
        %1813 = vmatpush1.msra.mxu0 %v1796
        %1814 = vmatprep.subr.mxu0 %v1799
        %1815 = vmatpush1.msra.mxu0 %v1798
        %1816 = vmatprep.subr.mxu0 %v1801
        %1817 = vmatpush1.msra.mxu0 %v1800
        %1818 = vmatprep.subr.mxu0 %v1803
        %1819 = vmatpush1.msra.mxu0 %v1802
        %1820 = vmatprep.subr.mxu0 %v1805
        %1821 = vmatpush1.msra.mxu0 %v1804
        %1822 = vmatprep.subr.mxu0 0.0
        %1823 = vmatpush1.msra.mxu0 0.0
        %1824 = vmatprep.subr.mxu0 0.0
        %1825 = vmatpush1.msra.mxu0 0.0
        %1826 = vmatprep.subr.mxu0 0.0
        %1827 = vmatpush1.msra.mxu0 0.0
        %1828 = vmatprep.subr.mxu0 0.0
        %1829 = vmatpush1.msra.mxu0 0.0
        %1830 = vmatprep.subr.mxu0 0.0
        %1831 = vmatpush1.msra.mxu0 0.0
        %1832 = vmatprep.subr.mxu0 0.0
        %1833 = vmatpush1.msra.mxu0 0.0
        %1834 = vmatprep.subr.mxu0 0.0
        %1835 = vmatpush1.msra.mxu0 0.0
        %1836 = vmatprep.subr.mxu0 0.0
        %1837 = vmatpush1.msra.mxu0 0.0
        %1838 = vmatprep.subr.mxu0 0.0
        %1839 = vmatpush1.msra.mxu0 0.0
        %1840 = vmatprep.subr.mxu0 0.0
        %1841 = vmatpush1.msra.mxu0 0.0
        %1842 = vmatprep.subr.mxu0 0.0
        %1843 = vmatpush1.msra.mxu0 0.0
        %1844 = vmatprep.subr.mxu0 0.0
        %1845 = vmatpush1.msra.mxu0 0.0
        %1846 = vmatprep.subr.mxu0 0.0
        %1847 = vmatpush1.msra.mxu0 0.0
        %1848 = vmatprep.subr.mxu0 0.0
        %1849 = vmatpush1.msra.mxu0 0.0
        %1850 = vmatprep.subr.mxu0 0.0
        %1851 = vmatpush1.msra.mxu0 0.0
        %1852 = vmatprep.subr.mxu0 0.0
        %1853 = vmatpush1.msra.mxu0 0.0
        %1854 = vmatprep.subr.mxu0 0.0
        %1855 = vmatpush1.msra.mxu0 0.0
        %1856 = vmatprep.subr.mxu0 0.0
        %1857 = vmatpush1.msra.mxu0 0.0
        %1858 = vmatprep.subr.mxu0 0.0
        %1859 = vmatpush1.msra.mxu0 0.0
        %1860 = vmatprep.subr.mxu0 0.0
        %1861 = vmatpush1.msra.mxu0 0.0
        %1862 = vmatprep.subr.mxu0 0.0
        %1863 = vmatpush1.msra.mxu0 0.0
        %1864 = vmatprep.subr.mxu0 0.0
        %1865 = vmatpush1.msra.mxu0 0.0
        %1866 = vmatprep.subr.mxu0 0.0
        %1867 = vmatpush1.msra.mxu0 0.0
        %1868 = vmatprep.subr.mxu0 0.0
        %1869 = vmatpush1.msra.mxu0 0.0
        %1870 = vmatprep.mubr.f32.mxu0 0.0
        %1871 = vmatmul.mubr.f32.gmra.mrb[0].mxu0 %v1060
        %v1872 = vpop.f32.mrb[0].mxu0
        %v1873 = vadd.f32 0.0, %v1872
        %v1874 = vpop.f32.mrb[0].mxu0
        %v1875 = vadd.f32 0.0, %v1874
        %1876 = vmatprep.mubr.f32.mxu0 0.0
        %1877 = vmatmul.mubr.f32.gmra.mrb[0].mxu0 %v1062
        %v1878 = vpop.f32.mrb[0].mxu0
        %v1879 = vadd.f32 0.0, %v1878
        %v1880 = vpop.f32.mrb[0].mxu0
        %v1881 = vadd.f32 0.0, %v1880
        %1882 = vmatprep.mubr.f32.mxu0 0.0
        %1883 = vmatmul.mubr.f32.gmra.mrb[0].mxu0 %v1064
        %v1884 = vpop.f32.mrb[0].mxu0
        %v1885 = vadd.f32 0.0, %v1884
        %v1886 = vpop.f32.mrb[0].mxu0
        %v1887 = vadd.f32 0.0, %v1886
        %1888 = vmatprep.mubr.f32.mxu0 0.0
        %1889 = vmatmul.mubr.f32.gmra.mrb[0].mxu0 %v1066
        %v1890 = vpop.f32.mrb[0].mxu0
        %v1891 = vadd.f32 0.0, %v1890
        %v1892 = vpop.f32.mrb[0].mxu0
        %v1893 = vadd.f32 0.0, %v1892
        %1894 = vmatprep.mubr.f32.mxu0 0.0
        %1895 = vmatmul.mubr.f32.gmra.mrb[0].mxu0 %v1068
        %v1896 = vpop.f32.mrb[0].mxu0
        %v1897 = vadd.f32 0.0, %v1896
        %v1898 = vpop.f32.mrb[0].mxu0
        %v1899 = vadd.f32 0.0, %v1898
        %1900 = vmatprep.mubr.f32.mxu0 0.0
        %1901 = vmatmul.mubr.f32.gmra.mrb[0].mxu0 %v1070
        %v1902 = vpop.f32.mrb[0].mxu0
        %v1903 = vadd.f32 0.0, %v1902
        %v1904 = vpop.f32.mrb[0].mxu0
        %v1905 = vadd.f32 0.0, %v1904
        %1906 = vmatprep.mubr.f32.mxu0 0.0
        %1907 = vmatmul.mubr.f32.gmra.mrb[0].mxu0 %v1072
        %v1908 = vpop.f32.mrb[0].mxu0
        %v1909 = vadd.f32 0.0, %v1908
        %v1910 = vpop.f32.mrb[0].mxu0
        %v1911 = vadd.f32 0.0, %v1910
        %1912 = vmatprep.mubr.f32.mxu0 0.0
        %1913 = vmatmul.mubr.f32.gmra.mrb[0].mxu0 %v1074
        %v1914 = vpop.f32.mrb[0].mxu0
        %v1915 = vadd.f32 0.0, %v1914
        %v1916 = vpop.f32.mrb[0].mxu0
        %v1917 = vadd.f32 0.0, %v1916
        %1918 = vdwg.mxu0
        %v1919 = vadd.f32 %v1773, %v1873
        %v1920 = vadd.f32 %v1774, %v1875
        %v1921 = vadd.f32 %v1775, %v1879
        %v1922 = vadd.f32 %v1776, %v1881
        %v1923 = vadd.f32 %v1777, %v1885
        %v1924 = vadd.f32 %v1778, %v1887
        %v1925 = vadd.f32 %v1779, %v1891
        %v1926 = vadd.f32 %v1780, %v1893
        %v1927 = vadd.f32 %v1781, %v1897
        %v1928 = vadd.f32 %v1782, %v1899
        %v1929 = vadd.f32 %v1783, %v1903
        %v1930 = vadd.f32 %v1784, %v1905
        %v1931 = vadd.f32 %v1785, %v1909
        %v1932 = vadd.f32 %v1786, %v1911
        %v1933 = vadd.f32 %v1787, %v1915
        %v1934 = vadd.f32 %v1788, %v1917
        %s1935 = scalar_lea.vmem [#allocation5], 1664
        %v1936 = vld [vmem:[%s1935] sm:$0xff]
        %v1937 = vld [vmem:[%s1935 + $0x8] sm:$0xff]
        %v1938 = vld [vmem:[%s1935 + $0x10] sm:$0xff]
        %v1939 = vld [vmem:[%s1935 + $0x18] sm:$0xff]
        %v1940 = vld [vmem:[%s1935 + $0x20] sm:$0xff]
        %v1941 = vld [vmem:[%s1935 + $0x28] sm:$0xff]
        %v1942 = vld [vmem:[%s1935 + $0x30] sm:$0xff]
        %v1943 = vld [vmem:[%s1935 + $0x38] sm:$0xff]
        %v1944 = vld [vmem:[%s1935 + $0x40] sm:$0xff]
        %v1945 = vld [vmem:[%s1935 + $0x48] sm:$0xff]
        %v1946 = vld [vmem:[%s1935 + $0x50] sm:$0xff]
        %v1947 = vld [vmem:[%s1935 + $0x58] sm:$0xff]
        %v1948 = vld [vmem:[%s1935 + $0x60] sm:$0xff]
        %v1949 = vld [vmem:[%s1935 + $0x68] sm:$0xff]
        %v1950 = vld [vmem:[%s1935 + $0x70] sm:$0xff]
        %v1951 = vld [vmem:[%s1935 + $0x78] sm:$0xff]
        %1952 = vmatprep.subr.mxu0 %v1937
        %1953 = vmatpush1.msra.mxu0 %v1936
        %1954 = vmatprep.subr.mxu0 %v1939
        %1955 = vmatpush1.msra.mxu0 %v1938
        %1956 = vmatprep.subr.mxu0 %v1941
        %1957 = vmatpush1.msra.mxu0 %v1940
        %1958 = vmatprep.subr.mxu0 %v1943
        %1959 = vmatpush1.msra.mxu0 %v1942
        %1960 = vmatprep.subr.mxu0 %v1945
        %1961 = vmatpush1.msra.mxu0 %v1944
        %1962 = vmatprep.subr.mxu0 %v1947
        %1963 = vmatpush1.msra.mxu0 %v1946
        %1964 = vmatprep.subr.mxu0 %v1949
        %1965 = vmatpush1.msra.mxu0 %v1948
        %1966 = vmatprep.subr.mxu0 %v1951
        %1967 = vmatpush1.msra.mxu0 %v1950
        %1968 = vmatprep.subr.mxu0 0.0
        %1969 = vmatpush1.msra.mxu0 0.0
        %1970 = vmatprep.subr.mxu0 0.0
        %1971 = vmatpush1.msra.mxu0 0.0
        %1972 = vmatprep.subr.mxu0 0.0
        %1973 = vmatpush1.msra.mxu0 0.0
        %1974 = vmatprep.subr.mxu0 0.0
        %1975 = vmatpush1.msra.mxu0 0.0
        %1976 = vmatprep.subr.mxu0 0.0
        %1977 = vmatpush1.msra.mxu0 0.0
        %1978 = vmatprep.subr.mxu0 0.0
        %1979 = vmatpush1.msra.mxu0 0.0
        %1980 = vmatprep.subr.mxu0 0.0
        %1981 = vmatpush1.msra.mxu0 0.0
        %1982 = vmatprep.subr.mxu0 0.0
        %1983 = vmatpush1.msra.mxu0 0.0
        %1984 = vmatprep.subr.mxu0 0.0
        %1985 = vmatpush1.msra.mxu0 0.0
        %1986 = vmatprep.subr.mxu0 0.0
        %1987 = vmatpush1.msra.mxu0 0.0
        %1988 = vmatprep.subr.mxu0 0.0
        %1989 = vmatpush1.msra.mxu0 0.0
        %1990 = vmatprep.subr.mxu0 0.0
        %1991 = vmatpush1.msra.mxu0 0.0
        %1992 = vmatprep.subr.mxu0 0.0
        %1993 = vmatpush1.msra.mxu0 0.0
        %1994 = vmatprep.subr.mxu0 0.0
        %1995 = vmatpush1.msra.mxu0 0.0
        %1996 = vmatprep.subr.mxu0 0.0
        %1997 = vmatpush1.msra.mxu0 0.0
        %1998 = vmatprep.subr.mxu0 0.0
        %1999 = vmatpush1.msra.mxu0 0.0
        %2000 = vmatprep.subr.mxu0 0.0
        %2001 = vmatpush1.msra.mxu0 0.0
        %2002 = vmatprep.subr.mxu0 0.0
        %2003 = vmatpush1.msra.mxu0 0.0
        %2004 = vmatprep.subr.mxu0 0.0
        %2005 = vmatpush1.msra.mxu0 0.0
        %2006 = vmatprep.subr.mxu0 0.0
        %2007 = vmatpush1.msra.mxu0 0.0
        %2008 = vmatprep.subr.mxu0 0.0
        %2009 = vmatpush1.msra.mxu0 0.0
        %2010 = vmatprep.subr.mxu0 0.0
        %2011 = vmatpush1.msra.mxu0 0.0
        %2012 = vmatprep.subr.mxu0 0.0
        %2013 = vmatpush1.msra.mxu0 0.0
        %2014 = vmatprep.subr.mxu0 0.0
        %2015 = vmatpush1.msra.mxu0 0.0
        %2016 = vmatprep.mubr.f32.mxu0 0.0
        %2017 = vmatmul.mubr.f32.gmra.mrb[0].mxu0 %v1238
        %v2018 = vpop.f32.mrb[0].mxu0
        %v2019 = vadd.f32 0.0, %v2018
        %v2020 = vpop.f32.mrb[0].mxu0
        %v2021 = vadd.f32 0.0, %v2020
        %2022 = vmatprep.mubr.f32.mxu0 0.0
        %2023 = vmatmul.mubr.f32.gmra.mrb[0].mxu0 %v1240
        %v2024 = vpop.f32.mrb[0].mxu0
        %v2025 = vadd.f32 0.0, %v2024
        %v2026 = vpop.f32.mrb[0].mxu0
        %v2027 = vadd.f32 0.0, %v2026
        %2028 = vmatprep.mubr.f32.mxu0 0.0
        %2029 = vmatmul.mubr.f32.gmra.mrb[0].mxu0 %v1242
        %v2030 = vpop.f32.mrb[0].mxu0
        %v2031 = vadd.f32 0.0, %v2030
        %v2032 = vpop.f32.mrb[0].mxu0
        %v2033 = vadd.f32 0.0, %v2032
        %2034 = vmatprep.mubr.f32.mxu0 0.0
        %2035 = vmatmul.mubr.f32.gmra.mrb[0].mxu0 %v1244
        %v2036 = vpop.f32.mrb[0].mxu0
        %v2037 = vadd.f32 0.0, %v2036
        %v2038 = vpop.f32.mrb[0].mxu0
        %v2039 = vadd.f32 0.0, %v2038
        %2040 = vmatprep.mubr.f32.mxu0 0.0
        %2041 = vmatmul.mubr.f32.gmra.mrb[0].mxu0 %v1246
        %v2042 = vpop.f32.mrb[0].mxu0
        %v2043 = vadd.f32 0.0, %v2042
        %v2044 = vpop.f32.mrb[0].mxu0
        %v2045 = vadd.f32 0.0, %v2044
        %2046 = vmatprep.mubr.f32.mxu0 0.0
        %2047 = vmatmul.mubr.f32.gmra.mrb[0].mxu0 %v1248
        %v2048 = vpop.f32.mrb[0].mxu0
        %v2049 = vadd.f32 0.0, %v2048
        %v2050 = vpop.f32.mrb[0].mxu0
        %v2051 = vadd.f32 0.0, %v2050
        %2052 = vmatprep.mubr.f32.mxu0 0.0
        %2053 = vmatmul.mubr.f32.gmra.mrb[0].mxu0 %v1250
        %v2054 = vpop.f32.mrb[0].mxu0
        %v2055 = vadd.f32 0.0, %v2054
        %v2056 = vpop.f32.mrb[0].mxu0
        %v2057 = vadd.f32 0.0, %v2056
        %2058 = vmatprep.mubr.f32.mxu0 0.0
        %2059 = vmatmul.mubr.f32.gmra.mrb[0].mxu0 %v1252
        %v2060 = vpop.f32.mrb[0].mxu0
        %v2061 = vadd.f32 0.0, %v2060
        %v2062 = vpop.f32.mrb[0].mxu0
        %v2063 = vadd.f32 0.0, %v2062
        %2064 = vdwg.mxu0
        %v2065 = vadd.f32 %v1919, %v2019
        %v2066 = vadd.f32 %v1920, %v2021
        %v2067 = vadd.f32 %v1921, %v2025
        %v2068 = vadd.f32 %v1922, %v2027
        %v2069 = vadd.f32 %v1923, %v2031
        %v2070 = vadd.f32 %v1924, %v2033
        %v2071 = vadd.f32 %v1925, %v2037
        %v2072 = vadd.f32 %v1926, %v2039
        %v2073 = vadd.f32 %v1927, %v2043
        %v2074 = vadd.f32 %v1928, %v2045
        %v2075 = vadd.f32 %v1929, %v2049
        %v2076 = vadd.f32 %v1930, %v2051
        %v2077 = vadd.f32 %v1931, %v2055
        %v2078 = vadd.f32 %v1932, %v2057
        %v2079 = vadd.f32 %v1933, %v2061
        %v2080 = vadd.f32 %v1934, %v2063
        %v2081 = vmax.f32 %v1367, %v2065
        %v2082 = vmax.f32 %v1368, %v2066
        %v2083 = vmax.f32 %v1369, %v2067
        %v2084 = vmax.f32 %v1370, %v2068
        %v2085 = vmax.f32 %v1371, %v2069
        %v2086 = vmax.f32 %v1372, %v2070
        %v2087 = vmax.f32 %v1373, %v2071
        %v2088 = vmax.f32 %v1374, %v2072
        %v2089 = vmax.f32 %v1375, %v2073
        %v2090 = vmax.f32 %v1376, %v2074
        %v2091 = vmax.f32 %v1377, %v2075
        %v2092 = vmax.f32 %v1378, %v2076
        %v2093 = vmax.f32 %v1379, %v2077
        %v2094 = vmax.f32 %v1380, %v2078
        %v2095 = vmax.f32 %v1381, %v2079
        %v2096 = vmax.f32 %v1382, %v2080
        %s2097 = scalar_lea.vmem [#allocation5], 256
        %v2098 = vld [vmem:[%s2097] sm:$0xff]
        %v2099 = vld [vmem:[%s2097 + $0x8] sm:$0xff]
        %v2100 = vld [vmem:[%s2097 + $0x10] sm:$0xff]
        %v2101 = vld [vmem:[%s2097 + $0x18] sm:$0xff]
        %v2102 = vld [vmem:[%s2097 + $0x20] sm:$0xff]
        %v2103 = vld [vmem:[%s2097 + $0x28] sm:$0xff]
        %v2104 = vld [vmem:[%s2097 + $0x30] sm:$0xff]
        %v2105 = vld [vmem:[%s2097 + $0x38] sm:$0xff]
        %v2106 = vld [vmem:[%s2097 + $0x40] sm:$0xff]
        %v2107 = vld [vmem:[%s2097 + $0x48] sm:$0xff]
        %v2108 = vld [vmem:[%s2097 + $0x50] sm:$0xff]
        %v2109 = vld [vmem:[%s2097 + $0x58] sm:$0xff]
        %v2110 = vld [vmem:[%s2097 + $0x60] sm:$0xff]
        %v2111 = vld [vmem:[%s2097 + $0x68] sm:$0xff]
        %v2112 = vld [vmem:[%s2097 + $0x70] sm:$0xff]
        %v2113 = vld [vmem:[%s2097 + $0x78] sm:$0xff]
        %s2114 = scalar_lea.vmem [#allocation5], 640
        %v2115 = vld [vmem:[%s2114] sm:$0xff]
        %v2116 = vld [vmem:[%s2114 + $0x8] sm:$0xff]
        %v2117 = vld [vmem:[%s2114 + $0x10] sm:$0xff]
        %v2118 = vld [vmem:[%s2114 + $0x18] sm:$0xff]
        %v2119 = vld [vmem:[%s2114 + $0x20] sm:$0xff]
        %v2120 = vld [vmem:[%s2114 + $0x28] sm:$0xff]
        %v2121 = vld [vmem:[%s2114 + $0x30] sm:$0xff]
        %v2122 = vld [vmem:[%s2114 + $0x38] sm:$0xff]
        %v2123 = vld [vmem:[%s2114 + $0x40] sm:$0xff]
        %v2124 = vld [vmem:[%s2114 + $0x48] sm:$0xff]
        %v2125 = vld [vmem:[%s2114 + $0x50] sm:$0xff]
        %v2126 = vld [vmem:[%s2114 + $0x58] sm:$0xff]
        %v2127 = vld [vmem:[%s2114 + $0x60] sm:$0xff]
        %v2128 = vld [vmem:[%s2114 + $0x68] sm:$0xff]
        %v2129 = vld [vmem:[%s2114 + $0x70] sm:$0xff]
        %v2130 = vld [vmem:[%s2114 + $0x78] sm:$0xff]
        %2131 = vmatprep.subr.mxu0 %v2116
        %2132 = vmatpush1.msra.mxu0 %v2115
        %2133 = vmatprep.subr.mxu0 %v2118
        %2134 = vmatpush1.msra.mxu0 %v2117
        %2135 = vmatprep.subr.mxu0 %v2120
        %2136 = vmatpush1.msra.mxu0 %v2119
        %2137 = vmatprep.subr.mxu0 %v2122
        %2138 = vmatpush1.msra.mxu0 %v2121
        %2139 = vmatprep.subr.mxu0 %v2124
        %2140 = vmatpush1.msra.mxu0 %v2123
        %2141 = vmatprep.subr.mxu0 %v2126
        %2142 = vmatpush1.msra.mxu0 %v2125
        %2143 = vmatprep.subr.mxu0 %v2128
        %2144 = vmatpush1.msra.mxu0 %v2127
        %2145 = vmatprep.subr.mxu0 %v2130
        %2146 = vmatpush1.msra.mxu0 %v2129
        %2147 = vmatprep.subr.mxu0 0.0
        %2148 = vmatpush1.msra.mxu0 0.0
        %2149 = vmatprep.subr.mxu0 0.0
        %2150 = vmatpush1.msra.mxu0 0.0
        %2151 = vmatprep.subr.mxu0 0.0
        %2152 = vmatpush1.msra.mxu0 0.0
        %2153 = vmatprep.subr.mxu0 0.0
        %2154 = vmatpush1.msra.mxu0 0.0
        %2155 = vmatprep.subr.mxu0 0.0
        %2156 = vmatpush1.msra.mxu0 0.0
        %2157 = vmatprep.subr.mxu0 0.0
        %2158 = vmatpush1.msra.mxu0 0.0
        %2159 = vmatprep.subr.mxu0 0.0
        %2160 = vmatpush1.msra.mxu0 0.0
        %2161 = vmatprep.subr.mxu0 0.0
        %2162 = vmatpush1.msra.mxu0 0.0
        %2163 = vmatprep.subr.mxu0 0.0
        %2164 = vmatpush1.msra.mxu0 0.0
        %2165 = vmatprep.subr.mxu0 0.0
        %2166 = vmatpush1.msra.mxu0 0.0
        %2167 = vmatprep.subr.mxu0 0.0
        %2168 = vmatpush1.msra.mxu0 0.0
        %2169 = vmatprep.subr.mxu0 0.0
        %2170 = vmatpush1.msra.mxu0 0.0
        %2171 = vmatprep.subr.mxu0 0.0
        %2172 = vmatpush1.msra.mxu0 0.0
        %2173 = vmatprep.subr.mxu0 0.0
        %2174 = vmatpush1.msra.mxu0 0.0
        %2175 = vmatprep.subr.mxu0 0.0
        %2176 = vmatpush1.msra.mxu0 0.0
        %2177 = vmatprep.subr.mxu0 0.0
        %2178 = vmatpush1.msra.mxu0 0.0
        %2179 = vmatprep.subr.mxu0 0.0
        %2180 = vmatpush1.msra.mxu0 0.0
        %2181 = vmatprep.subr.mxu0 0.0
        %2182 = vmatpush1.msra.mxu0 0.0
        %2183 = vmatprep.subr.mxu0 0.0
        %2184 = vmatpush1.msra.mxu0 0.0
        %2185 = vmatprep.subr.mxu0 0.0
        %2186 = vmatpush1.msra.mxu0 0.0
        %2187 = vmatprep.subr.mxu0 0.0
        %2188 = vmatpush1.msra.mxu0 0.0
        %2189 = vmatprep.subr.mxu0 0.0
        %2190 = vmatpush1.msra.mxu0 0.0
        %2191 = vmatprep.subr.mxu0 0.0
        %2192 = vmatpush1.msra.mxu0 0.0
        %2193 = vmatprep.subr.mxu0 0.0
        %2194 = vmatpush1.msra.mxu0 0.0
        %2195 = vmatprep.mubr.f32.mxu0 0.0
        %2196 = vmatmul.mubr.f32.gmra.mrb[0].mxu0 %v591
        %v2197 = vpop.f32.mrb[0].mxu0
        %v2198 = vadd.f32 0.0, %v2197
        %v2199 = vpop.f32.mrb[0].mxu0
        %v2200 = vadd.f32 0.0, %v2199
        %2201 = vmatprep.mubr.f32.mxu0 0.0
        %2202 = vmatmul.mubr.f32.gmra.mrb[0].mxu0 %v593
        %v2203 = vpop.f32.mrb[0].mxu0
        %v2204 = vadd.f32 0.0, %v2203
        %v2205 = vpop.f32.mrb[0].mxu0
        %v2206 = vadd.f32 0.0, %v2205
        %2207 = vmatprep.mubr.f32.mxu0 0.0
        %2208 = vmatmul.mubr.f32.gmra.mrb[0].mxu0 %v595
        %v2209 = vpop.f32.mrb[0].mxu0
        %v2210 = vadd.f32 0.0, %v2209
        %v2211 = vpop.f32.mrb[0].mxu0
        %v2212 = vadd.f32 0.0, %v2211
        %2213 = vmatprep.mubr.f32.mxu0 0.0
        %2214 = vmatmul.mubr.f32.gmra.mrb[0].mxu0 %v597
        %v2215 = vpop.f32.mrb[0].mxu0
        %v2216 = vadd.f32 0.0, %v2215
        %v2217 = vpop.f32.mrb[0].mxu0
        %v2218 = vadd.f32 0.0, %v2217
        %2219 = vmatprep.mubr.f32.mxu0 0.0
        %2220 = vmatmul.mubr.f32.gmra.mrb[0].mxu0 %v599
        %v2221 = vpop.f32.mrb[0].mxu0
        %v2222 = vadd.f32 0.0, %v2221
        %v2223 = vpop.f32.mrb[0].mxu0
        %v2224 = vadd.f32 0.0, %v2223
        %2225 = vmatprep.mubr.f32.mxu0 0.0
        %2226 = vmatmul.mubr.f32.gmra.mrb[0].mxu0 %v601
        %v2227 = vpop.f32.mrb[0].mxu0
        %v2228 = vadd.f32 0.0, %v2227
        %v2229 = vpop.f32.mrb[0].mxu0
        %v2230 = vadd.f32 0.0, %v2229
        %2231 = vmatprep.mubr.f32.mxu0 0.0
        %2232 = vmatmul.mubr.f32.gmra.mrb[0].mxu0 %v603
        %v2233 = vpop.f32.mrb[0].mxu0
        %v2234 = vadd.f32 0.0, %v2233
        %v2235 = vpop.f32.mrb[0].mxu0
        %v2236 = vadd.f32 0.0, %v2235
        %2237 = vmatprep.mubr.f32.mxu0 0.0
        %2238 = vmatmul.mubr.f32.gmra.mrb[0].mxu0 %v605
        %v2239 = vpop.f32.mrb[0].mxu0
        %v2240 = vadd.f32 0.0, %v2239
        %v2241 = vpop.f32.mrb[0].mxu0
        %v2242 = vadd.f32 0.0, %v2241
        %2243 = vdwg.mxu0
        %2244 = vmatprep.subr.mxu0 %v2099
        %2245 = vmatpush1.msra.mxu0 %v2098
        %2246 = vmatprep.subr.mxu0 %v2101
        %2247 = vmatpush1.msra.mxu0 %v2100
        %2248 = vmatprep.subr.mxu0 %v2103
        %2249 = vmatpush1.msra.mxu0 %v2102
        %2250 = vmatprep.subr.mxu0 %v2105
        %2251 = vmatpush1.msra.mxu0 %v2104
        %2252 = vmatprep.subr.mxu0 %v2107
        %2253 = vmatpush1.msra.mxu0 %v2106
        %2254 = vmatprep.subr.mxu0 %v2109
        %2255 = vmatpush1.msra.mxu0 %v2108
        %2256 = vmatprep.subr.mxu0 %v2111
        %2257 = vmatpush1.msra.mxu0 %v2110
        %2258 = vmatprep.subr.mxu0 %v2113
        %2259 = vmatpush1.msra.mxu0 %v2112
        %2260 = vmatprep.subr.mxu0 0.0
        %2261 = vmatpush1.msra.mxu0 0.0
        %2262 = vmatprep.subr.mxu0 0.0
        %2263 = vmatpush1.msra.mxu0 0.0
        %2264 = vmatprep.subr.mxu0 0.0
        %2265 = vmatpush1.msra.mxu0 0.0
        %2266 = vmatprep.subr.mxu0 0.0
        %2267 = vmatpush1.msra.mxu0 0.0
        %2268 = vmatprep.subr.mxu0 0.0
        %2269 = vmatpush1.msra.mxu0 0.0
        %2270 = vmatprep.subr.mxu0 0.0
        %2271 = vmatpush1.msra.mxu0 0.0
        %2272 = vmatprep.subr.mxu0 0.0
        %2273 = vmatpush1.msra.mxu0 0.0
        %2274 = vmatprep.subr.mxu0 0.0
        %2275 = vmatpush1.msra.mxu0 0.0
        %2276 = vmatprep.subr.mxu0 0.0
        %2277 = vmatpush1.msra.mxu0 0.0
        %2278 = vmatprep.subr.mxu0 0.0
        %2279 = vmatpush1.msra.mxu0 0.0
        %2280 = vmatprep.subr.mxu0 0.0
        %2281 = vmatpush1.msra.mxu0 0.0
        %2282 = vmatprep.subr.mxu0 0.0
        %2283 = vmatpush1.msra.mxu0 0.0
        %2284 = vmatprep.subr.mxu0 0.0
        %2285 = vmatpush1.msra.mxu0 0.0
        %2286 = vmatprep.subr.mxu0 0.0
        %2287 = vmatpush1.msra.mxu0 0.0
        %2288 = vmatprep.subr.mxu0 0.0
        %2289 = vmatpush1.msra.mxu0 0.0
        %2290 = vmatprep.subr.mxu0 0.0
        %2291 = vmatpush1.msra.mxu0 0.0
        %2292 = vmatprep.subr.mxu0 0.0
        %2293 = vmatpush1.msra.mxu0 0.0
        %2294 = vmatprep.subr.mxu0 0.0
        %2295 = vmatpush1.msra.mxu0 0.0
        %2296 = vmatprep.subr.mxu0 0.0
        %2297 = vmatpush1.msra.mxu0 0.0
        %2298 = vmatprep.subr.mxu0 0.0
        %2299 = vmatpush1.msra.mxu0 0.0
        %2300 = vmatprep.subr.mxu0 0.0
        %2301 = vmatpush1.msra.mxu0 0.0
        %2302 = vmatprep.subr.mxu0 0.0
        %2303 = vmatpush1.msra.mxu0 0.0
        %2304 = vmatprep.subr.mxu0 0.0
        %2305 = vmatpush1.msra.mxu0 0.0
        %2306 = vmatprep.subr.mxu0 0.0
        %2307 = vmatpush1.msra.mxu0 0.0
        %2308 = vmatprep.mubr.f32.mxu0 0.0
        %2309 = vmatmul.mubr.f32.gmra.mrb[0].mxu0 %v720
        %v2310 = vpop.f32.mrb[0].mxu0
        %v2311 = vadd.f32 %v2198, %v2310
        %v2312 = vpop.f32.mrb[0].mxu0
        %v2313 = vadd.f32 %v2200, %v2312
        %2314 = vmatprep.mubr.f32.mxu0 0.0
        %2315 = vmatmul.mubr.f32.gmra.mrb[0].mxu0 %v722
        %v2316 = vpop.f32.mrb[0].mxu0
        %v2317 = vadd.f32 %v2204, %v2316
        %v2318 = vpop.f32.mrb[0].mxu0
        %v2319 = vadd.f32 %v2206, %v2318
        %2320 = vmatprep.mubr.f32.mxu0 0.0
        %2321 = vmatmul.mubr.f32.gmra.mrb[0].mxu0 %v724
        %v2322 = vpop.f32.mrb[0].mxu0
        %v2323 = vadd.f32 %v2210, %v2322
        %v2324 = vpop.f32.mrb[0].mxu0
        %v2325 = vadd.f32 %v2212, %v2324
        %2326 = vmatprep.mubr.f32.mxu0 0.0
        %2327 = vmatmul.mubr.f32.gmra.mrb[0].mxu0 %v726
        %v2328 = vpop.f32.mrb[0].mxu0
        %v2329 = vadd.f32 %v2216, %v2328
        %v2330 = vpop.f32.mrb[0].mxu0
        %v2331 = vadd.f32 %v2218, %v2330
        %2332 = vmatprep.mubr.f32.mxu0 0.0
        %2333 = vmatmul.mubr.f32.gmra.mrb[0].mxu0 %v728
        %v2334 = vpop.f32.mrb[0].mxu0
        %v2335 = vadd.f32 %v2222, %v2334
        %v2336 = vpop.f32.mrb[0].mxu0
        %v2337 = vadd.f32 %v2224, %v2336
        %2338 = vmatprep.mubr.f32.mxu0 0.0
        %2339 = vmatmul.mubr.f32.gmra.mrb[0].mxu0 %v730
        %v2340 = vpop.f32.mrb[0].mxu0
        %v2341 = vadd.f32 %v2228, %v2340
        %v2342 = vpop.f32.mrb[0].mxu0
        %v2343 = vadd.f32 %v2230, %v2342
        %2344 = vmatprep.mubr.f32.mxu0 0.0
        %2345 = vmatmul.mubr.f32.gmra.mrb[0].mxu0 %v732
        %v2346 = vpop.f32.mrb[0].mxu0
        %v2347 = vadd.f32 %v2234, %v2346
        %v2348 = vpop.f32.mrb[0].mxu0
        %v2349 = vadd.f32 %v2236, %v2348
        %2350 = vmatprep.mubr.f32.mxu0 0.0
        %2351 = vmatmul.mubr.f32.gmra.mrb[0].mxu0 %v734
        %v2352 = vpop.f32.mrb[0].mxu0
        %v2353 = vadd.f32 %v2240, %v2352
        %v2354 = vpop.f32.mrb[0].mxu0
        %v2355 = vadd.f32 %v2242, %v2354
        %2356 = vdwg.mxu0
        %s2357 = scalar_lea.vmem [#allocation5], 1024
        %v2358 = vld [vmem:[%s2357] sm:$0xff]
        %v2359 = vld [vmem:[%s2357 + $0x8] sm:$0xff]
        %v2360 = vld [vmem:[%s2357 + $0x10] sm:$0xff]
        %v2361 = vld [vmem:[%s2357 + $0x18] sm:$0xff]
        %v2362 = vld [vmem:[%s2357 + $0x20] sm:$0xff]
        %v2363 = vld [vmem:[%s2357 + $0x28] sm:$0xff]
        %v2364 = vld [vmem:[%s2357 + $0x30] sm:$0xff]
        %v2365 = vld [vmem:[%s2357 + $0x38] sm:$0xff]
        %v2366 = vld [vmem:[%s2357 + $0x40] sm:$0xff]
        %v2367 = vld [vmem:[%s2357 + $0x48] sm:$0xff]
        %v2368 = vld [vmem:[%s2357 + $0x50] sm:$0xff]
        %v2369 = vld [vmem:[%s2357 + $0x58] sm:$0xff]
        %v2370 = vld [vmem:[%s2357 + $0x60] sm:$0xff]
        %v2371 = vld [vmem:[%s2357 + $0x68] sm:$0xff]
        %v2372 = vld [vmem:[%s2357 + $0x70] sm:$0xff]
        %v2373 = vld [vmem:[%s2357 + $0x78] sm:$0xff]
        %2374 = vmatprep.subr.mxu0 %v2359
        %2375 = vmatpush1.msra.mxu0 %v2358
        %2376 = vmatprep.subr.mxu0 %v2361
        %2377 = vmatpush1.msra.mxu0 %v2360
        %2378 = vmatprep.subr.mxu0 %v2363
        %2379 = vmatpush1.msra.mxu0 %v2362
        %2380 = vmatprep.subr.mxu0 %v2365
        %2381 = vmatpush1.msra.mxu0 %v2364
        %2382 = vmatprep.subr.mxu0 %v2367
        %2383 = vmatpush1.msra.mxu0 %v2366
        %2384 = vmatprep.subr.mxu0 %v2369
        %2385 = vmatpush1.msra.mxu0 %v2368
        %2386 = vmatprep.subr.mxu0 %v2371
        %2387 = vmatpush1.msra.mxu0 %v2370
        %2388 = vmatprep.subr.mxu0 %v2373
        %2389 = vmatpush1.msra.mxu0 %v2372
        %2390 = vmatprep.subr.mxu0 0.0
        %2391 = vmatpush1.msra.mxu0 0.0
        %2392 = vmatprep.subr.mxu0 0.0
        %2393 = vmatpush1.msra.mxu0 0.0
        %2394 = vmatprep.subr.mxu0 0.0
        %2395 = vmatpush1.msra.mxu0 0.0
        %2396 = vmatprep.subr.mxu0 0.0
        %2397 = vmatpush1.msra.mxu0 0.0
        %2398 = vmatprep.subr.mxu0 0.0
        %2399 = vmatpush1.msra.mxu0 0.0
        %2400 = vmatprep.subr.mxu0 0.0
        %2401 = vmatpush1.msra.mxu0 0.0
        %2402 = vmatprep.subr.mxu0 0.0
        %2403 = vmatpush1.msra.mxu0 0.0
        %2404 = vmatprep.subr.mxu0 0.0
        %2405 = vmatpush1.msra.mxu0 0.0
        %2406 = vmatprep.subr.mxu0 0.0
        %2407 = vmatpush1.msra.mxu0 0.0
        %2408 = vmatprep.subr.mxu0 0.0
        %2409 = vmatpush1.msra.mxu0 0.0
        %2410 = vmatprep.subr.mxu0 0.0
        %2411 = vmatpush1.msra.mxu0 0.0
        %2412 = vmatprep.subr.mxu0 0.0
        %2413 = vmatpush1.msra.mxu0 0.0
        %2414 = vmatprep.subr.mxu0 0.0
        %2415 = vmatpush1.msra.mxu0 0.0
        %2416 = vmatprep.subr.mxu0 0.0
        %2417 = vmatpush1.msra.mxu0 0.0
        %2418 = vmatprep.subr.mxu0 0.0
        %2419 = vmatpush1.msra.mxu0 0.0
        %2420 = vmatprep.subr.mxu0 0.0
        %2421 = vmatpush1.msra.mxu0 0.0
        %2422 = vmatprep.subr.mxu0 0.0
        %2423 = vmatpush1.msra.mxu0 0.0
        %2424 = vmatprep.subr.mxu0 0.0
        %2425 = vmatpush1.msra.mxu0 0.0
        %2426 = vmatprep.subr.mxu0 0.0
        %2427 = vmatpush1.msra.mxu0 0.0
        %2428 = vmatprep.subr.mxu0 0.0
        %2429 = vmatpush1.msra.mxu0 0.0
        %2430 = vmatprep.subr.mxu0 0.0
        %2431 = vmatpush1.msra.mxu0 0.0
        %2432 = vmatprep.subr.mxu0 0.0
        %2433 = vmatpush1.msra.mxu0 0.0
        %2434 = vmatprep.subr.mxu0 0.0
        %2435 = vmatpush1.msra.mxu0 0.0
        %2436 = vmatprep.subr.mxu0 0.0
        %2437 = vmatpush1.msra.mxu0 0.0
        %2438 = vmatprep.mubr.f32.mxu0 0.0
        %2439 = vmatmul.mubr.f32.gmra.mrb[0].mxu0 %v882
        %v2440 = vpop.f32.mrb[0].mxu0
        %v2441 = vadd.f32 0.0, %v2440
        %v2442 = vpop.f32.mrb[0].mxu0
        %v2443 = vadd.f32 0.0, %v2442
        %2444 = vmatprep.mubr.f32.mxu0 0.0
        %2445 = vmatmul.mubr.f32.gmra.mrb[0].mxu0 %v884
        %v2446 = vpop.f32.mrb[0].mxu0
        %v2447 = vadd.f32 0.0, %v2446
        %v2448 = vpop.f32.mrb[0].mxu0
        %v2449 = vadd.f32 0.0, %v2448
        %2450 = vmatprep.mubr.f32.mxu0 0.0
        %2451 = vmatmul.mubr.f32.gmra.mrb[0].mxu0 %v886
        %v2452 = vpop.f32.mrb[0].mxu0
        %v2453 = vadd.f32 0.0, %v2452
        %v2454 = vpop.f32.mrb[0].mxu0
        %v2455 = vadd.f32 0.0, %v2454
        %2456 = vmatprep.mubr.f32.mxu0 0.0
        %2457 = vmatmul.mubr.f32.gmra.mrb[0].mxu0 %v888
        %v2458 = vpop.f32.mrb[0].mxu0
        %v2459 = vadd.f32 0.0, %v2458
        %v2460 = vpop.f32.mrb[0].mxu0
        %v2461 = vadd.f32 0.0, %v2460
        %2462 = vmatprep.mubr.f32.mxu0 0.0
        %2463 = vmatmul.mubr.f32.gmra.mrb[0].mxu0 %v890
        %v2464 = vpop.f32.mrb[0].mxu0
        %v2465 = vadd.f32 0.0, %v2464
        %v2466 = vpop.f32.mrb[0].mxu0
        %v2467 = vadd.f32 0.0, %v2466
        %2468 = vmatprep.mubr.f32.mxu0 0.0
        %2469 = vmatmul.mubr.f32.gmra.mrb[0].mxu0 %v892
        %v2470 = vpop.f32.mrb[0].mxu0
        %v2471 = vadd.f32 0.0, %v2470
        %v2472 = vpop.f32.mrb[0].mxu0
        %v2473 = vadd.f32 0.0, %v2472
        %2474 = vmatprep.mubr.f32.mxu0 0.0
        %2475 = vmatmul.mubr.f32.gmra.mrb[0].mxu0 %v894
        %v2476 = vpop.f32.mrb[0].mxu0
        %v2477 = vadd.f32 0.0, %v2476
        %v2478 = vpop.f32.mrb[0].mxu0
        %v2479 = vadd.f32 0.0, %v2478
        %2480 = vmatprep.mubr.f32.mxu0 0.0
        %2481 = vmatmul.mubr.f32.gmra.mrb[0].mxu0 %v896
        %v2482 = vpop.f32.mrb[0].mxu0
        %v2483 = vadd.f32 0.0, %v2482
        %v2484 = vpop.f32.mrb[0].mxu0
        %v2485 = vadd.f32 0.0, %v2484
        %2486 = vdwg.mxu0
        %v2487 = vadd.f32 %v2311, %v2441
        %v2488 = vadd.f32 %v2313, %v2443
        %v2489 = vadd.f32 %v2317, %v2447
        %v2490 = vadd.f32 %v2319, %v2449
        %v2491 = vadd.f32 %v2323, %v2453
        %v2492 = vadd.f32 %v2325, %v2455
        %v2493 = vadd.f32 %v2329, %v2459
        %v2494 = vadd.f32 %v2331, %v2461
        %v2495 = vadd.f32 %v2335, %v2465
        %v2496 = vadd.f32 %v2337, %v2467
        %v2497 = vadd.f32 %v2341, %v2471
        %v2498 = vadd.f32 %v2343, %v2473
        %v2499 = vadd.f32 %v2347, %v2477
        %v2500 = vadd.f32 %v2349, %v2479
        %v2501 = vadd.f32 %v2353, %v2483
        %v2502 = vadd.f32 %v2355, %v2485
        %s2503 = scalar_lea.vmem [#allocation5], 1408
        %v2504 = vld [vmem:[%s2503] sm:$0xff]
        %v2505 = vld [vmem:[%s2503 + $0x8] sm:$0xff]
        %v2506 = vld [vmem:[%s2503 + $0x10] sm:$0xff]
        %v2507 = vld [vmem:[%s2503 + $0x18] sm:$0xff]
        %v2508 = vld [vmem:[%s2503 + $0x20] sm:$0xff]
        %v2509 = vld [vmem:[%s2503 + $0x28] sm:$0xff]
        %v2510 = vld [vmem:[%s2503 + $0x30] sm:$0xff]
        %v2511 = vld [vmem:[%s2503 + $0x38] sm:$0xff]
        %v2512 = vld [vmem:[%s2503 + $0x40] sm:$0xff]
        %v2513 = vld [vmem:[%s2503 + $0x48] sm:$0xff]
        %v2514 = vld [vmem:[%s2503 + $0x50] sm:$0xff]
        %v2515 = vld [vmem:[%s2503 + $0x58] sm:$0xff]
        %v2516 = vld [vmem:[%s2503 + $0x60] sm:$0xff]
        %v2517 = vld [vmem:[%s2503 + $0x68] sm:$0xff]
        %v2518 = vld [vmem:[%s2503 + $0x70] sm:$0xff]
        %v2519 = vld [vmem:[%s2503 + $0x78] sm:$0xff]
        %2520 = vmatprep.subr.mxu0 %v2505
        %2521 = vmatpush1.msra.mxu0 %v2504
        %2522 = vmatprep.subr.mxu0 %v2507
        %2523 = vmatpush1.msra.mxu0 %v2506
        %2524 = vmatprep.subr.mxu0 %v2509
        %2525 = vmatpush1.msra.mxu0 %v2508
        %2526 = vmatprep.subr.mxu0 %v2511
        %2527 = vmatpush1.msra.mxu0 %v2510
        %2528 = vmatprep.subr.mxu0 %v2513
        %2529 = vmatpush1.msra.mxu0 %v2512
        %2530 = vmatprep.subr.mxu0 %v2515
        %2531 = vmatpush1.msra.mxu0 %v2514
        %2532 = vmatprep.subr.mxu0 %v2517
        %2533 = vmatpush1.msra.mxu0 %v2516
        %2534 = vmatprep.subr.mxu0 %v2519
        %2535 = vmatpush1.msra.mxu0 %v2518
        %2536 = vmatprep.subr.mxu0 0.0
        %2537 = vmatpush1.msra.mxu0 0.0
        %2538 = vmatprep.subr.mxu0 0.0
        %2539 = vmatpush1.msra.mxu0 0.0
        %2540 = vmatprep.subr.mxu0 0.0
        %2541 = vmatpush1.msra.mxu0 0.0
        %2542 = vmatprep.subr.mxu0 0.0
        %2543 = vmatpush1.msra.mxu0 0.0
        %2544 = vmatprep.subr.mxu0 0.0
        %2545 = vmatpush1.msra.mxu0 0.0
        %2546 = vmatprep.subr.mxu0 0.0
        %2547 = vmatpush1.msra.mxu0 0.0
        %2548 = vmatprep.subr.mxu0 0.0
        %2549 = vmatpush1.msra.mxu0 0.0
        %2550 = vmatprep.subr.mxu0 0.0
        %2551 = vmatpush1.msra.mxu0 0.0
        %2552 = vmatprep.subr.mxu0 0.0
        %2553 = vmatpush1.msra.mxu0 0.0
        %2554 = vmatprep.subr.mxu0 0.0
        %2555 = vmatpush1.msra.mxu0 0.0
        %2556 = vmatprep.subr.mxu0 0.0
        %2557 = vmatpush1.msra.mxu0 0.0
        %2558 = vmatprep.subr.mxu0 0.0
        %2559 = vmatpush1.msra.mxu0 0.0
        %2560 = vmatprep.subr.mxu0 0.0
        %2561 = vmatpush1.msra.mxu0 0.0
        %2562 = vmatprep.subr.mxu0 0.0
        %2563 = vmatpush1.msra.mxu0 0.0
        %2564 = vmatprep.subr.mxu0 0.0
        %2565 = vmatpush1.msra.mxu0 0.0
        %2566 = vmatprep.subr.mxu0 0.0
        %2567 = vmatpush1.msra.mxu0 0.0
        %2568 = vmatprep.subr.mxu0 0.0
        %2569 = vmatpush1.msra.mxu0 0.0
        %2570 = vmatprep.subr.mxu0 0.0
        %2571 = vmatpush1.msra.mxu0 0.0
        %2572 = vmatprep.subr.mxu0 0.0
        %2573 = vmatpush1.msra.mxu0 0.0
        %2574 = vmatprep.subr.mxu0 0.0
        %2575 = vmatpush1.msra.mxu0 0.0
        %2576 = vmatprep.subr.mxu0 0.0
        %2577 = vmatpush1.msra.mxu0 0.0
        %2578 = vmatprep.subr.mxu0 0.0
        %2579 = vmatpush1.msra.mxu0 0.0
        %2580 = vmatprep.subr.mxu0 0.0
        %2581 = vmatpush1.msra.mxu0 0.0
        %2582 = vmatprep.subr.mxu0 0.0
        %2583 = vmatpush1.msra.mxu0 0.0
        %2584 = vmatprep.mubr.f32.mxu0 0.0
        %2585 = vmatmul.mubr.f32.gmra.mrb[0].mxu0 %v1060
        %v2586 = vpop.f32.mrb[0].mxu0
        %v2587 = vadd.f32 0.0, %v2586
        %v2588 = vpop.f32.mrb[0].mxu0
        %v2589 = vadd.f32 0.0, %v2588
        %2590 = vmatprep.mubr.f32.mxu0 0.0
        %2591 = vmatmul.mubr.f32.gmra.mrb[0].mxu0 %v1062
        %v2592 = vpop.f32.mrb[0].mxu0
        %v2593 = vadd.f32 0.0, %v2592
        %v2594 = vpop.f32.mrb[0].mxu0
        %v2595 = vadd.f32 0.0, %v2594
        %2596 = vmatprep.mubr.f32.mxu0 0.0
        %2597 = vmatmul.mubr.f32.gmra.mrb[0].mxu0 %v1064
        %v2598 = vpop.f32.mrb[0].mxu0
        %v2599 = vadd.f32 0.0, %v2598
        %v2600 = vpop.f32.mrb[0].mxu0
        %v2601 = vadd.f32 0.0, %v2600
        %2602 = vmatprep.mubr.f32.mxu0 0.0
        %2603 = vmatmul.mubr.f32.gmra.mrb[0].mxu0 %v1066
        %v2604 = vpop.f32.mrb[0].mxu0
        %v2605 = vadd.f32 0.0, %v2604
        %v2606 = vpop.f32.mrb[0].mxu0
        %v2607 = vadd.f32 0.0, %v2606
        %2608 = vmatprep.mubr.f32.mxu0 0.0
        %2609 = vmatmul.mubr.f32.gmra.mrb[0].mxu0 %v1068
        %v2610 = vpop.f32.mrb[0].mxu0
        %v2611 = vadd.f32 0.0, %v2610
        %v2612 = vpop.f32.mrb[0].mxu0
        %v2613 = vadd.f32 0.0, %v2612
        %2614 = vmatprep.mubr.f32.mxu0 0.0
        %2615 = vmatmul.mubr.f32.gmra.mrb[0].mxu0 %v1070
        %v2616 = vpop.f32.mrb[0].mxu0
        %v2617 = vadd.f32 0.0, %v2616
        %v2618 = vpop.f32.mrb[0].mxu0
        %v2619 = vadd.f32 0.0, %v2618
        %2620 = vmatprep.mubr.f32.mxu0 0.0
        %2621 = vmatmul.mubr.f32.gmra.mrb[0].mxu0 %v1072
        %v2622 = vpop.f32.mrb[0].mxu0
        %v2623 = vadd.f32 0.0, %v2622
        %v2624 = vpop.f32.mrb[0].mxu0
        %v2625 = vadd.f32 0.0, %v2624
        %2626 = vmatprep.mubr.f32.mxu0 0.0
        %2627 = vmatmul.mubr.f32.gmra.mrb[0].mxu0 %v1074
        %v2628 = vpop.f32.mrb[0].mxu0
        %v2629 = vadd.f32 0.0, %v2628
        %v2630 = vpop.f32.mrb[0].mxu0
        %v2631 = vadd.f32 0.0, %v2630
        %2632 = vdwg.mxu0
        %v2633 = vadd.f32 %v2487, %v2587
        %v2634 = vadd.f32 %v2488, %v2589
        %v2635 = vadd.f32 %v2489, %v2593
        %v2636 = vadd.f32 %v2490, %v2595
        %v2637 = vadd.f32 %v2491, %v2599
        %v2638 = vadd.f32 %v2492, %v2601
        %v2639 = vadd.f32 %v2493, %v2605
        %v2640 = vadd.f32 %v2494, %v2607
        %v2641 = vadd.f32 %v2495, %v2611
        %v2642 = vadd.f32 %v2496, %v2613
        %v2643 = vadd.f32 %v2497, %v2617
        %v2644 = vadd.f32 %v2498, %v2619
        %v2645 = vadd.f32 %v2499, %v2623
        %v2646 = vadd.f32 %v2500, %v2625
        %v2647 = vadd.f32 %v2501, %v2629
        %v2648 = vadd.f32 %v2502, %v2631
        %s2649 = scalar_lea.vmem [#allocation5], 1792
        %v2650 = vld [vmem:[%s2649] sm:$0xff]
        %v2651 = vld [vmem:[%s2649 + $0x8] sm:$0xff]
        %v2652 = vld [vmem:[%s2649 + $0x10] sm:$0xff]
        %v2653 = vld [vmem:[%s2649 + $0x18] sm:$0xff]
        %v2654 = vld [vmem:[%s2649 + $0x20] sm:$0xff]
        %v2655 = vld [vmem:[%s2649 + $0x28] sm:$0xff]
        %v2656 = vld [vmem:[%s2649 + $0x30] sm:$0xff]
        %v2657 = vld [vmem:[%s2649 + $0x38] sm:$0xff]
        %v2658 = vld [vmem:[%s2649 + $0x40] sm:$0xff]
        %v2659 = vld [vmem:[%s2649 + $0x48] sm:$0xff]
        %v2660 = vld [vmem:[%s2649 + $0x50] sm:$0xff]
        %v2661 = vld [vmem:[%s2649 + $0x58] sm:$0xff]
        %v2662 = vld [vmem:[%s2649 + $0x60] sm:$0xff]
        %v2663 = vld [vmem:[%s2649 + $0x68] sm:$0xff]
        %v2664 = vld [vmem:[%s2649 + $0x70] sm:$0xff]
        %v2665 = vld [vmem:[%s2649 + $0x78] sm:$0xff]
        %2666 = vmatprep.subr.mxu0 %v2651
        %2667 = vmatpush1.msra.mxu0 %v2650
        %2668 = vmatprep.subr.mxu0 %v2653
        %2669 = vmatpush1.msra.mxu0 %v2652
        %2670 = vmatprep.subr.mxu0 %v2655
        %2671 = vmatpush1.msra.mxu0 %v2654
        %2672 = vmatprep.subr.mxu0 %v2657
        %2673 = vmatpush1.msra.mxu0 %v2656
        %2674 = vmatprep.subr.mxu0 %v2659
        %2675 = vmatpush1.msra.mxu0 %v2658
        %2676 = vmatprep.subr.mxu0 %v2661
        %2677 = vmatpush1.msra.mxu0 %v2660
        %2678 = vmatprep.subr.mxu0 %v2663
        %2679 = vmatpush1.msra.mxu0 %v2662
        %2680 = vmatprep.subr.mxu0 %v2665
        %2681 = vmatpush1.msra.mxu0 %v2664
        %2682 = vmatprep.subr.mxu0 0.0
        %2683 = vmatpush1.msra.mxu0 0.0
        %2684 = vmatprep.subr.mxu0 0.0
        %2685 = vmatpush1.msra.mxu0 0.0
        %2686 = vmatprep.subr.mxu0 0.0
        %2687 = vmatpush1.msra.mxu0 0.0
        %2688 = vmatprep.subr.mxu0 0.0
        %2689 = vmatpush1.msra.mxu0 0.0
        %2690 = vmatprep.subr.mxu0 0.0
        %2691 = vmatpush1.msra.mxu0 0.0
        %2692 = vmatprep.subr.mxu0 0.0
        %2693 = vmatpush1.msra.mxu0 0.0
        %2694 = vmatprep.subr.mxu0 0.0
        %2695 = vmatpush1.msra.mxu0 0.0
        %2696 = vmatprep.subr.mxu0 0.0
        %2697 = vmatpush1.msra.mxu0 0.0
        %2698 = vmatprep.subr.mxu0 0.0
        %2699 = vmatpush1.msra.mxu0 0.0
        %2700 = vmatprep.subr.mxu0 0.0
        %2701 = vmatpush1.msra.mxu0 0.0
        %2702 = vmatprep.subr.mxu0 0.0
        %2703 = vmatpush1.msra.mxu0 0.0
        %2704 = vmatprep.subr.mxu0 0.0
        %2705 = vmatpush1.msra.mxu0 0.0
        %2706 = vmatprep.subr.mxu0 0.0
        %2707 = vmatpush1.msra.mxu0 0.0
        %2708 = vmatprep.subr.mxu0 0.0
        %2709 = vmatpush1.msra.mxu0 0.0
        %2710 = vmatprep.subr.mxu0 0.0
        %2711 = vmatpush1.msra.mxu0 0.0
        %2712 = vmatprep.subr.mxu0 0.0
        %2713 = vmatpush1.msra.mxu0 0.0
        %2714 = vmatprep.subr.mxu0 0.0
        %2715 = vmatpush1.msra.mxu0 0.0
        %2716 = vmatprep.subr.mxu0 0.0
        %2717 = vmatpush1.msra.mxu0 0.0
        %2718 = vmatprep.subr.mxu0 0.0
        %2719 = vmatpush1.msra.mxu0 0.0
        %2720 = vmatprep.subr.mxu0 0.0
        %2721 = vmatpush1.msra.mxu0 0.0
        %2722 = vmatprep.subr.mxu0 0.0
        %2723 = vmatpush1.msra.mxu0 0.0
        %2724 = vmatprep.subr.mxu0 0.0
        %2725 = vmatpush1.msra.mxu0 0.0
        %2726 = vmatprep.subr.mxu0 0.0
        %2727 = vmatpush1.msra.mxu0 0.0
        %2728 = vmatprep.subr.mxu0 0.0
        %2729 = vmatpush1.msra.mxu0 0.0
        %2730 = vmatprep.mubr.f32.mxu0 0.0
        %2731 = vmatmul.mubr.f32.gmra.mrb[0].mxu0 %v1238
        %v2732 = vpop.f32.mrb[0].mxu0
        %v2733 = vadd.f32 0.0, %v2732
        %v2734 = vpop.f32.mrb[0].mxu0
        %v2735 = vadd.f32 0.0, %v2734
        %2736 = vmatprep.mubr.f32.mxu0 0.0
        %2737 = vmatmul.mubr.f32.gmra.mrb[0].mxu0 %v1240
        %v2738 = vpop.f32.mrb[0].mxu0
        %v2739 = vadd.f32 0.0, %v2738
        %v2740 = vpop.f32.mrb[0].mxu0
        %v2741 = vadd.f32 0.0, %v2740
        %2742 = vmatprep.mubr.f32.mxu0 0.0
        %2743 = vmatmul.mubr.f32.gmra.mrb[0].mxu0 %v1242
        %v2744 = vpop.f32.mrb[0].mxu0
        %v2745 = vadd.f32 0.0, %v2744
        %v2746 = vpop.f32.mrb[0].mxu0
        %v2747 = vadd.f32 0.0, %v2746
        %2748 = vmatprep.mubr.f32.mxu0 0.0
        %2749 = vmatmul.mubr.f32.gmra.mrb[0].mxu0 %v1244
        %v2750 = vpop.f32.mrb[0].mxu0
        %v2751 = vadd.f32 0.0, %v2750
        %v2752 = vpop.f32.mrb[0].mxu0
        %v2753 = vadd.f32 0.0, %v2752
        %2754 = vmatprep.mubr.f32.mxu0 0.0
        %2755 = vmatmul.mubr.f32.gmra.mrb[0].mxu0 %v1246
        %v2756 = vpop.f32.mrb[0].mxu0
        %v2757 = vadd.f32 0.0, %v2756
        %v2758 = vpop.f32.mrb[0].mxu0
        %v2759 = vadd.f32 0.0, %v2758
        %2760 = vmatprep.mubr.f32.mxu0 0.0
        %2761 = vmatmul.mubr.f32.gmra.mrb[0].mxu0 %v1248
        %v2762 = vpop.f32.mrb[0].mxu0
        %v2763 = vadd.f32 0.0, %v2762
        %v2764 = vpop.f32.mrb[0].mxu0
        %v2765 = vadd.f32 0.0, %v2764
        %2766 = vmatprep.mubr.f32.mxu0 0.0
        %2767 = vmatmul.mubr.f32.gmra.mrb[0].mxu0 %v1250
        %v2768 = vpop.f32.mrb[0].mxu0
        %v2769 = vadd.f32 0.0, %v2768
        %v2770 = vpop.f32.mrb[0].mxu0
        %v2771 = vadd.f32 0.0, %v2770
        %2772 = vmatprep.mubr.f32.mxu0 0.0
        %2773 = vmatmul.mubr.f32.gmra.mrb[0].mxu0 %v1252
        %v2774 = vpop.f32.mrb[0].mxu0
        %v2775 = vadd.f32 0.0, %v2774
        %v2776 = vpop.f32.mrb[0].mxu0
        %v2777 = vadd.f32 0.0, %v2776
        %2778 = vdwg.mxu0
        %v2779 = vadd.f32 %v2633, %v2733
        %v2780 = vadd.f32 %v2634, %v2735
        %v2781 = vadd.f32 %v2635, %v2739
        %v2782 = vadd.f32 %v2636, %v2741
        %v2783 = vadd.f32 %v2637, %v2745
        %v2784 = vadd.f32 %v2638, %v2747
        %v2785 = vadd.f32 %v2639, %v2751
        %v2786 = vadd.f32 %v2640, %v2753
        %v2787 = vadd.f32 %v2641, %v2757
        %v2788 = vadd.f32 %v2642, %v2759
        %v2789 = vadd.f32 %v2643, %v2763
        %v2790 = vadd.f32 %v2644, %v2765
        %v2791 = vadd.f32 %v2645, %v2769
        %v2792 = vadd.f32 %v2646, %v2771
        %v2793 = vadd.f32 %v2647, %v2775
        %v2794 = vadd.f32 %v2648, %v2777
        %v2795 = vmax.f32 %v2081, %v2779
        %v2796 = vmax.f32 %v2082, %v2780
        %v2797 = vmax.f32 %v2083, %v2781
        %v2798 = vmax.f32 %v2084, %v2782
        %v2799 = vmax.f32 %v2085, %v2783
        %v2800 = vmax.f32 %v2086, %v2784
        %v2801 = vmax.f32 %v2087, %v2785
        %v2802 = vmax.f32 %v2088, %v2786
        %v2803 = vmax.f32 %v2089, %v2787
        %v2804 = vmax.f32 %v2090, %v2788
        %v2805 = vmax.f32 %v2091, %v2789
        %v2806 = vmax.f32 %v2092, %v2790
        %v2807 = vmax.f32 %v2093, %v2791
        %v2808 = vmax.f32 %v2094, %v2792
        %v2809 = vmax.f32 %v2095, %v2793
        %v2810 = vmax.f32 %v2096, %v2794
        %v2827 = vrot.slane %v2795, 1
        %v2828 = vrot.slane %v2797, 1
        %v2829 = vsel %vm574, %v2827, %v2828
        %v2830 = vrot.slane %v2796, 1
        %v2831 = vrot.slane %v2798, 1
        %v2832 = vsel %vm574, %v2830, %v2831
        %v2833 = vrot.slane %v2799, 1
        %v2834 = vsel %vm574, %v2828, %v2833
        %v2835 = vrot.slane %v2800, 1
        %v2836 = vsel %vm574, %v2831, %v2835
        %v2837 = vrot.slane %v2801, 1
        %v2838 = vsel %vm574, %v2833, %v2837
        %v2839 = vrot.slane %v2802, 1
        %v2840 = vsel %vm574, %v2835, %v2839
        %v2841 = vrot.slane %v2803, 1
        %v2842 = vsel %vm574, %v2837, %v2841
        %v2843 = vrot.slane %v2804, 1
        %v2844 = vsel %vm574, %v2839, %v2843
        %v2845 = vrot.slane %v2805, 1
        %v2846 = vsel %vm574, %v2841, %v2845
        %v2847 = vrot.slane %v2806, 1
        %v2848 = vsel %vm574, %v2843, %v2847
        %v2849 = vrot.slane %v2807, 1
        %v2850 = vsel %vm574, %v2845, %v2849
        %v2851 = vrot.slane %v2808, 1
        %v2852 = vsel %vm574, %v2847, %v2851
        %v2853 = vrot.slane %v2809, 1
        %v2854 = vsel %vm574, %v2849, %v2853
        %v2855 = vrot.slane %v2810, 1
        %v2856 = vsel %vm574, %v2851, %v2855
        %v2873 = vmax.f32 %v2795, %v2829
        %v2874 = vmax.f32 %v2796, %v2832
        %v2875 = vmax.f32 %v2797, %v2834
        %v2876 = vmax.f32 %v2798, %v2836
        %v2877 = vmax.f32 %v2799, %v2838
        %v2878 = vmax.f32 %v2800, %v2840
        %v2879 = vmax.f32 %v2801, %v2842
        %v2880 = vmax.f32 %v2802, %v2844
        %v2881 = vmax.f32 %v2803, %v2846
        %v2882 = vmax.f32 %v2804, %v2848
        %v2883 = vmax.f32 %v2805, %v2850
        %v2884 = vmax.f32 %v2806, %v2852
        %v2885 = vmax.f32 %v2807, %v2854
        %v2886 = vmax.f32 %v2808, %v2856
        %v2887 = vmax.f32 %v2809, %v2853
        %v2888 = vmax.f32 %v2810, %v2855
        %v2889 = vrot.slane %v2795, 2
        %v2890 = vrot.slane %v2797, 2
        %v2891 = vsel %vm866, %v2889, %v2890
        %v2892 = vrot.slane %v2796, 2
        %v2893 = vrot.slane %v2798, 2
        %v2894 = vsel %vm866, %v2892, %v2893
        %v2895 = vrot.slane %v2799, 2
        %v2896 = vsel %vm866, %v2890, %v2895
        %v2897 = vrot.slane %v2800, 2
        %v2898 = vsel %vm866, %v2893, %v2897
        %v2899 = vrot.slane %v2801, 2
        %v2900 = vsel %vm866, %v2895, %v2899
        %v2901 = vrot.slane %v2802, 2
        %v2902 = vsel %vm866, %v2897, %v2901
        %v2903 = vrot.slane %v2803, 2
        %v2904 = vsel %vm866, %v2899, %v2903
        %v2905 = vrot.slane %v2804, 2
        %v2906 = vsel %vm866, %v2901, %v2905
        %v2907 = vrot.slane %v2805, 2
        %v2908 = vsel %vm866, %v2903, %v2907
        %v2909 = vrot.slane %v2806, 2
        %v2910 = vsel %vm866, %v2905, %v2909
        %v2911 = vrot.slane %v2807, 2
        %v2912 = vsel %vm866, %v2907, %v2911
        %v2913 = vrot.slane %v2808, 2
        %v2914 = vsel %vm866, %v2909, %v2913
        %v2915 = vrot.slane %v2809, 2
        %v2916 = vsel %vm866, %v2911, %v2915
        %v2917 = vrot.slane %v2810, 2
        %v2918 = vsel %vm866, %v2913, %v2917
        %v2935 = vmax.f32 %v2873, %v2891
        %v2936 = vmax.f32 %v2874, %v2894
        %v2937 = vmax.f32 %v2875, %v2896
        %v2938 = vmax.f32 %v2876, %v2898
        %v2939 = vmax.f32 %v2877, %v2900
        %v2940 = vmax.f32 %v2878, %v2902
        %v2941 = vmax.f32 %v2879, %v2904
        %v2942 = vmax.f32 %v2880, %v2906
        %v2943 = vmax.f32 %v2881, %v2908
        %v2944 = vmax.f32 %v2882, %v2910
        %v2945 = vmax.f32 %v2883, %v2912
        %v2946 = vmax.f32 %v2884, %v2914
        %v2947 = vmax.f32 %v2885, %v2916
        %v2948 = vmax.f32 %v2886, %v2918
        %v2949 = vmax.f32 %v2887, %v2915
        %v2950 = vmax.f32 %v2888, %v2917
        %v2951 = vld [vmem:[#allocation8] sm:$0xff]
        %v2952 = vld [vmem:[#allocation8 + $0x8] sm:$0xff]
        %v2953 = vld [vmem:[#allocation8 + $0x10] sm:$0xf]
        %v2954 = vld [vmem:[#allocation7] sm:$0x3]
        %v2956 = vlaneseq
        %v2957 = vshrl.u32 %v2956, 7
        %v2958 = vsub.s32 0, %v2957
        %v2959 = vrot.slane %v2954, %v2958
        %v2960 = vlaneseq
        %v2961 = vshrl.u32 %v2960, 7
        %v2962 = vsub.s32 1, %v2961
        %v2963 = vrot.slane %v2954, %v2962
        %vm2966 = vcmask 474112
        %v2968 = vsel %vm2966, %v2951, 0
        %v2971 = vsel %vm2966, %v2952, 0
        %v2974 = vsel %vm2966, %v2953, 0
        %vm2976 = vcmask 1041408
        %v2978 = vsel %vm2976, %v2949, 0
        %v2981 = vsel %vm2976, %v2950, 0
        %2983 = vmatprep.subr.mxu0 %v2936
        %2984 = vmatpush1.msra.mxu0 %v2935
        %2985 = vmatprep.subr.mxu0 %v2938
        %2986 = vmatpush1.msra.mxu0 %v2937
        %2987 = vmatprep.subr.mxu0 %v2940
        %2988 = vmatpush1.msra.mxu0 %v2939
        %2989 = vmatprep.subr.mxu0 %v2942
        %2990 = vmatpush1.msra.mxu0 %v2941
        %2991 = vmatprep.subr.mxu0 %v2944
        %2992 = vmatpush1.msra.mxu0 %v2943
        %2993 = vmatprep.subr.mxu0 %v2946
        %2994 = vmatpush1.msra.mxu0 %v2945
        %2995 = vmatprep.subr.mxu0 %v2948
        %2996 = vmatpush1.msra.mxu0 %v2947
        %2997 = vmatprep.subr.mxu0 %v2981
        %2998 = vmatpush1.msra.mxu0 %v2978
        %2999 = vmatprep.subr.mxu0 0.0
        %3000 = vmatpush1.msra.mxu0 0.0
        %3001 = vmatprep.subr.mxu0 0.0
        %3002 = vmatpush1.msra.mxu0 0.0
        %3003 = vmatprep.subr.mxu0 0.0
        %3004 = vmatpush1.msra.mxu0 0.0
        %3005 = vmatprep.subr.mxu0 0.0
        %3006 = vmatpush1.msra.mxu0 0.0
        %3007 = vmatprep.subr.mxu0 0.0
        %3008 = vmatpush1.msra.mxu0 0.0
        %3009 = vmatprep.subr.mxu0 0.0
        %3010 = vmatpush1.msra.mxu0 0.0
        %3011 = vmatprep.subr.mxu0 0.0
        %3012 = vmatpush1.msra.mxu0 0.0
        %3013 = vmatprep.subr.mxu0 0.0
        %3014 = vmatpush1.msra.mxu0 0.0
        %3015 = vmatprep.subr.mxu0 0.0
        %3016 = vmatpush1.msra.mxu0 0.0
        %3017 = vmatprep.subr.mxu0 0.0
        %3018 = vmatpush1.msra.mxu0 0.0
        %3019 = vmatprep.subr.mxu0 0.0
        %3020 = vmatpush1.msra.mxu0 0.0
        %3021 = vmatprep.subr.mxu0 0.0
        %3022 = vmatpush1.msra.mxu0 0.0
        %3023 = vmatprep.subr.mxu0 0.0
        %3024 = vmatpush1.msra.mxu0 0.0
        %3025 = vmatprep.subr.mxu0 0.0
        %3026 = vmatpush1.msra.mxu0 0.0
        %3027 = vmatprep.subr.mxu0 0.0
        %3028 = vmatpush1.msra.mxu0 0.0
        %3029 = vmatprep.subr.mxu0 0.0
        %3030 = vmatpush1.msra.mxu0 0.0
        %3031 = vmatprep.subr.mxu0 0.0
        %3032 = vmatpush1.msra.mxu0 0.0
        %3033 = vmatprep.subr.mxu0 0.0
        %3034 = vmatpush1.msra.mxu0 0.0
        %3035 = vmatprep.subr.mxu0 0.0
        %3036 = vmatpush1.msra.mxu0 0.0
        %3037 = vmatprep.subr.mxu0 0.0
        %3038 = vmatpush1.msra.mxu0 0.0
        %3039 = vmatprep.subr.mxu0 0.0
        %3040 = vmatpush1.msra.mxu0 0.0
        %3041 = vmatprep.subr.mxu0 0.0
        %3042 = vmatpush1.msra.mxu0 0.0
        %3043 = vmatprep.subr.mxu0 0.0
        %3044 = vmatpush1.msra.mxu0 0.0
        %3045 = vmatprep.subr.mxu0 0.0
        %3046 = vmatpush1.msra.mxu0 0.0
        %3047 = vmatprep.mubr.f32.mxu0 0.0
        %3048 = vmatmul.mubr.f32.gmra.mrb[0].mxu0 %v2968
        %v3049 = vpop.f32.mrb[0].mxu0
        %v3050 = vadd.f32 %v2959, %v3049
        %v3051 = vpop.f32.mrb[0].mxu0
        %v3052 = vadd.f32 %v2963, %v3051
        %3053 = vmatprep.mubr.f32.mxu0 0.0
        %3054 = vmatmul.mubr.f32.gmra.mrb[0].mxu0 %v2971
        %v3055 = vpop.f32.mrb[0].mxu0
        %v3056 = vadd.f32 %v2959, %v3055
        %v3057 = vpop.f32.mrb[0].mxu0
        %v3058 = vadd.f32 %v2963, %v3057
        %3059 = vmatprep.mubr.f32.mxu0 0.0
        %3060 = vmatmul.mubr.f32.gmra.mrb[0].mxu0 %v2974
        %v3061 = vpop.f32.mrb[0].mxu0
        %v3062 = vadd.f32 %v2959, %v3061
        %v3063 = vpop.f32.mrb[0].mxu0
        %v3064 = vadd.f32 %v2963, %v3063
        %3065 = vdwg.mxu0
        %v3066 = vmax.f32 %v3050, 0.0
        %v3067 = vmax.f32 %v3052, 0.0
        %v3068 = vmax.f32 %v3056, 0.0
        %v3069 = vmax.f32 %v3058, 0.0
        %v3070 = vmax.f32 %v3062, 0.0
        %v3071 = vmax.f32 %v3064, 0.0
        %v3072 = vld [vmem:[#allocation10] sm:$0xff]
        %v3073 = vld [vmem:[#allocation10 + $0x8] sm:$0xff]
        %v3074 = vld [vmem:[#allocation10 + $0x10] sm:$0xff]
        %v3075 = vld [vmem:[#allocation10 + $0x18] sm:$0xff]
        %v3076 = vld [vmem:[#allocation10 + $0x20] sm:$0xff]
        %v3077 = vld [vmem:[#allocation10 + $0x28] sm:$0xff]
        %v3078 = vld [vmem:[#allocation10 + $0x30] sm:$0xff]
        %v3079 = vld [vmem:[#allocation10 + $0x38] sm:$0xff]
        %v3080 = vld [vmem:[#allocation10 + $0x40] sm:$0xff]
        %v3081 = vld [vmem:[#allocation10 + $0x48] sm:$0xff]
        %v3082 = vld [vmem:[#allocation10 + $0x50] sm:$0xff]
        %v3083 = vld [vmem:[#allocation10 + $0x58] sm:$0xff]
        %v3084 = vld [vmem:[#allocation10 + $0x60] sm:$0xff]
        %v3085 = vld [vmem:[#allocation10 + $0x68] sm:$0xff]
        %v3086 = vld [vmem:[#allocation10 + $0x70] sm:$0xff]
        %v3087 = vld [vmem:[#allocation10 + $0x78] sm:$0xff]
        %v3088 = vld [vmem:[#allocation10 + $0x80] sm:$0xff]
        %v3089 = vld [vmem:[#allocation10 + $0x88] sm:$0xff]
        %v3090 = vld [vmem:[#allocation10 + $0x90] sm:$0xff]
        %v3091 = vld [vmem:[#allocation10 + $0x98] sm:$0xff]
        %v3092 = vld [vmem:[#allocation10 + $0xa0] sm:$0xff]
        %v3093 = vld [vmem:[#allocation10 + $0xa8] sm:$0xff]
        %v3094 = vld [vmem:[#allocation10 + $0xb0] sm:$0xff]
        %v3095 = vld [vmem:[#allocation10 + $0xb8] sm:$0xff]
        %v3096 = vld [vmem:[#allocation10 + $0xc0] sm:$0xff]
        %s3097 = scalar_lea.vmem [#allocation10], 600
        %v3098 = vld [vmem:[%s3097] sm:$0xff]
        %v3099 = vld [vmem:[%s3097 + $0x8] sm:$0xff]
        %v3100 = vld [vmem:[%s3097 + $0x10] sm:$0xff]
        %v3101 = vld [vmem:[%s3097 + $0x18] sm:$0xff]
        %v3102 = vld [vmem:[%s3097 + $0x20] sm:$0xff]
        %v3103 = vld [vmem:[%s3097 + $0x28] sm:$0xff]
        %v3104 = vld [vmem:[%s3097 + $0x30] sm:$0xff]
        %v3105 = vld [vmem:[%s3097 + $0x38] sm:$0xff]
        %v3106 = vld [vmem:[%s3097 + $0x40] sm:$0xff]
        %v3107 = vld [vmem:[%s3097 + $0x48] sm:$0xff]
        %v3108 = vld [vmem:[%s3097 + $0x50] sm:$0xff]
        %v3109 = vld [vmem:[%s3097 + $0x58] sm:$0xff]
        %v3110 = vld [vmem:[%s3097 + $0x60] sm:$0xff]
        %v3111 = vld [vmem:[%s3097 + $0x68] sm:$0xff]
        %v3112 = vld [vmem:[%s3097 + $0x70] sm:$0xff]
        %v3113 = vld [vmem:[%s3097 + $0x78] sm:$0xff]
        %v3114 = vld [vmem:[%s3097 + $0x80] sm:$0xff]
        %v3115 = vld [vmem:[%s3097 + $0x88] sm:$0xff]
        %v3116 = vld [vmem:[%s3097 + $0x90] sm:$0xff]
        %v3117 = vld [vmem:[%s3097 + $0x98] sm:$0xff]
        %v3118 = vld [vmem:[%s3097 + $0xa0] sm:$0xff]
        %v3119 = vld [vmem:[%s3097 + $0xa8] sm:$0xff]
        %v3120 = vld [vmem:[%s3097 + $0xb0] sm:$0xff]
        %v3121 = vld [vmem:[%s3097 + $0xb8] sm:$0xff]
        %v3122 = vld [vmem:[%s3097 + $0xc0] sm:$0xff]
        %v3129 = vrot.slane %v3066, 1
        %v3130 = vrot.slane %v3068, 1
        %v3131 = vsel %vm574, %v3129, %v3130
        %v3132 = vrot.slane %v3067, 1
        %v3133 = vrot.slane %v3069, 1
        %v3134 = vsel %vm574, %v3132, %v3133
        %v3135 = vrot.slane %v3070, 1
        %v3136 = vsel %vm574, %v3130, %v3135
        %v3137 = vrot.slane %v3071, 1
        %v3138 = vsel %vm574, %v3133, %v3137
        %vm3141 = vcmask 588800
        %v3142 = vsel %vm3141, %v3134, 0
        %v3144 = vsel %vm3141, %v3138, 0
        %3146 = vmatprep.subr.mxu0 0.0
        %3147 = vmatpush1.msra.mxu0 %v3098
        %3148 = vmatprep.subr.mxu0 0.0
        %3149 = vmatpush1.msra.mxu0 %v3099
        %3150 = vmatprep.subr.mxu0 0.0
        %3151 = vmatpush1.msra.mxu0 %v3100
        %3152 = vmatprep.subr.mxu0 0.0
        %3153 = vmatpush1.msra.mxu0 %v3101
        %3154 = vmatprep.subr.mxu0 0.0
        %3155 = vmatpush1.msra.mxu0 %v3102
        %3156 = vmatprep.subr.mxu0 0.0
        %3157 = vmatpush1.msra.mxu0 %v3103
        %3158 = vmatprep.subr.mxu0 0.0
        %3159 = vmatpush1.msra.mxu0 %v3104
        %3160 = vmatprep.subr.mxu0 0.0
        %3161 = vmatpush1.msra.mxu0 %v3105
        %3162 = vmatprep.subr.mxu0 0.0
        %3163 = vmatpush1.msra.mxu0 %v3106
        %3164 = vmatprep.subr.mxu0 0.0
        %3165 = vmatpush1.msra.mxu0 %v3107
        %3166 = vmatprep.subr.mxu0 0.0
        %3167 = vmatpush1.msra.mxu0 %v3108
        %3168 = vmatprep.subr.mxu0 0.0
        %3169 = vmatpush1.msra.mxu0 %v3109
        %3170 = vmatprep.subr.mxu0 0.0
        %3171 = vmatpush1.msra.mxu0 %v3110
        %3172 = vmatprep.subr.mxu0 0.0
        %3173 = vmatpush1.msra.mxu0 %v3111
        %3174 = vmatprep.subr.mxu0 0.0
        %3175 = vmatpush1.msra.mxu0 %v3112
        %3176 = vmatprep.subr.mxu0 0.0
        %3177 = vmatpush1.msra.mxu0 %v3113
        %3178 = vmatprep.subr.mxu0 0.0
        %3179 = vmatpush1.msra.mxu0 %v3114
        %3180 = vmatprep.subr.mxu0 0.0
        %3181 = vmatpush1.msra.mxu0 %v3115
        %3182 = vmatprep.subr.mxu0 0.0
        %3183 = vmatpush1.msra.mxu0 %v3116
        %3184 = vmatprep.subr.mxu0 0.0
        %3185 = vmatpush1.msra.mxu0 %v3117
        %3186 = vmatprep.subr.mxu0 0.0
        %3187 = vmatpush1.msra.mxu0 %v3118
        %3188 = vmatprep.subr.mxu0 0.0
        %3189 = vmatpush1.msra.mxu0 %v3119
        %3190 = vmatprep.subr.mxu0 0.0
        %3191 = vmatpush1.msra.mxu0 %v3120
        %3192 = vmatprep.subr.mxu0 0.0
        %3193 = vmatpush1.msra.mxu0 %v3121
        %3194 = vmatprep.subr.mxu0 0.0
        %3195 = vmatpush1.msra.mxu0 %v3122
        %3196 = vmatprep.subr.mxu0 0.0
        %3197 = vmatpush1.msra.mxu0 0.0
        %3198 = vmatprep.subr.mxu0 0.0
        %3199 = vmatpush1.msra.mxu0 0.0
        %3200 = vmatprep.subr.mxu0 0.0
        %3201 = vmatpush1.msra.mxu0 0.0
        %3202 = vmatprep.subr.mxu0 0.0
        %3203 = vmatpush1.msra.mxu0 0.0
        %3204 = vmatprep.subr.mxu0 0.0
        %3205 = vmatpush1.msra.mxu0 0.0
        %3206 = vmatprep.subr.mxu0 0.0
        %3207 = vmatpush1.msra.mxu0 0.0
        %3208 = vmatprep.subr.mxu0 0.0
        %3209 = vmatpush1.msra.mxu0 0.0
        %3210 = vmatprep.mubr.f32.mxu0 %v3142
        %3211 = vmatmul.mubr.f32.gmra.mrb[0].mxu0 %v3131
        %v3212 = vpop.f32.mrb[0].mxu0
        %v3213 = vadd.f32 0.0, %v3212
        %v3214 = vpop.f32.mrb[0].mxu0
        %3215 = vmatprep.mubr.f32.mxu0 %v3144
        %3216 = vmatmul.mubr.f32.gmra.mrb[0].mxu0 %v3136
        %v3217 = vpop.f32.mrb[0].mxu0
        %v3218 = vadd.f32 0.0, %v3217
        %v3219 = vpop.f32.mrb[0].mxu0
        %3220 = vdwg.mxu0
        %v3221 = vsel %vm3141, %v3067, 0
        %v3223 = vsel %vm3141, %v3069, 0
        %3225 = vmatprep.subr.mxu0 0.0
        %3226 = vmatpush1.msra.mxu0 %v3072
        %3227 = vmatprep.subr.mxu0 0.0
        %3228 = vmatpush1.msra.mxu0 %v3073
        %3229 = vmatprep.subr.mxu0 0.0
        %3230 = vmatpush1.msra.mxu0 %v3074
        %3231 = vmatprep.subr.mxu0 0.0
        %3232 = vmatpush1.msra.mxu0 %v3075
        %3233 = vmatprep.subr.mxu0 0.0
        %3234 = vmatpush1.msra.mxu0 %v3076
        %3235 = vmatprep.subr.mxu0 0.0
        %3236 = vmatpush1.msra.mxu0 %v3077
        %3237 = vmatprep.subr.mxu0 0.0
        %3238 = vmatpush1.msra.mxu0 %v3078
        %3239 = vmatprep.subr.mxu0 0.0
        %3240 = vmatpush1.msra.mxu0 %v3079
        %3241 = vmatprep.subr.mxu0 0.0
        %3242 = vmatpush1.msra.mxu0 %v3080
        %3243 = vmatprep.subr.mxu0 0.0
        %3244 = vmatpush1.msra.mxu0 %v3081
        %3245 = vmatprep.subr.mxu0 0.0
        %3246 = vmatpush1.msra.mxu0 %v3082
        %3247 = vmatprep.subr.mxu0 0.0
        %3248 = vmatpush1.msra.mxu0 %v3083
        %3249 = vmatprep.subr.mxu0 0.0
        %3250 = vmatpush1.msra.mxu0 %v3084
        %3251 = vmatprep.subr.mxu0 0.0
        %3252 = vmatpush1.msra.mxu0 %v3085
        %3253 = vmatprep.subr.mxu0 0.0
        %3254 = vmatpush1.msra.mxu0 %v3086
        %3255 = vmatprep.subr.mxu0 0.0
        %3256 = vmatpush1.msra.mxu0 %v3087
        %3257 = vmatprep.subr.mxu0 0.0
        %3258 = vmatpush1.msra.mxu0 %v3088
        %3259 = vmatprep.subr.mxu0 0.0
        %3260 = vmatpush1.msra.mxu0 %v3089
        %3261 = vmatprep.subr.mxu0 0.0
        %3262 = vmatpush1.msra.mxu0 %v3090
        %3263 = vmatprep.subr.mxu0 0.0
        %3264 = vmatpush1.msra.mxu0 %v3091
        %3265 = vmatprep.subr.mxu0 0.0
        %3266 = vmatpush1.msra.mxu0 %v3092
        %3267 = vmatprep.subr.mxu0 0.0
        %3268 = vmatpush1.msra.mxu0 %v3093
        %3269 = vmatprep.subr.mxu0 0.0
        %3270 = vmatpush1.msra.mxu0 %v3094
        %3271 = vmatprep.subr.mxu0 0.0
        %3272 = vmatpush1.msra.mxu0 %v3095
        %3273 = vmatprep.subr.mxu0 0.0
        %3274 = vmatpush1.msra.mxu0 %v3096
        %3275 = vmatprep.subr.mxu0 0.0
        %3276 = vmatpush1.msra.mxu0 0.0
        %3277 = vmatprep.subr.mxu0 0.0
        %3278 = vmatpush1.msra.mxu0 0.0
        %3279 = vmatprep.subr.mxu0 0.0
        %3280 = vmatpush1.msra.mxu0 0.0
        %3281 = vmatprep.subr.mxu0 0.0
        %3282 = vmatpush1.msra.mxu0 0.0
        %3283 = vmatprep.subr.mxu0 0.0
        %3284 = vmatpush1.msra.mxu0 0.0
        %3285 = vmatprep.subr.mxu0 0.0
        %3286 = vmatpush1.msra.mxu0 0.0
        %3287 = vmatprep.subr.mxu0 0.0
        %3288 = vmatpush1.msra.mxu0 0.0
        %3289 = vmatprep.mubr.f32.mxu0 %v3221
        %3290 = vmatmul.mubr.f32.gmra.mrb[0].mxu0 %v3066
        %v3291 = vpop.f32.mrb[0].mxu0
        %v3292 = vadd.f32 %v3213, %v3291
        %v3293 = vpop.f32.mrb[0].mxu0
        %3294 = vmatprep.mubr.f32.mxu0 %v3223
        %3295 = vmatmul.mubr.f32.gmra.mrb[0].mxu0 %v3068
        %v3296 = vpop.f32.mrb[0].mxu0
        %v3297 = vadd.f32 %v3218, %v3296
        %v3298 = vpop.f32.mrb[0].mxu0
        %3299 = vdwg.mxu0
        %s3300 = scalar_lea.vmem [#allocation10], 1200
        %v3301 = vld [vmem:[%s3300] sm:$0xff]
        %v3302 = vld [vmem:[%s3300 + $0x8] sm:$0xff]
        %v3303 = vld [vmem:[%s3300 + $0x10] sm:$0xff]
        %v3304 = vld [vmem:[%s3300 + $0x18] sm:$0xff]
        %v3305 = vld [vmem:[%s3300 + $0x20] sm:$0xff]
        %v3306 = vld [vmem:[%s3300 + $0x28] sm:$0xff]
        %v3307 = vld [vmem:[%s3300 + $0x30] sm:$0xff]
        %v3308 = vld [vmem:[%s3300 + $0x38] sm:$0xff]
        %v3309 = vld [vmem:[%s3300 + $0x40] sm:$0xff]
        %v3310 = vld [vmem:[%s3300 + $0x48] sm:$0xff]
        %v3311 = vld [vmem:[%s3300 + $0x50] sm:$0xff]
        %v3312 = vld [vmem:[%s3300 + $0x58] sm:$0xff]
        %v3313 = vld [vmem:[%s3300 + $0x60] sm:$0xff]
        %v3314 = vld [vmem:[%s3300 + $0x68] sm:$0xff]
        %v3315 = vld [vmem:[%s3300 + $0x70] sm:$0xff]
        %v3316 = vld [vmem:[%s3300 + $0x78] sm:$0xff]
        %v3317 = vld [vmem:[%s3300 + $0x80] sm:$0xff]
        %v3318 = vld [vmem:[%s3300 + $0x88] sm:$0xff]
        %v3319 = vld [vmem:[%s3300 + $0x90] sm:$0xff]
        %v3320 = vld [vmem:[%s3300 + $0x98] sm:$0xff]
        %v3321 = vld [vmem:[%s3300 + $0xa0] sm:$0xff]
        %v3322 = vld [vmem:[%s3300 + $0xa8] sm:$0xff]
        %v3323 = vld [vmem:[%s3300 + $0xb0] sm:$0xff]
        %v3324 = vld [vmem:[%s3300 + $0xb8] sm:$0xff]
        %v3325 = vld [vmem:[%s3300 + $0xc0] sm:$0xff]
        %v3326 = vrot.slane %v3066, 2
        %v3327 = vrot.slane %v3068, 2
        %v3328 = vsel %vm866, %v3326, %v3327
        %v3329 = vrot.slane %v3067, 2
        %v3330 = vrot.slane %v3069, 2
        %v3331 = vsel %vm866, %v3329, %v3330
        %v3332 = vrot.slane %v3070, 2
        %v3333 = vsel %vm866, %v3327, %v3332
        %v3334 = vrot.slane %v3071, 2
        %v3335 = vsel %vm866, %v3330, %v3334
        %v3338 = vsel %vm3141, %v3331, 0
        %v3340 = vsel %vm3141, %v3335, 0
        %3342 = vmatprep.subr.mxu0 0.0
        %3343 = vmatpush1.msra.mxu0 %v3301
        %3344 = vmatprep.subr.mxu0 0.0
        %3345 = vmatpush1.msra.mxu0 %v3302
        %3346 = vmatprep.subr.mxu0 0.0
        %3347 = vmatpush1.msra.mxu0 %v3303
        %3348 = vmatprep.subr.mxu0 0.0
        %3349 = vmatpush1.msra.mxu0 %v3304
        %3350 = vmatprep.subr.mxu0 0.0
        %3351 = vmatpush1.msra.mxu0 %v3305
        %3352 = vmatprep.subr.mxu0 0.0
        %3353 = vmatpush1.msra.mxu0 %v3306
        %3354 = vmatprep.subr.mxu0 0.0
        %3355 = vmatpush1.msra.mxu0 %v3307
        %3356 = vmatprep.subr.mxu0 0.0
        %3357 = vmatpush1.msra.mxu0 %v3308
        %3358 = vmatprep.subr.mxu0 0.0
        %3359 = vmatpush1.msra.mxu0 %v3309
        %3360 = vmatprep.subr.mxu0 0.0
        %3361 = vmatpush1.msra.mxu0 %v3310
        %3362 = vmatprep.subr.mxu0 0.0
        %3363 = vmatpush1.msra.mxu0 %v3311
        %3364 = vmatprep.subr.mxu0 0.0
        %3365 = vmatpush1.msra.mxu0 %v3312
        %3366 = vmatprep.subr.mxu0 0.0
        %3367 = vmatpush1.msra.mxu0 %v3313
        %3368 = vmatprep.subr.mxu0 0.0
        %3369 = vmatpush1.msra.mxu0 %v3314
        %3370 = vmatprep.subr.mxu0 0.0
        %3371 = vmatpush1.msra.mxu0 %v3315
        %3372 = vmatprep.subr.mxu0 0.0
        %3373 = vmatpush1.msra.mxu0 %v3316
        %3374 = vmatprep.subr.mxu0 0.0
        %3375 = vmatpush1.msra.mxu0 %v3317
        %3376 = vmatprep.subr.mxu0 0.0
        %3377 = vmatpush1.msra.mxu0 %v3318
        %3378 = vmatprep.subr.mxu0 0.0
        %3379 = vmatpush1.msra.mxu0 %v3319
        %3380 = vmatprep.subr.mxu0 0.0
        %3381 = vmatpush1.msra.mxu0 %v3320
        %3382 = vmatprep.subr.mxu0 0.0
        %3383 = vmatpush1.msra.mxu0 %v3321
        %3384 = vmatprep.subr.mxu0 0.0
        %3385 = vmatpush1.msra.mxu0 %v3322
        %3386 = vmatprep.subr.mxu0 0.0
        %3387 = vmatpush1.msra.mxu0 %v3323
        %3388 = vmatprep.subr.mxu0 0.0
        %3389 = vmatpush1.msra.mxu0 %v3324
        %3390 = vmatprep.subr.mxu0 0.0
        %3391 = vmatpush1.msra.mxu0 %v3325
        %3392 = vmatprep.subr.mxu0 0.0
        %3393 = vmatpush1.msra.mxu0 0.0
        %3394 = vmatprep.subr.mxu0 0.0
        %3395 = vmatpush1.msra.mxu0 0.0
        %3396 = vmatprep.subr.mxu0 0.0
        %3397 = vmatpush1.msra.mxu0 0.0
        %3398 = vmatprep.subr.mxu0 0.0
        %3399 = vmatpush1.msra.mxu0 0.0
        %3400 = vmatprep.subr.mxu0 0.0
        %3401 = vmatpush1.msra.mxu0 0.0
        %3402 = vmatprep.subr.mxu0 0.0
        %3403 = vmatpush1.msra.mxu0 0.0
        %3404 = vmatprep.subr.mxu0 0.0
        %3405 = vmatpush1.msra.mxu0 0.0
        %3406 = vmatprep.mubr.f32.mxu0 %v3338
        %3407 = vmatmul.mubr.f32.gmra.mrb[0].mxu0 %v3328
        %v3408 = vpop.f32.mrb[0].mxu0
        %v3409 = vadd.f32 0.0, %v3408
        %v3410 = vpop.f32.mrb[0].mxu0
        %3411 = vmatprep.mubr.f32.mxu0 %v3340
        %3412 = vmatmul.mubr.f32.gmra.mrb[0].mxu0 %v3333
        %v3413 = vpop.f32.mrb[0].mxu0
        %v3414 = vadd.f32 0.0, %v3413
        %v3415 = vpop.f32.mrb[0].mxu0
        %3416 = vdwg.mxu0
        %v3417 = vadd.f32 %v3292, %v3409
        %v3418 = vadd.f32 %v3297, %v3414
        %s3419 = scalar_lea.vmem [#allocation10], 1800
        %v3420 = vld [vmem:[%s3419] sm:$0xff]
        %v3421 = vld [vmem:[%s3419 + $0x8] sm:$0xff]
        %v3422 = vld [vmem:[%s3419 + $0x10] sm:$0xff]
        %v3423 = vld [vmem:[%s3419 + $0x18] sm:$0xff]
        %v3424 = vld [vmem:[%s3419 + $0x20] sm:$0xff]
        %v3425 = vld [vmem:[%s3419 + $0x28] sm:$0xff]
        %v3426 = vld [vmem:[%s3419 + $0x30] sm:$0xff]
        %v3427 = vld [vmem:[%s3419 + $0x38] sm:$0xff]
        %v3428 = vld [vmem:[%s3419 + $0x40] sm:$0xff]
        %v3429 = vld [vmem:[%s3419 + $0x48] sm:$0xff]
        %v3430 = vld [vmem:[%s3419 + $0x50] sm:$0xff]
        %v3431 = vld [vmem:[%s3419 + $0x58] sm:$0xff]
        %v3432 = vld [vmem:[%s3419 + $0x60] sm:$0xff]
        %v3433 = vld [vmem:[%s3419 + $0x68] sm:$0xff]
        %v3434 = vld [vmem:[%s3419 + $0x70] sm:$0xff]
        %v3435 = vld [vmem:[%s3419 + $0x78] sm:$0xff]
        %v3436 = vld [vmem:[%s3419 + $0x80] sm:$0xff]
        %v3437 = vld [vmem:[%s3419 + $0x88] sm:$0xff]
        %v3438 = vld [vmem:[%s3419 + $0x90] sm:$0xff]
        %v3439 = vld [vmem:[%s3419 + $0x98] sm:$0xff]
        %v3440 = vld [vmem:[%s3419 + $0xa0] sm:$0xff]
        %v3441 = vld [vmem:[%s3419 + $0xa8] sm:$0xff]
        %v3442 = vld [vmem:[%s3419 + $0xb0] sm:$0xff]
        %v3443 = vld [vmem:[%s3419 + $0xb8] sm:$0xff]
        %v3444 = vld [vmem:[%s3419 + $0xc0] sm:$0xff]
        %v3445 = vrot.slane %v3066, 3
        %v3446 = vrot.slane %v3068, 3
        %v3447 = vsel %vm1044, %v3445, %v3446
        %v3448 = vrot.slane %v3067, 3
        %v3449 = vrot.slane %v3069, 3
        %v3450 = vsel %vm1044, %v3448, %v3449
        %v3451 = vrot.slane %v3070, 3
        %v3452 = vsel %vm1044, %v3446, %v3451
        %v3453 = vrot.slane %v3071, 3
        %v3454 = vsel %vm1044, %v3449, %v3453
        %v3457 = vsel %vm3141, %v3450, 0
        %v3459 = vsel %vm3141, %v3454, 0
        %3461 = vmatprep.subr.mxu0 0.0
        %3462 = vmatpush1.msra.mxu0 %v3420
        %3463 = vmatprep.subr.mxu0 0.0
        %3464 = vmatpush1.msra.mxu0 %v3421
        %3465 = vmatprep.subr.mxu0 0.0
        %3466 = vmatpush1.msra.mxu0 %v3422
        %3467 = vmatprep.subr.mxu0 0.0
        %3468 = vmatpush1.msra.mxu0 %v3423
        %3469 = vmatprep.subr.mxu0 0.0
        %3470 = vmatpush1.msra.mxu0 %v3424
        %3471 = vmatprep.subr.mxu0 0.0
        %3472 = vmatpush1.msra.mxu0 %v3425
        %3473 = vmatprep.subr.mxu0 0.0
        %3474 = vmatpush1.msra.mxu0 %v3426
        %3475 = vmatprep.subr.mxu0 0.0
        %3476 = vmatpush1.msra.mxu0 %v3427
        %3477 = vmatprep.subr.mxu0 0.0
        %3478 = vmatpush1.msra.mxu0 %v3428
        %3479 = vmatprep.subr.mxu0 0.0
        %3480 = vmatpush1.msra.mxu0 %v3429
        %3481 = vmatprep.subr.mxu0 0.0
        %3482 = vmatpush1.msra.mxu0 %v3430
        %3483 = vmatprep.subr.mxu0 0.0
        %3484 = vmatpush1.msra.mxu0 %v3431
        %3485 = vmatprep.subr.mxu0 0.0
        %3486 = vmatpush1.msra.mxu0 %v3432
        %3487 = vmatprep.subr.mxu0 0.0
        %3488 = vmatpush1.msra.mxu0 %v3433
        %3489 = vmatprep.subr.mxu0 0.0
        %3490 = vmatpush1.msra.mxu0 %v3434
        %3491 = vmatprep.subr.mxu0 0.0
        %3492 = vmatpush1.msra.mxu0 %v3435
        %3493 = vmatprep.subr.mxu0 0.0
        %3494 = vmatpush1.msra.mxu0 %v3436
        %3495 = vmatprep.subr.mxu0 0.0
        %3496 = vmatpush1.msra.mxu0 %v3437
        %3497 = vmatprep.subr.mxu0 0.0
        %3498 = vmatpush1.msra.mxu0 %v3438
        %3499 = vmatprep.subr.mxu0 0.0
        %3500 = vmatpush1.msra.mxu0 %v3439
        %3501 = vmatprep.subr.mxu0 0.0
        %3502 = vmatpush1.msra.mxu0 %v3440
        %3503 = vmatprep.subr.mxu0 0.0
        %3504 = vmatpush1.msra.mxu0 %v3441
        %3505 = vmatprep.subr.mxu0 0.0
        %3506 = vmatpush1.msra.mxu0 %v3442
        %3507 = vmatprep.subr.mxu0 0.0
        %3508 = vmatpush1.msra.mxu0 %v3443
        %3509 = vmatprep.subr.mxu0 0.0
        %3510 = vmatpush1.msra.mxu0 %v3444
        %3511 = vmatprep.subr.mxu0 0.0
        %3512 = vmatpush1.msra.mxu0 0.0
        %3513 = vmatprep.subr.mxu0 0.0
        %3514 = vmatpush1.msra.mxu0 0.0
        %3515 = vmatprep.subr.mxu0 0.0
        %3516 = vmatpush1.msra.mxu0 0.0
        %3517 = vmatprep.subr.mxu0 0.0
        %3518 = vmatpush1.msra.mxu0 0.0
        %3519 = vmatprep.subr.mxu0 0.0
        %3520 = vmatpush1.msra.mxu0 0.0
        %3521 = vmatprep.subr.mxu0 0.0
        %3522 = vmatpush1.msra.mxu0 0.0
        %3523 = vmatprep.subr.mxu0 0.0
        %3524 = vmatpush1.msra.mxu0 0.0
        %3525 = vmatprep.mubr.f32.mxu0 %v3457
        %3526 = vmatmul.mubr.f32.gmra.mrb[0].mxu0 %v3447
        %v3527 = vpop.f32.mrb[0].mxu0
        %v3528 = vadd.f32 0.0, %v3527
        %v3529 = vpop.f32.mrb[0].mxu0
        %3530 = vmatprep.mubr.f32.mxu0 %v3459
        %3531 = vmatmul.mubr.f32.gmra.mrb[0].mxu0 %v3452
        %v3532 = vpop.f32.mrb[0].mxu0
        %v3533 = vadd.f32 0.0, %v3532
        %v3534 = vpop.f32.mrb[0].mxu0
        %3535 = vdwg.mxu0
        %v3536 = vadd.f32 %v3417, %v3528
        %v3537 = vadd.f32 %v3418, %v3533
        %s3538 = scalar_lea.vmem [#allocation10], 2400
        %v3539 = vld [vmem:[%s3538] sm:$0xff]
        %v3540 = vld [vmem:[%s3538 + $0x8] sm:$0xff]
        %v3541 = vld [vmem:[%s3538 + $0x10] sm:$0xff]
        %v3542 = vld [vmem:[%s3538 + $0x18] sm:$0xff]
        %v3543 = vld [vmem:[%s3538 + $0x20] sm:$0xff]
        %v3544 = vld [vmem:[%s3538 + $0x28] sm:$0xff]
        %v3545 = vld [vmem:[%s3538 + $0x30] sm:$0xff]
        %v3546 = vld [vmem:[%s3538 + $0x38] sm:$0xff]
        %v3547 = vld [vmem:[%s3538 + $0x40] sm:$0xff]
        %v3548 = vld [vmem:[%s3538 + $0x48] sm:$0xff]
        %v3549 = vld [vmem:[%s3538 + $0x50] sm:$0xff]
        %v3550 = vld [vmem:[%s3538 + $0x58] sm:$0xff]
        %v3551 = vld [vmem:[%s3538 + $0x60] sm:$0xff]
        %v3552 = vld [vmem:[%s3538 + $0x68] sm:$0xff]
        %v3553 = vld [vmem:[%s3538 + $0x70] sm:$0xff]
        %v3554 = vld [vmem:[%s3538 + $0x78] sm:$0xff]
        %v3555 = vld [vmem:[%s3538 + $0x80] sm:$0xff]
        %v3556 = vld [vmem:[%s3538 + $0x88] sm:$0xff]
        %v3557 = vld [vmem:[%s3538 + $0x90] sm:$0xff]
        %v3558 = vld [vmem:[%s3538 + $0x98] sm:$0xff]
        %v3559 = vld [vmem:[%s3538 + $0xa0] sm:$0xff]
        %v3560 = vld [vmem:[%s3538 + $0xa8] sm:$0xff]
        %v3561 = vld [vmem:[%s3538 + $0xb0] sm:$0xff]
        %v3562 = vld [vmem:[%s3538 + $0xb8] sm:$0xff]
        %v3563 = vld [vmem:[%s3538 + $0xc0] sm:$0xff]
        %v3564 = vrot.slane %v3066, 4
        %v3565 = vrot.slane %v3068, 4
        %v3566 = vsel %vm1222, %v3564, %v3565
        %v3567 = vrot.slane %v3067, 4
        %v3568 = vrot.slane %v3069, 4
        %v3569 = vsel %vm1222, %v3567, %v3568
        %v3570 = vrot.slane %v3070, 4
        %v3571 = vsel %vm1222, %v3565, %v3570
        %v3572 = vrot.slane %v3071, 4
        %v3573 = vsel %vm1222, %v3568, %v3572
        %v3576 = vsel %vm3141, %v3569, 0
        %v3578 = vsel %vm3141, %v3573, 0
        %3580 = vmatprep.subr.mxu0 0.0
        %3581 = vmatpush1.msra.mxu0 %v3539
        %3582 = vmatprep.subr.mxu0 0.0
        %3583 = vmatpush1.msra.mxu0 %v3540
        %3584 = vmatprep.subr.mxu0 0.0
        %3585 = vmatpush1.msra.mxu0 %v3541
        %3586 = vmatprep.subr.mxu0 0.0
        %3587 = vmatpush1.msra.mxu0 %v3542
        %3588 = vmatprep.subr.mxu0 0.0
        %3589 = vmatpush1.msra.mxu0 %v3543
        %3590 = vmatprep.subr.mxu0 0.0
        %3591 = vmatpush1.msra.mxu0 %v3544
        %3592 = vmatprep.subr.mxu0 0.0
        %3593 = vmatpush1.msra.mxu0 %v3545
        %3594 = vmatprep.subr.mxu0 0.0
        %3595 = vmatpush1.msra.mxu0 %v3546
        %3596 = vmatprep.subr.mxu0 0.0
        %3597 = vmatpush1.msra.mxu0 %v3547
        %3598 = vmatprep.subr.mxu0 0.0
        %3599 = vmatpush1.msra.mxu0 %v3548
        %3600 = vmatprep.subr.mxu0 0.0
        %3601 = vmatpush1.msra.mxu0 %v3549
        %3602 = vmatprep.subr.mxu0 0.0
        %3603 = vmatpush1.msra.mxu0 %v3550
        %3604 = vmatprep.subr.mxu0 0.0
        %3605 = vmatpush1.msra.mxu0 %v3551
        %3606 = vmatprep.subr.mxu0 0.0
        %3607 = vmatpush1.msra.mxu0 %v3552
        %3608 = vmatprep.subr.mxu0 0.0
        %3609 = vmatpush1.msra.mxu0 %v3553
        %3610 = vmatprep.subr.mxu0 0.0
        %3611 = vmatpush1.msra.mxu0 %v3554
        %3612 = vmatprep.subr.mxu0 0.0
        %3613 = vmatpush1.msra.mxu0 %v3555
        %3614 = vmatprep.subr.mxu0 0.0
        %3615 = vmatpush1.msra.mxu0 %v3556
        %3616 = vmatprep.subr.mxu0 0.0
        %3617 = vmatpush1.msra.mxu0 %v3557
        %3618 = vmatprep.subr.mxu0 0.0
        %3619 = vmatpush1.msra.mxu0 %v3558
        %3620 = vmatprep.subr.mxu0 0.0
        %3621 = vmatpush1.msra.mxu0 %v3559
        %3622 = vmatprep.subr.mxu0 0.0
        %3623 = vmatpush1.msra.mxu0 %v3560
        %3624 = vmatprep.subr.mxu0 0.0
        %3625 = vmatpush1.msra.mxu0 %v3561
        %3626 = vmatprep.subr.mxu0 0.0
        %3627 = vmatpush1.msra.mxu0 %v3562
        %3628 = vmatprep.subr.mxu0 0.0
        %3629 = vmatpush1.msra.mxu0 %v3563
        %3630 = vmatprep.subr.mxu0 0.0
        %3631 = vmatpush1.msra.mxu0 0.0
        %3632 = vmatprep.subr.mxu0 0.0
        %3633 = vmatpush1.msra.mxu0 0.0
        %3634 = vmatprep.subr.mxu0 0.0
        %3635 = vmatpush1.msra.mxu0 0.0
        %3636 = vmatprep.subr.mxu0 0.0
        %3637 = vmatpush1.msra.mxu0 0.0
        %3638 = vmatprep.subr.mxu0 0.0
        %3639 = vmatpush1.msra.mxu0 0.0
        %3640 = vmatprep.subr.mxu0 0.0
        %3641 = vmatpush1.msra.mxu0 0.0
        %3642 = vmatprep.subr.mxu0 0.0
        %3643 = vmatpush1.msra.mxu0 0.0
        %3644 = vmatprep.mubr.f32.mxu0 %v3576
        %3645 = vmatmul.mubr.f32.gmra.mrb[0].mxu0 %v3566
        %v3646 = vpop.f32.mrb[0].mxu0
        %v3647 = vadd.f32 0.0, %v3646
        %v3648 = vpop.f32.mrb[0].mxu0
        %3649 = vmatprep.mubr.f32.mxu0 %v3578
        %3650 = vmatmul.mubr.f32.gmra.mrb[0].mxu0 %v3571
        %v3651 = vpop.f32.mrb[0].mxu0
        %v3652 = vadd.f32 0.0, %v3651
        %v3653 = vpop.f32.mrb[0].mxu0
        %3654 = vdwg.mxu0
        %v3655 = vadd.f32 %v3536, %v3647
        %v3656 = vadd.f32 %v3537, %v3652
        %s3657 = scalar_lea.vmem [#allocation10], 200
        %v3658 = vld [vmem:[%s3657] sm:$0xff]
        %v3659 = vld [vmem:[%s3657 + $0x8] sm:$0xff]
        %v3660 = vld [vmem:[%s3657 + $0x10] sm:$0xff]
        %v3661 = vld [vmem:[%s3657 + $0x18] sm:$0xff]
        %v3662 = vld [vmem:[%s3657 + $0x20] sm:$0xff]
        %v3663 = vld [vmem:[%s3657 + $0x28] sm:$0xff]
        %v3664 = vld [vmem:[%s3657 + $0x30] sm:$0xff]
        %v3665 = vld [vmem:[%s3657 + $0x38] sm:$0xff]
        %v3666 = vld [vmem:[%s3657 + $0x40] sm:$0xff]
        %v3667 = vld [vmem:[%s3657 + $0x48] sm:$0xff]
        %v3668 = vld [vmem:[%s3657 + $0x50] sm:$0xff]
        %v3669 = vld [vmem:[%s3657 + $0x58] sm:$0xff]
        %v3670 = vld [vmem:[%s3657 + $0x60] sm:$0xff]
        %v3671 = vld [vmem:[%s3657 + $0x68] sm:$0xff]
        %v3672 = vld [vmem:[%s3657 + $0x70] sm:$0xff]
        %v3673 = vld [vmem:[%s3657 + $0x78] sm:$0xff]
        %v3674 = vld [vmem:[%s3657 + $0x80] sm:$0xff]
        %v3675 = vld [vmem:[%s3657 + $0x88] sm:$0xff]
        %v3676 = vld [vmem:[%s3657 + $0x90] sm:$0xff]
        %v3677 = vld [vmem:[%s3657 + $0x98] sm:$0xff]
        %v3678 = vld [vmem:[%s3657 + $0xa0] sm:$0xff]
        %v3679 = vld [vmem:[%s3657 + $0xa8] sm:$0xff]
        %v3680 = vld [vmem:[%s3657 + $0xb0] sm:$0xff]
        %v3681 = vld [vmem:[%s3657 + $0xb8] sm:$0xff]
        %v3682 = vld [vmem:[%s3657 + $0xc0] sm:$0xff]
        %s3683 = scalar_lea.vmem [#allocation10], 800
        %v3684 = vld [vmem:[%s3683] sm:$0xff]
        %v3685 = vld [vmem:[%s3683 + $0x8] sm:$0xff]
        %v3686 = vld [vmem:[%s3683 + $0x10] sm:$0xff]
        %v3687 = vld [vmem:[%s3683 + $0x18] sm:$0xff]
        %v3688 = vld [vmem:[%s3683 + $0x20] sm:$0xff]
        %v3689 = vld [vmem:[%s3683 + $0x28] sm:$0xff]
        %v3690 = vld [vmem:[%s3683 + $0x30] sm:$0xff]
        %v3691 = vld [vmem:[%s3683 + $0x38] sm:$0xff]
        %v3692 = vld [vmem:[%s3683 + $0x40] sm:$0xff]
        %v3693 = vld [vmem:[%s3683 + $0x48] sm:$0xff]
        %v3694 = vld [vmem:[%s3683 + $0x50] sm:$0xff]
        %v3695 = vld [vmem:[%s3683 + $0x58] sm:$0xff]
        %v3696 = vld [vmem:[%s3683 + $0x60] sm:$0xff]
        %v3697 = vld [vmem:[%s3683 + $0x68] sm:$0xff]
        %v3698 = vld [vmem:[%s3683 + $0x70] sm:$0xff]
        %v3699 = vld [vmem:[%s3683 + $0x78] sm:$0xff]
        %v3700 = vld [vmem:[%s3683 + $0x80] sm:$0xff]
        %v3701 = vld [vmem:[%s3683 + $0x88] sm:$0xff]
        %v3702 = vld [vmem:[%s3683 + $0x90] sm:$0xff]
        %v3703 = vld [vmem:[%s3683 + $0x98] sm:$0xff]
        %v3704 = vld [vmem:[%s3683 + $0xa0] sm:$0xff]
        %v3705 = vld [vmem:[%s3683 + $0xa8] sm:$0xff]
        %v3706 = vld [vmem:[%s3683 + $0xb0] sm:$0xff]
        %v3707 = vld [vmem:[%s3683 + $0xb8] sm:$0xff]
        %v3708 = vld [vmem:[%s3683 + $0xc0] sm:$0xff]
        %3709 = vmatprep.subr.mxu0 0.0
        %3710 = vmatpush1.msra.mxu0 %v3684
        %3711 = vmatprep.subr.mxu0 0.0
        %3712 = vmatpush1.msra.mxu0 %v3685
        %3713 = vmatprep.subr.mxu0 0.0
        %3714 = vmatpush1.msra.mxu0 %v3686
        %3715 = vmatprep.subr.mxu0 0.0
        %3716 = vmatpush1.msra.mxu0 %v3687
        %3717 = vmatprep.subr.mxu0 0.0
        %3718 = vmatpush1.msra.mxu0 %v3688
        %3719 = vmatprep.subr.mxu0 0.0
        %3720 = vmatpush1.msra.mxu0 %v3689
        %3721 = vmatprep.subr.mxu0 0.0
        %3722 = vmatpush1.msra.mxu0 %v3690
        %3723 = vmatprep.subr.mxu0 0.0
        %3724 = vmatpush1.msra.mxu0 %v3691
        %3725 = vmatprep.subr.mxu0 0.0
        %3726 = vmatpush1.msra.mxu0 %v3692
        %3727 = vmatprep.subr.mxu0 0.0
        %3728 = vmatpush1.msra.mxu0 %v3693
        %3729 = vmatprep.subr.mxu0 0.0
        %3730 = vmatpush1.msra.mxu0 %v3694
        %3731 = vmatprep.subr.mxu0 0.0
        %3732 = vmatpush1.msra.mxu0 %v3695
        %3733 = vmatprep.subr.mxu0 0.0
        %3734 = vmatpush1.msra.mxu0 %v3696
        %3735 = vmatprep.subr.mxu0 0.0
        %3736 = vmatpush1.msra.mxu0 %v3697
        %3737 = vmatprep.subr.mxu0 0.0
        %3738 = vmatpush1.msra.mxu0 %v3698
        %3739 = vmatprep.subr.mxu0 0.0
        %3740 = vmatpush1.msra.mxu0 %v3699
        %3741 = vmatprep.subr.mxu0 0.0
        %3742 = vmatpush1.msra.mxu0 %v3700
        %3743 = vmatprep.subr.mxu0 0.0
        %3744 = vmatpush1.msra.mxu0 %v3701
        %3745 = vmatprep.subr.mxu0 0.0
        %3746 = vmatpush1.msra.mxu0 %v3702
        %3747 = vmatprep.subr.mxu0 0.0
        %3748 = vmatpush1.msra.mxu0 %v3703
        %3749 = vmatprep.subr.mxu0 0.0
        %3750 = vmatpush1.msra.mxu0 %v3704
        %3751 = vmatprep.subr.mxu0 0.0
        %3752 = vmatpush1.msra.mxu0 %v3705
        %3753 = vmatprep.subr.mxu0 0.0
        %3754 = vmatpush1.msra.mxu0 %v3706
        %3755 = vmatprep.subr.mxu0 0.0
        %3756 = vmatpush1.msra.mxu0 %v3707
        %3757 = vmatprep.subr.mxu0 0.0
        %3758 = vmatpush1.msra.mxu0 %v3708
        %3759 = vmatprep.subr.mxu0 0.0
        %3760 = vmatpush1.msra.mxu0 0.0
        %3761 = vmatprep.subr.mxu0 0.0
        %3762 = vmatpush1.msra.mxu0 0.0
        %3763 = vmatprep.subr.mxu0 0.0
        %3764 = vmatpush1.msra.mxu0 0.0
        %3765 = vmatprep.subr.mxu0 0.0
        %3766 = vmatpush1.msra.mxu0 0.0
        %3767 = vmatprep.subr.mxu0 0.0
        %3768 = vmatpush1.msra.mxu0 0.0
        %3769 = vmatprep.subr.mxu0 0.0
        %3770 = vmatpush1.msra.mxu0 0.0
        %3771 = vmatprep.subr.mxu0 0.0
        %3772 = vmatpush1.msra.mxu0 0.0
        %3773 = vmatprep.mubr.f32.mxu0 %v3142
        %3774 = vmatmul.mubr.f32.gmra.mrb[0].mxu0 %v3131
        %v3775 = vpop.f32.mrb[0].mxu0
        %v3776 = vadd.f32 0.0, %v3775
        %v3777 = vpop.f32.mrb[0].mxu0
        %3778 = vmatprep.mubr.f32.mxu0 %v3144
        %3779 = vmatmul.mubr.f32.gmra.mrb[0].mxu0 %v3136
        %v3780 = vpop.f32.mrb[0].mxu0
        %v3781 = vadd.f32 0.0, %v3780
        %v3782 = vpop.f32.mrb[0].mxu0
        %3783 = vdwg.mxu0
        %3784 = vmatprep.subr.mxu0 0.0
        %3785 = vmatpush1.msra.mxu0 %v3658
        %3786 = vmatprep.subr.mxu0 0.0
        %3787 = vmatpush1.msra.mxu0 %v3659
        %3788 = vmatprep.subr.mxu0 0.0
        %3789 = vmatpush1.msra.mxu0 %v3660
        %3790 = vmatprep.subr.mxu0 0.0
        %3791 = vmatpush1.msra.mxu0 %v3661
        %3792 = vmatprep.subr.mxu0 0.0
        %3793 = vmatpush1.msra.mxu0 %v3662
        %3794 = vmatprep.subr.mxu0 0.0
        %3795 = vmatpush1.msra.mxu0 %v3663
        %3796 = vmatprep.subr.mxu0 0.0
        %3797 = vmatpush1.msra.mxu0 %v3664
        %3798 = vmatprep.subr.mxu0 0.0
        %3799 = vmatpush1.msra.mxu0 %v3665
        %3800 = vmatprep.subr.mxu0 0.0
        %3801 = vmatpush1.msra.mxu0 %v3666
        %3802 = vmatprep.subr.mxu0 0.0
        %3803 = vmatpush1.msra.mxu0 %v3667
        %3804 = vmatprep.subr.mxu0 0.0
        %3805 = vmatpush1.msra.mxu0 %v3668
        %3806 = vmatprep.subr.mxu0 0.0
        %3807 = vmatpush1.msra.mxu0 %v3669
        %3808 = vmatprep.subr.mxu0 0.0
        %3809 = vmatpush1.msra.mxu0 %v3670
        %3810 = vmatprep.subr.mxu0 0.0
        %3811 = vmatpush1.msra.mxu0 %v3671
        %3812 = vmatprep.subr.mxu0 0.0
        %3813 = vmatpush1.msra.mxu0 %v3672
        %3814 = vmatprep.subr.mxu0 0.0
        %3815 = vmatpush1.msra.mxu0 %v3673
        %3816 = vmatprep.subr.mxu0 0.0
        %3817 = vmatpush1.msra.mxu0 %v3674
        %3818 = vmatprep.subr.mxu0 0.0
        %3819 = vmatpush1.msra.mxu0 %v3675
        %3820 = vmatprep.subr.mxu0 0.0
        %3821 = vmatpush1.msra.mxu0 %v3676
        %3822 = vmatprep.subr.mxu0 0.0
        %3823 = vmatpush1.msra.mxu0 %v3677
        %3824 = vmatprep.subr.mxu0 0.0
        %3825 = vmatpush1.msra.mxu0 %v3678
        %3826 = vmatprep.subr.mxu0 0.0
        %3827 = vmatpush1.msra.mxu0 %v3679
        %3828 = vmatprep.subr.mxu0 0.0
        %3829 = vmatpush1.msra.mxu0 %v3680
        %3830 = vmatprep.subr.mxu0 0.0
        %3831 = vmatpush1.msra.mxu0 %v3681
        %3832 = vmatprep.subr.mxu0 0.0
        %3833 = vmatpush1.msra.mxu0 %v3682
        %3834 = vmatprep.subr.mxu0 0.0
        %3835 = vmatpush1.msra.mxu0 0.0
        %3836 = vmatprep.subr.mxu0 0.0
        %3837 = vmatpush1.msra.mxu0 0.0
        %3838 = vmatprep.subr.mxu0 0.0
        %3839 = vmatpush1.msra.mxu0 0.0
        %3840 = vmatprep.subr.mxu0 0.0
        %3841 = vmatpush1.msra.mxu0 0.0
        %3842 = vmatprep.subr.mxu0 0.0
        %3843 = vmatpush1.msra.mxu0 0.0
        %3844 = vmatprep.subr.mxu0 0.0
        %3845 = vmatpush1.msra.mxu0 0.0
        %3846 = vmatprep.subr.mxu0 0.0
        %3847 = vmatpush1.msra.mxu0 0.0
        %3848 = vmatprep.mubr.f32.mxu0 %v3221
        %3849 = vmatmul.mubr.f32.gmra.mrb[0].mxu0 %v3066
        %v3850 = vpop.f32.mrb[0].mxu0
        %v3851 = vadd.f32 %v3776, %v3850
        %v3852 = vpop.f32.mrb[0].mxu0
        %3853 = vmatprep.mubr.f32.mxu0 %v3223
        %3854 = vmatmul.mubr.f32.gmra.mrb[0].mxu0 %v3068
        %v3855 = vpop.f32.mrb[0].mxu0
        %v3856 = vadd.f32 %v3781, %v3855
        %v3857 = vpop.f32.mrb[0].mxu0
        %3858 = vdwg.mxu0
        %s3859 = scalar_lea.vmem [#allocation10], 1400
        %v3860 = vld [vmem:[%s3859] sm:$0xff]
        %v3861 = vld [vmem:[%s3859 + $0x8] sm:$0xff]
        %v3862 = vld [vmem:[%s3859 + $0x10] sm:$0xff]
        %v3863 = vld [vmem:[%s3859 + $0x18] sm:$0xff]
        %v3864 = vld [vmem:[%s3859 + $0x20] sm:$0xff]
        %v3865 = vld [vmem:[%s3859 + $0x28] sm:$0xff]
        %v3866 = vld [vmem:[%s3859 + $0x30] sm:$0xff]
        %v3867 = vld [vmem:[%s3859 + $0x38] sm:$0xff]
        %v3868 = vld [vmem:[%s3859 + $0x40] sm:$0xff]
        %v3869 = vld [vmem:[%s3859 + $0x48] sm:$0xff]
        %v3870 = vld [vmem:[%s3859 + $0x50] sm:$0xff]
        %v3871 = vld [vmem:[%s3859 + $0x58] sm:$0xff]
        %v3872 = vld [vmem:[%s3859 + $0x60] sm:$0xff]
        %v3873 = vld [vmem:[%s3859 + $0x68] sm:$0xff]
        %v3874 = vld [vmem:[%s3859 + $0x70] sm:$0xff]
        %v3875 = vld [vmem:[%s3859 + $0x78] sm:$0xff]
        %v3876 = vld [vmem:[%s3859 + $0x80] sm:$0xff]
        %v3877 = vld [vmem:[%s3859 + $0x88] sm:$0xff]
        %v3878 = vld [vmem:[%s3859 + $0x90] sm:$0xff]
        %v3879 = vld [vmem:[%s3859 + $0x98] sm:$0xff]
        %v3880 = vld [vmem:[%s3859 + $0xa0] sm:$0xff]
        %v3881 = vld [vmem:[%s3859 + $0xa8] sm:$0xff]
        %v3882 = vld [vmem:[%s3859 + $0xb0] sm:$0xff]
        %v3883 = vld [vmem:[%s3859 + $0xb8] sm:$0xff]
        %v3884 = vld [vmem:[%s3859 + $0xc0] sm:$0xff]
        %3885 = vmatprep.subr.mxu0 0.0
        %3886 = vmatpush1.msra.mxu0 %v3860
        %3887 = vmatprep.subr.mxu0 0.0
        %3888 = vmatpush1.msra.mxu0 %v3861
        %3889 = vmatprep.subr.mxu0 0.0
        %3890 = vmatpush1.msra.mxu0 %v3862
        %3891 = vmatprep.subr.mxu0 0.0
        %3892 = vmatpush1.msra.mxu0 %v3863
        %3893 = vmatprep.subr.mxu0 0.0
        %3894 = vmatpush1.msra.mxu0 %v3864
        %3895 = vmatprep.subr.mxu0 0.0
        %3896 = vmatpush1.msra.mxu0 %v3865
        %3897 = vmatprep.subr.mxu0 0.0
        %3898 = vmatpush1.msra.mxu0 %v3866
        %3899 = vmatprep.subr.mxu0 0.0
        %3900 = vmatpush1.msra.mxu0 %v3867
        %3901 = vmatprep.subr.mxu0 0.0
        %3902 = vmatpush1.msra.mxu0 %v3868
        %3903 = vmatprep.subr.mxu0 0.0
        %3904 = vmatpush1.msra.mxu0 %v3869
        %3905 = vmatprep.subr.mxu0 0.0
        %3906 = vmatpush1.msra.mxu0 %v3870
        %3907 = vmatprep.subr.mxu0 0.0
        %3908 = vmatpush1.msra.mxu0 %v3871
        %3909 = vmatprep.subr.mxu0 0.0
        %3910 = vmatpush1.msra.mxu0 %v3872
        %3911 = vmatprep.subr.mxu0 0.0
        %3912 = vmatpush1.msra.mxu0 %v3873
        %3913 = vmatprep.subr.mxu0 0.0
        %3914 = vmatpush1.msra.mxu0 %v3874
        %3915 = vmatprep.subr.mxu0 0.0
        %3916 = vmatpush1.msra.mxu0 %v3875
        %3917 = vmatprep.subr.mxu0 0.0
        %3918 = vmatpush1.msra.mxu0 %v3876
        %3919 = vmatprep.subr.mxu0 0.0
        %3920 = vmatpush1.msra.mxu0 %v3877
        %3921 = vmatprep.subr.mxu0 0.0
        %3922 = vmatpush1.msra.mxu0 %v3878
        %3923 = vmatprep.subr.mxu0 0.0
        %3924 = vmatpush1.msra.mxu0 %v3879
        %3925 = vmatprep.subr.mxu0 0.0
        %3926 = vmatpush1.msra.mxu0 %v3880
        %3927 = vmatprep.subr.mxu0 0.0
        %3928 = vmatpush1.msra.mxu0 %v3881
        %3929 = vmatprep.subr.mxu0 0.0
        %3930 = vmatpush1.msra.mxu0 %v3882
        %3931 = vmatprep.subr.mxu0 0.0
        %3932 = vmatpush1.msra.mxu0 %v3883
        %3933 = vmatprep.subr.mxu0 0.0
        %3934 = vmatpush1.msra.mxu0 %v3884
        %3935 = vmatprep.subr.mxu0 0.0
        %3936 = vmatpush1.msra.mxu0 0.0
        %3937 = vmatprep.subr.mxu0 0.0
        %3938 = vmatpush1.msra.mxu0 0.0
        %3939 = vmatprep.subr.mxu0 0.0
        %3940 = vmatpush1.msra.mxu0 0.0
        %3941 = vmatprep.subr.mxu0 0.0
        %3942 = vmatpush1.msra.mxu0 0.0
        %3943 = vmatprep.subr.mxu0 0.0
        %3944 = vmatpush1.msra.mxu0 0.0
        %3945 = vmatprep.subr.mxu0 0.0
        %3946 = vmatpush1.msra.mxu0 0.0
        %3947 = vmatprep.subr.mxu0 0.0
        %3948 = vmatpush1.msra.mxu0 0.0
        %3949 = vmatprep.mubr.f32.mxu0 %v3338
        %3950 = vmatmul.mubr.f32.gmra.mrb[0].mxu0 %v3328
        %v3951 = vpop.f32.mrb[0].mxu0
        %v3952 = vadd.f32 0.0, %v3951
        %v3953 = vpop.f32.mrb[0].mxu0
        %3954 = vmatprep.mubr.f32.mxu0 %v3340
        %3955 = vmatmul.mubr.f32.gmra.mrb[0].mxu0 %v3333
        %v3956 = vpop.f32.mrb[0].mxu0
        %v3957 = vadd.f32 0.0, %v3956
        %v3958 = vpop.f32.mrb[0].mxu0
        %3959 = vdwg.mxu0
        %v3960 = vadd.f32 %v3851, %v3952
        %v3961 = vadd.f32 %v3856, %v3957
        %s3962 = scalar_lea.vmem [#allocation10], 2000
        %v3963 = vld [vmem:[%s3962] sm:$0xff]
        %v3964 = vld [vmem:[%s3962 + $0x8] sm:$0xff]
        %v3965 = vld [vmem:[%s3962 + $0x10] sm:$0xff]
        %v3966 = vld [vmem:[%s3962 + $0x18] sm:$0xff]
        %v3967 = vld [vmem:[%s3962 + $0x20] sm:$0xff]
        %v3968 = vld [vmem:[%s3962 + $0x28] sm:$0xff]
        %v3969 = vld [vmem:[%s3962 + $0x30] sm:$0xff]
        %v3970 = vld [vmem:[%s3962 + $0x38] sm:$0xff]
        %v3971 = vld [vmem:[%s3962 + $0x40] sm:$0xff]
        %v3972 = vld [vmem:[%s3962 + $0x48] sm:$0xff]
        %v3973 = vld [vmem:[%s3962 + $0x50] sm:$0xff]
        %v3974 = vld [vmem:[%s3962 + $0x58] sm:$0xff]
        %v3975 = vld [vmem:[%s3962 + $0x60] sm:$0xff]
        %v3976 = vld [vmem:[%s3962 + $0x68] sm:$0xff]
        %v3977 = vld [vmem:[%s3962 + $0x70] sm:$0xff]
        %v3978 = vld [vmem:[%s3962 + $0x78] sm:$0xff]
        %v3979 = vld [vmem:[%s3962 + $0x80] sm:$0xff]
        %v3980 = vld [vmem:[%s3962 + $0x88] sm:$0xff]
        %v3981 = vld [vmem:[%s3962 + $0x90] sm:$0xff]
        %v3982 = vld [vmem:[%s3962 + $0x98] sm:$0xff]
        %v3983 = vld [vmem:[%s3962 + $0xa0] sm:$0xff]
        %v3984 = vld [vmem:[%s3962 + $0xa8] sm:$0xff]
        %v3985 = vld [vmem:[%s3962 + $0xb0] sm:$0xff]
        %v3986 = vld [vmem:[%s3962 + $0xb8] sm:$0xff]
        %v3987 = vld [vmem:[%s3962 + $0xc0] sm:$0xff]
        %3988 = vmatprep.subr.mxu0 0.0
        %3989 = vmatpush1.msra.mxu0 %v3963
        %3990 = vmatprep.subr.mxu0 0.0
        %3991 = vmatpush1.msra.mxu0 %v3964
        %3992 = vmatprep.subr.mxu0 0.0
        %3993 = vmatpush1.msra.mxu0 %v3965
        %3994 = vmatprep.subr.mxu0 0.0
        %3995 = vmatpush1.msra.mxu0 %v3966
        %3996 = vmatprep.subr.mxu0 0.0
        %3997 = vmatpush1.msra.mxu0 %v3967
        %3998 = vmatprep.subr.mxu0 0.0
        %3999 = vmatpush1.msra.mxu0 %v3968
        %4000 = vmatprep.subr.mxu0 0.0
        %4001 = vmatpush1.msra.mxu0 %v3969
        %4002 = vmatprep.subr.mxu0 0.0
        %4003 = vmatpush1.msra.mxu0 %v3970
        %4004 = vmatprep.subr.mxu0 0.0
        %4005 = vmatpush1.msra.mxu0 %v3971
        %4006 = vmatprep.subr.mxu0 0.0
        %4007 = vmatpush1.msra.mxu0 %v3972
        %4008 = vmatprep.subr.mxu0 0.0
        %4009 = vmatpush1.msra.mxu0 %v3973
        %4010 = vmatprep.subr.mxu0 0.0
        %4011 = vmatpush1.msra.mxu0 %v3974
        %4012 = vmatprep.subr.mxu0 0.0
        %4013 = vmatpush1.msra.mxu0 %v3975
        %4014 = vmatprep.subr.mxu0 0.0
        %4015 = vmatpush1.msra.mxu0 %v3976
        %4016 = vmatprep.subr.mxu0 0.0
        %4017 = vmatpush1.msra.mxu0 %v3977
        %4018 = vmatprep.subr.mxu0 0.0
        %4019 = vmatpush1.msra.mxu0 %v3978
        %4020 = vmatprep.subr.mxu0 0.0
        %4021 = vmatpush1.msra.mxu0 %v3979
        %4022 = vmatprep.subr.mxu0 0.0
        %4023 = vmatpush1.msra.mxu0 %v3980
        %4024 = vmatprep.subr.mxu0 0.0
        %4025 = vmatpush1.msra.mxu0 %v3981
        %4026 = vmatprep.subr.mxu0 0.0
        %4027 = vmatpush1.msra.mxu0 %v3982
        %4028 = vmatprep.subr.mxu0 0.0
        %4029 = vmatpush1.msra.mxu0 %v3983
        %4030 = vmatprep.subr.mxu0 0.0
        %4031 = vmatpush1.msra.mxu0 %v3984
        %4032 = vmatprep.subr.mxu0 0.0
        %4033 = vmatpush1.msra.mxu0 %v3985
        %4034 = vmatprep.subr.mxu0 0.0
        %4035 = vmatpush1.msra.mxu0 %v3986
        %4036 = vmatprep.subr.mxu0 0.0
        %4037 = vmatpush1.msra.mxu0 %v3987
        %4038 = vmatprep.subr.mxu0 0.0
        %4039 = vmatpush1.msra.mxu0 0.0
        %4040 = vmatprep.subr.mxu0 0.0
        %4041 = vmatpush1.msra.mxu0 0.0
        %4042 = vmatprep.subr.mxu0 0.0
        %4043 = vmatpush1.msra.mxu0 0.0
        %4044 = vmatprep.subr.mxu0 0.0
        %4045 = vmatpush1.msra.mxu0 0.0
        %4046 = vmatprep.subr.mxu0 0.0
        %4047 = vmatpush1.msra.mxu0 0.0
        %4048 = vmatprep.subr.mxu0 0.0
        %4049 = vmatpush1.msra.mxu0 0.0
        %4050 = vmatprep.subr.mxu0 0.0
        %4051 = vmatpush1.msra.mxu0 0.0
        %4052 = vmatprep.mubr.f32.mxu0 %v3457
        %4053 = vmatmul.mubr.f32.gmra.mrb[0].mxu0 %v3447
        %v4054 = vpop.f32.mrb[0].mxu0
        %v4055 = vadd.f32 0.0, %v4054
        %v4056 = vpop.f32.mrb[0].mxu0
        %4057 = vmatprep.mubr.f32.mxu0 %v3459
        %4058 = vmatmul.mubr.f32.gmra.mrb[0].mxu0 %v3452
        %v4059 = vpop.f32.mrb[0].mxu0
        %v4060 = vadd.f32 0.0, %v4059
        %v4061 = vpop.f32.mrb[0].mxu0
        %4062 = vdwg.mxu0
        %v4063 = vadd.f32 %v3960, %v4055
        %v4064 = vadd.f32 %v3961, %v4060
        %s4065 = scalar_lea.vmem [#allocation10], 2600
        %v4066 = vld [vmem:[%s4065] sm:$0xff]
        %v4067 = vld [vmem:[%s4065 + $0x8] sm:$0xff]
        %v4068 = vld [vmem:[%s4065 + $0x10] sm:$0xff]
        %v4069 = vld [vmem:[%s4065 + $0x18] sm:$0xff]
        %v4070 = vld [vmem:[%s4065 + $0x20] sm:$0xff]
        %v4071 = vld [vmem:[%s4065 + $0x28] sm:$0xff]
        %v4072 = vld [vmem:[%s4065 + $0x30] sm:$0xff]
        %v4073 = vld [vmem:[%s4065 + $0x38] sm:$0xff]
        %v4074 = vld [vmem:[%s4065 + $0x40] sm:$0xff]
        %v4075 = vld [vmem:[%s4065 + $0x48] sm:$0xff]
        %v4076 = vld [vmem:[%s4065 + $0x50] sm:$0xff]
        %v4077 = vld [vmem:[%s4065 + $0x58] sm:$0xff]
        %v4078 = vld [vmem:[%s4065 + $0x60] sm:$0xff]
        %v4079 = vld [vmem:[%s4065 + $0x68] sm:$0xff]
        %v4080 = vld [vmem:[%s4065 + $0x70] sm:$0xff]
        %v4081 = vld [vmem:[%s4065 + $0x78] sm:$0xff]
        %v4082 = vld [vmem:[%s4065 + $0x80] sm:$0xff]
        %v4083 = vld [vmem:[%s4065 + $0x88] sm:$0xff]
        %v4084 = vld [vmem:[%s4065 + $0x90] sm:$0xff]
        %v4085 = vld [vmem:[%s4065 + $0x98] sm:$0xff]
        %v4086 = vld [vmem:[%s4065 + $0xa0] sm:$0xff]
        %v4087 = vld [vmem:[%s4065 + $0xa8] sm:$0xff]
        %v4088 = vld [vmem:[%s4065 + $0xb0] sm:$0xff]
        %v4089 = vld [vmem:[%s4065 + $0xb8] sm:$0xff]
        %v4090 = vld [vmem:[%s4065 + $0xc0] sm:$0xff]
        %4091 = vmatprep.subr.mxu0 0.0
        %4092 = vmatpush1.msra.mxu0 %v4066
        %4093 = vmatprep.subr.mxu0 0.0
        %4094 = vmatpush1.msra.mxu0 %v4067
        %4095 = vmatprep.subr.mxu0 0.0
        %4096 = vmatpush1.msra.mxu0 %v4068
        %4097 = vmatprep.subr.mxu0 0.0
        %4098 = vmatpush1.msra.mxu0 %v4069
        %4099 = vmatprep.subr.mxu0 0.0
        %4100 = vmatpush1.msra.mxu0 %v4070
        %4101 = vmatprep.subr.mxu0 0.0
        %4102 = vmatpush1.msra.mxu0 %v4071
        %4103 = vmatprep.subr.mxu0 0.0
        %4104 = vmatpush1.msra.mxu0 %v4072
        %4105 = vmatprep.subr.mxu0 0.0
        %4106 = vmatpush1.msra.mxu0 %v4073
        %4107 = vmatprep.subr.mxu0 0.0
        %4108 = vmatpush1.msra.mxu0 %v4074
        %4109 = vmatprep.subr.mxu0 0.0
        %4110 = vmatpush1.msra.mxu0 %v4075
        %4111 = vmatprep.subr.mxu0 0.0
        %4112 = vmatpush1.msra.mxu0 %v4076
        %4113 = vmatprep.subr.mxu0 0.0
        %4114 = vmatpush1.msra.mxu0 %v4077
        %4115 = vmatprep.subr.mxu0 0.0
        %4116 = vmatpush1.msra.mxu0 %v4078
        %4117 = vmatprep.subr.mxu0 0.0
        %4118 = vmatpush1.msra.mxu0 %v4079
        %4119 = vmatprep.subr.mxu0 0.0
        %4120 = vmatpush1.msra.mxu0 %v4080
        %4121 = vmatprep.subr.mxu0 0.0
        %4122 = vmatpush1.msra.mxu0 %v4081
        %4123 = vmatprep.subr.mxu0 0.0
        %4124 = vmatpush1.msra.mxu0 %v4082
        %4125 = vmatprep.subr.mxu0 0.0
        %4126 = vmatpush1.msra.mxu0 %v4083
        %4127 = vmatprep.subr.mxu0 0.0
        %4128 = vmatpush1.msra.mxu0 %v4084
        %4129 = vmatprep.subr.mxu0 0.0
        %4130 = vmatpush1.msra.mxu0 %v4085
        %4131 = vmatprep.subr.mxu0 0.0
        %4132 = vmatpush1.msra.mxu0 %v4086
        %4133 = vmatprep.subr.mxu0 0.0
        %4134 = vmatpush1.msra.mxu0 %v4087
        %4135 = vmatprep.subr.mxu0 0.0
        %4136 = vmatpush1.msra.mxu0 %v4088
        %4137 = vmatprep.subr.mxu0 0.0
        %4138 = vmatpush1.msra.mxu0 %v4089
        %4139 = vmatprep.subr.mxu0 0.0
        %4140 = vmatpush1.msra.mxu0 %v4090
        %4141 = vmatprep.subr.mxu0 0.0
        %4142 = vmatpush1.msra.mxu0 0.0
        %4143 = vmatprep.subr.mxu0 0.0
        %4144 = vmatpush1.msra.mxu0 0.0
        %4145 = vmatprep.subr.mxu0 0.0
        %4146 = vmatpush1.msra.mxu0 0.0
        %4147 = vmatprep.subr.mxu0 0.0
        %4148 = vmatpush1.msra.mxu0 0.0
        %4149 = vmatprep.subr.mxu0 0.0
        %4150 = vmatpush1.msra.mxu0 0.0
        %4151 = vmatprep.subr.mxu0 0.0
        %4152 = vmatpush1.msra.mxu0 0.0
        %4153 = vmatprep.subr.mxu0 0.0
        %4154 = vmatpush1.msra.mxu0 0.0
        %4155 = vmatprep.mubr.f32.mxu0 %v3576
        %4156 = vmatmul.mubr.f32.gmra.mrb[0].mxu0 %v3566
        %v4157 = vpop.f32.mrb[0].mxu0
        %v4158 = vadd.f32 0.0, %v4157
        %v4159 = vpop.f32.mrb[0].mxu0
        %4160 = vmatprep.mubr.f32.mxu0 %v3578
        %4161 = vmatmul.mubr.f32.gmra.mrb[0].mxu0 %v3571
        %v4162 = vpop.f32.mrb[0].mxu0
        %v4163 = vadd.f32 0.0, %v4162
        %v4164 = vpop.f32.mrb[0].mxu0
        %4165 = vdwg.mxu0
        %v4166 = vadd.f32 %v4063, %v4158
        %v4167 = vadd.f32 %v4064, %v4163
        %v4168 = vmax.f32 %v3655, %v4166
        %v4169 = vmax.f32 %v3656, %v4167
        %s4170 = scalar_lea.vmem [#allocation10], 400
        %v4171 = vld [vmem:[%s4170] sm:$0xff]
        %v4172 = vld [vmem:[%s4170 + $0x8] sm:$0xff]
        %v4173 = vld [vmem:[%s4170 + $0x10] sm:$0xff]
        %v4174 = vld [vmem:[%s4170 + $0x18] sm:$0xff]
        %v4175 = vld [vmem:[%s4170 + $0x20] sm:$0xff]
        %v4176 = vld [vmem:[%s4170 + $0x28] sm:$0xff]
        %v4177 = vld [vmem:[%s4170 + $0x30] sm:$0xff]
        %v4178 = vld [vmem:[%s4170 + $0x38] sm:$0xff]
        %v4179 = vld [vmem:[%s4170 + $0x40] sm:$0xff]
        %v4180 = vld [vmem:[%s4170 + $0x48] sm:$0xff]
        %v4181 = vld [vmem:[%s4170 + $0x50] sm:$0xff]
        %v4182 = vld [vmem:[%s4170 + $0x58] sm:$0xff]
        %v4183 = vld [vmem:[%s4170 + $0x60] sm:$0xff]
        %v4184 = vld [vmem:[%s4170 + $0x68] sm:$0xff]
        %v4185 = vld [vmem:[%s4170 + $0x70] sm:$0xff]
        %v4186 = vld [vmem:[%s4170 + $0x78] sm:$0xff]
        %v4187 = vld [vmem:[%s4170 + $0x80] sm:$0xff]
        %v4188 = vld [vmem:[%s4170 + $0x88] sm:$0xff]
        %v4189 = vld [vmem:[%s4170 + $0x90] sm:$0xff]
        %v4190 = vld [vmem:[%s4170 + $0x98] sm:$0xff]
        %v4191 = vld [vmem:[%s4170 + $0xa0] sm:$0xff]
        %v4192 = vld [vmem:[%s4170 + $0xa8] sm:$0xff]
        %v4193 = vld [vmem:[%s4170 + $0xb0] sm:$0xff]
        %v4194 = vld [vmem:[%s4170 + $0xb8] sm:$0xff]
        %v4195 = vld [vmem:[%s4170 + $0xc0] sm:$0xff]
        %s4196 = scalar_lea.vmem [#allocation10], 1000
        %v4197 = vld [vmem:[%s4196] sm:$0xff]
        %v4198 = vld [vmem:[%s4196 + $0x8] sm:$0xff]
        %v4199 = vld [vmem:[%s4196 + $0x10] sm:$0xff]
        %v4200 = vld [vmem:[%s4196 + $0x18] sm:$0xff]
        %v4201 = vld [vmem:[%s4196 + $0x20] sm:$0xff]
        %v4202 = vld [vmem:[%s4196 + $0x28] sm:$0xff]
        %v4203 = vld [vmem:[%s4196 + $0x30] sm:$0xff]
        %v4204 = vld [vmem:[%s4196 + $0x38] sm:$0xff]
        %v4205 = vld [vmem:[%s4196 + $0x40] sm:$0xff]
        %v4206 = vld [vmem:[%s4196 + $0x48] sm:$0xff]
        %v4207 = vld [vmem:[%s4196 + $0x50] sm:$0xff]
        %v4208 = vld [vmem:[%s4196 + $0x58] sm:$0xff]
        %v4209 = vld [vmem:[%s4196 + $0x60] sm:$0xff]
        %v4210 = vld [vmem:[%s4196 + $0x68] sm:$0xff]
        %v4211 = vld [vmem:[%s4196 + $0x70] sm:$0xff]
        %v4212 = vld [vmem:[%s4196 + $0x78] sm:$0xff]
        %v4213 = vld [vmem:[%s4196 + $0x80] sm:$0xff]
        %v4214 = vld [vmem:[%s4196 + $0x88] sm:$0xff]
        %v4215 = vld [vmem:[%s4196 + $0x90] sm:$0xff]
        %v4216 = vld [vmem:[%s4196 + $0x98] sm:$0xff]
        %v4217 = vld [vmem:[%s4196 + $0xa0] sm:$0xff]
        %v4218 = vld [vmem:[%s4196 + $0xa8] sm:$0xff]
        %v4219 = vld [vmem:[%s4196 + $0xb0] sm:$0xff]
        %v4220 = vld [vmem:[%s4196 + $0xb8] sm:$0xff]
        %v4221 = vld [vmem:[%s4196 + $0xc0] sm:$0xff]
        %4222 = vmatprep.subr.mxu0 0.0
        %4223 = vmatpush1.msra.mxu0 %v4197
        %4224 = vmatprep.subr.mxu0 0.0
        %4225 = vmatpush1.msra.mxu0 %v4198
        %4226 = vmatprep.subr.mxu0 0.0
        %4227 = vmatpush1.msra.mxu0 %v4199
        %4228 = vmatprep.subr.mxu0 0.0
        %4229 = vmatpush1.msra.mxu0 %v4200
        %4230 = vmatprep.subr.mxu0 0.0
        %4231 = vmatpush1.msra.mxu0 %v4201
        %4232 = vmatprep.subr.mxu0 0.0
        %4233 = vmatpush1.msra.mxu0 %v4202
        %4234 = vmatprep.subr.mxu0 0.0
        %4235 = vmatpush1.msra.mxu0 %v4203
        %4236 = vmatprep.subr.mxu0 0.0
        %4237 = vmatpush1.msra.mxu0 %v4204
        %4238 = vmatprep.subr.mxu0 0.0
        %4239 = vmatpush1.msra.mxu0 %v4205
        %4240 = vmatprep.subr.mxu0 0.0
        %4241 = vmatpush1.msra.mxu0 %v4206
        %4242 = vmatprep.subr.mxu0 0.0
        %4243 = vmatpush1.msra.mxu0 %v4207
        %4244 = vmatprep.subr.mxu0 0.0
        %4245 = vmatpush1.msra.mxu0 %v4208
        %4246 = vmatprep.subr.mxu0 0.0
        %4247 = vmatpush1.msra.mxu0 %v4209
        %4248 = vmatprep.subr.mxu0 0.0
        %4249 = vmatpush1.msra.mxu0 %v4210
        %4250 = vmatprep.subr.mxu0 0.0
        %4251 = vmatpush1.msra.mxu0 %v4211
        %4252 = vmatprep.subr.mxu0 0.0
        %4253 = vmatpush1.msra.mxu0 %v4212
        %4254 = vmatprep.subr.mxu0 0.0
        %4255 = vmatpush1.msra.mxu0 %v4213
        %4256 = vmatprep.subr.mxu0 0.0
        %4257 = vmatpush1.msra.mxu0 %v4214
        %4258 = vmatprep.subr.mxu0 0.0
        %4259 = vmatpush1.msra.mxu0 %v4215
        %4260 = vmatprep.subr.mxu0 0.0
        %4261 = vmatpush1.msra.mxu0 %v4216
        %4262 = vmatprep.subr.mxu0 0.0
        %4263 = vmatpush1.msra.mxu0 %v4217
        %4264 = vmatprep.subr.mxu0 0.0
        %4265 = vmatpush1.msra.mxu0 %v4218
        %4266 = vmatprep.subr.mxu0 0.0
        %4267 = vmatpush1.msra.mxu0 %v4219
        %4268 = vmatprep.subr.mxu0 0.0
        %4269 = vmatpush1.msra.mxu0 %v4220
        %4270 = vmatprep.subr.mxu0 0.0
        %4271 = vmatpush1.msra.mxu0 %v4221
        %4272 = vmatprep.subr.mxu0 0.0
        %4273 = vmatpush1.msra.mxu0 0.0
        %4274 = vmatprep.subr.mxu0 0.0
        %4275 = vmatpush1.msra.mxu0 0.0
        %4276 = vmatprep.subr.mxu0 0.0
        %4277 = vmatpush1.msra.mxu0 0.0
        %4278 = vmatprep.subr.mxu0 0.0
        %4279 = vmatpush1.msra.mxu0 0.0
        %4280 = vmatprep.subr.mxu0 0.0
        %4281 = vmatpush1.msra.mxu0 0.0
        %4282 = vmatprep.subr.mxu0 0.0
        %4283 = vmatpush1.msra.mxu0 0.0
        %4284 = vmatprep.subr.mxu0 0.0
        %4285 = vmatpush1.msra.mxu0 0.0
        %4286 = vmatprep.mubr.f32.mxu0 %v3142
        %4287 = vmatmul.mubr.f32.gmra.mrb[0].mxu0 %v3131
        %v4288 = vpop.f32.mrb[0].mxu0
        %v4289 = vadd.f32 0.0, %v4288
        %v4290 = vpop.f32.mrb[0].mxu0
        %4291 = vmatprep.mubr.f32.mxu0 %v3144
        %4292 = vmatmul.mubr.f32.gmra.mrb[0].mxu0 %v3136
        %v4293 = vpop.f32.mrb[0].mxu0
        %v4294 = vadd.f32 0.0, %v4293
        %v4295 = vpop.f32.mrb[0].mxu0
        %4296 = vdwg.mxu0
        %4297 = vmatprep.subr.mxu0 0.0
        %4298 = vmatpush1.msra.mxu0 %v4171
        %4299 = vmatprep.subr.mxu0 0.0
        %4300 = vmatpush1.msra.mxu0 %v4172
        %4301 = vmatprep.subr.mxu0 0.0
        %4302 = vmatpush1.msra.mxu0 %v4173
        %4303 = vmatprep.subr.mxu0 0.0
        %4304 = vmatpush1.msra.mxu0 %v4174
        %4305 = vmatprep.subr.mxu0 0.0
        %4306 = vmatpush1.msra.mxu0 %v4175
        %4307 = vmatprep.subr.mxu0 0.0
        %4308 = vmatpush1.msra.mxu0 %v4176
        %4309 = vmatprep.subr.mxu0 0.0
        %4310 = vmatpush1.msra.mxu0 %v4177
        %4311 = vmatprep.subr.mxu0 0.0
        %4312 = vmatpush1.msra.mxu0 %v4178
        %4313 = vmatprep.subr.mxu0 0.0
        %4314 = vmatpush1.msra.mxu0 %v4179
        %4315 = vmatprep.subr.mxu0 0.0
        %4316 = vmatpush1.msra.mxu0 %v4180
        %4317 = vmatprep.subr.mxu0 0.0
        %4318 = vmatpush1.msra.mxu0 %v4181
        %4319 = vmatprep.subr.mxu0 0.0
        %4320 = vmatpush1.msra.mxu0 %v4182
        %4321 = vmatprep.subr.mxu0 0.0
        %4322 = vmatpush1.msra.mxu0 %v4183
        %4323 = vmatprep.subr.mxu0 0.0
        %4324 = vmatpush1.msra.mxu0 %v4184
        %4325 = vmatprep.subr.mxu0 0.0
        %4326 = vmatpush1.msra.mxu0 %v4185
        %4327 = vmatprep.subr.mxu0 0.0
        %4328 = vmatpush1.msra.mxu0 %v4186
        %4329 = vmatprep.subr.mxu0 0.0
        %4330 = vmatpush1.msra.mxu0 %v4187
        %4331 = vmatprep.subr.mxu0 0.0
        %4332 = vmatpush1.msra.mxu0 %v4188
        %4333 = vmatprep.subr.mxu0 0.0
        %4334 = vmatpush1.msra.mxu0 %v4189
        %4335 = vmatprep.subr.mxu0 0.0
        %4336 = vmatpush1.msra.mxu0 %v4190
        %4337 = vmatprep.subr.mxu0 0.0
        %4338 = vmatpush1.msra.mxu0 %v4191
        %4339 = vmatprep.subr.mxu0 0.0
        %4340 = vmatpush1.msra.mxu0 %v4192
        %4341 = vmatprep.subr.mxu0 0.0
        %4342 = vmatpush1.msra.mxu0 %v4193
        %4343 = vmatprep.subr.mxu0 0.0
        %4344 = vmatpush1.msra.mxu0 %v4194
        %4345 = vmatprep.subr.mxu0 0.0
        %4346 = vmatpush1.msra.mxu0 %v4195
        %4347 = vmatprep.subr.mxu0 0.0
        %4348 = vmatpush1.msra.mxu0 0.0
        %4349 = vmatprep.subr.mxu0 0.0
        %4350 = vmatpush1.msra.mxu0 0.0
        %4351 = vmatprep.subr.mxu0 0.0
        %4352 = vmatpush1.msra.mxu0 0.0
        %4353 = vmatprep.subr.mxu0 0.0
        %4354 = vmatpush1.msra.mxu0 0.0
        %4355 = vmatprep.subr.mxu0 0.0
        %4356 = vmatpush1.msra.mxu0 0.0
        %4357 = vmatprep.subr.mxu0 0.0
        %4358 = vmatpush1.msra.mxu0 0.0
        %4359 = vmatprep.subr.mxu0 0.0
        %4360 = vmatpush1.msra.mxu0 0.0
        %4361 = vmatprep.mubr.f32.mxu0 %v3221
        %4362 = vmatmul.mubr.f32.gmra.mrb[0].mxu0 %v3066
        %v4363 = vpop.f32.mrb[0].mxu0
        %v4364 = vadd.f32 %v4289, %v4363
        %v4365 = vpop.f32.mrb[0].mxu0
        %4366 = vmatprep.mubr.f32.mxu0 %v3223
        %4367 = vmatmul.mubr.f32.gmra.mrb[0].mxu0 %v3068
        %v4368 = vpop.f32.mrb[0].mxu0
        %v4369 = vadd.f32 %v4294, %v4368
        %v4370 = vpop.f32.mrb[0].mxu0
        %4371 = vdwg.mxu0
        %s4372 = scalar_lea.vmem [#allocation10], 1600
        %v4373 = vld [vmem:[%s4372] sm:$0xff]
        %v4374 = vld [vmem:[%s4372 + $0x8] sm:$0xff]
        %v4375 = vld [vmem:[%s4372 + $0x10] sm:$0xff]
        %v4376 = vld [vmem:[%s4372 + $0x18] sm:$0xff]
        %v4377 = vld [vmem:[%s4372 + $0x20] sm:$0xff]
        %v4378 = vld [vmem:[%s4372 + $0x28] sm:$0xff]
        %v4379 = vld [vmem:[%s4372 + $0x30] sm:$0xff]
        %v4380 = vld [vmem:[%s4372 + $0x38] sm:$0xff]
        %v4381 = vld [vmem:[%s4372 + $0x40] sm:$0xff]
        %v4382 = vld [vmem:[%s4372 + $0x48] sm:$0xff]
        %v4383 = vld [vmem:[%s4372 + $0x50] sm:$0xff]
        %v4384 = vld [vmem:[%s4372 + $0x58] sm:$0xff]
        %v4385 = vld [vmem:[%s4372 + $0x60] sm:$0xff]
        %v4386 = vld [vmem:[%s4372 + $0x68] sm:$0xff]
        %v4387 = vld [vmem:[%s4372 + $0x70] sm:$0xff]
        %v4388 = vld [vmem:[%s4372 + $0x78] sm:$0xff]
        %v4389 = vld [vmem:[%s4372 + $0x80] sm:$0xff]
        %v4390 = vld [vmem:[%s4372 + $0x88] sm:$0xff]
        %v4391 = vld [vmem:[%s4372 + $0x90] sm:$0xff]
        %v4392 = vld [vmem:[%s4372 + $0x98] sm:$0xff]
        %v4393 = vld [vmem:[%s4372 + $0xa0] sm:$0xff]
        %v4394 = vld [vmem:[%s4372 + $0xa8] sm:$0xff]
        %v4395 = vld [vmem:[%s4372 + $0xb0] sm:$0xff]
        %v4396 = vld [vmem:[%s4372 + $0xb8] sm:$0xff]
        %v4397 = vld [vmem:[%s4372 + $0xc0] sm:$0xff]
        %4398 = vmatprep.subr.mxu0 0.0
        %4399 = vmatpush1.msra.mxu0 %v4373
        %4400 = vmatprep.subr.mxu0 0.0
        %4401 = vmatpush1.msra.mxu0 %v4374
        %4402 = vmatprep.subr.mxu0 0.0
        %4403 = vmatpush1.msra.mxu0 %v4375
        %4404 = vmatprep.subr.mxu0 0.0
        %4405 = vmatpush1.msra.mxu0 %v4376
        %4406 = vmatprep.subr.mxu0 0.0
        %4407 = vmatpush1.msra.mxu0 %v4377
        %4408 = vmatprep.subr.mxu0 0.0
        %4409 = vmatpush1.msra.mxu0 %v4378
        %4410 = vmatprep.subr.mxu0 0.0
        %4411 = vmatpush1.msra.mxu0 %v4379
        %4412 = vmatprep.subr.mxu0 0.0
        %4413 = vmatpush1.msra.mxu0 %v4380
        %4414 = vmatprep.subr.mxu0 0.0
        %4415 = vmatpush1.msra.mxu0 %v4381
        %4416 = vmatprep.subr.mxu0 0.0
        %4417 = vmatpush1.msra.mxu0 %v4382
        %4418 = vmatprep.subr.mxu0 0.0
        %4419 = vmatpush1.msra.mxu0 %v4383
        %4420 = vmatprep.subr.mxu0 0.0
        %4421 = vmatpush1.msra.mxu0 %v4384
        %4422 = vmatprep.subr.mxu0 0.0
        %4423 = vmatpush1.msra.mxu0 %v4385
        %4424 = vmatprep.subr.mxu0 0.0
        %4425 = vmatpush1.msra.mxu0 %v4386
        %4426 = vmatprep.subr.mxu0 0.0
        %4427 = vmatpush1.msra.mxu0 %v4387
        %4428 = vmatprep.subr.mxu0 0.0
        %4429 = vmatpush1.msra.mxu0 %v4388
        %4430 = vmatprep.subr.mxu0 0.0
        %4431 = vmatpush1.msra.mxu0 %v4389
        %4432 = vmatprep.subr.mxu0 0.0
        %4433 = vmatpush1.msra.mxu0 %v4390
        %4434 = vmatprep.subr.mxu0 0.0
        %4435 = vmatpush1.msra.mxu0 %v4391
        %4436 = vmatprep.subr.mxu0 0.0
        %4437 = vmatpush1.msra.mxu0 %v4392
        %4438 = vmatprep.subr.mxu0 0.0
        %4439 = vmatpush1.msra.mxu0 %v4393
        %4440 = vmatprep.subr.mxu0 0.0
        %4441 = vmatpush1.msra.mxu0 %v4394
        %4442 = vmatprep.subr.mxu0 0.0
        %4443 = vmatpush1.msra.mxu0 %v4395
        %4444 = vmatprep.subr.mxu0 0.0
        %4445 = vmatpush1.msra.mxu0 %v4396
        %4446 = vmatprep.subr.mxu0 0.0
        %4447 = vmatpush1.msra.mxu0 %v4397
        %4448 = vmatprep.subr.mxu0 0.0
        %4449 = vmatpush1.msra.mxu0 0.0
        %4450 = vmatprep.subr.mxu0 0.0
        %4451 = vmatpush1.msra.mxu0 0.0
        %4452 = vmatprep.subr.mxu0 0.0
        %4453 = vmatpush1.msra.mxu0 0.0
        %4454 = vmatprep.subr.mxu0 0.0
        %4455 = vmatpush1.msra.mxu0 0.0
        %4456 = vmatprep.subr.mxu0 0.0
        %4457 = vmatpush1.msra.mxu0 0.0
        %4458 = vmatprep.subr.mxu0 0.0
        %4459 = vmatpush1.msra.mxu0 0.0
        %4460 = vmatprep.subr.mxu0 0.0
        %4461 = vmatpush1.msra.mxu0 0.0
        %4462 = vmatprep.mubr.f32.mxu0 %v3338
        %4463 = vmatmul.mubr.f32.gmra.mrb[0].mxu0 %v3328
        %v4464 = vpop.f32.mrb[0].mxu0
        %v4465 = vadd.f32 0.0, %v4464
        %v4466 = vpop.f32.mrb[0].mxu0
        %4467 = vmatprep.mubr.f32.mxu0 %v3340
        %4468 = vmatmul.mubr.f32.gmra.mrb[0].mxu0 %v3333
        %v4469 = vpop.f32.mrb[0].mxu0
        %v4470 = vadd.f32 0.0, %v4469
        %v4471 = vpop.f32.mrb[0].mxu0
        %4472 = vdwg.mxu0
        %v4473 = vadd.f32 %v4364, %v4465
        %v4474 = vadd.f32 %v4369, %v4470
        %s4475 = scalar_lea.vmem [#allocation10], 2200
        %v4476 = vld [vmem:[%s4475] sm:$0xff]
        %v4477 = vld [vmem:[%s4475 + $0x8] sm:$0xff]
        %v4478 = vld [vmem:[%s4475 + $0x10] sm:$0xff]
        %v4479 = vld [vmem:[%s4475 + $0x18] sm:$0xff]
        %v4480 = vld [vmem:[%s4475 + $0x20] sm:$0xff]
        %v4481 = vld [vmem:[%s4475 + $0x28] sm:$0xff]
        %v4482 = vld [vmem:[%s4475 + $0x30] sm:$0xff]
        %v4483 = vld [vmem:[%s4475 + $0x38] sm:$0xff]
        %v4484 = vld [vmem:[%s4475 + $0x40] sm:$0xff]
        %v4485 = vld [vmem:[%s4475 + $0x48] sm:$0xff]
        %v4486 = vld [vmem:[%s4475 + $0x50] sm:$0xff]
        %v4487 = vld [vmem:[%s4475 + $0x58] sm:$0xff]
        %v4488 = vld [vmem:[%s4475 + $0x60] sm:$0xff]
        %v4489 = vld [vmem:[%s4475 + $0x68] sm:$0xff]
        %v4490 = vld [vmem:[%s4475 + $0x70] sm:$0xff]
        %v4491 = vld [vmem:[%s4475 + $0x78] sm:$0xff]
        %v4492 = vld [vmem:[%s4475 + $0x80] sm:$0xff]
        %v4493 = vld [vmem:[%s4475 + $0x88] sm:$0xff]
        %v4494 = vld [vmem:[%s4475 + $0x90] sm:$0xff]
        %v4495 = vld [vmem:[%s4475 + $0x98] sm:$0xff]
        %v4496 = vld [vmem:[%s4475 + $0xa0] sm:$0xff]
        %v4497 = vld [vmem:[%s4475 + $0xa8] sm:$0xff]
        %v4498 = vld [vmem:[%s4475 + $0xb0] sm:$0xff]
        %v4499 = vld [vmem:[%s4475 + $0xb8] sm:$0xff]
        %v4500 = vld [vmem:[%s4475 + $0xc0] sm:$0xff]
        %4501 = vmatprep.subr.mxu0 0.0
        %4502 = vmatpush1.msra.mxu0 %v4476
        %4503 = vmatprep.subr.mxu0 0.0
        %4504 = vmatpush1.msra.mxu0 %v4477
        %4505 = vmatprep.subr.mxu0 0.0
        %4506 = vmatpush1.msra.mxu0 %v4478
        %4507 = vmatprep.subr.mxu0 0.0
        %4508 = vmatpush1.msra.mxu0 %v4479
        %4509 = vmatprep.subr.mxu0 0.0
        %4510 = vmatpush1.msra.mxu0 %v4480
        %4511 = vmatprep.subr.mxu0 0.0
        %4512 = vmatpush1.msra.mxu0 %v4481
        %4513 = vmatprep.subr.mxu0 0.0
        %4514 = vmatpush1.msra.mxu0 %v4482
        %4515 = vmatprep.subr.mxu0 0.0
        %4516 = vmatpush1.msra.mxu0 %v4483
        %4517 = vmatprep.subr.mxu0 0.0
        %4518 = vmatpush1.msra.mxu0 %v4484
        %4519 = vmatprep.subr.mxu0 0.0
        %4520 = vmatpush1.msra.mxu0 %v4485
        %4521 = vmatprep.subr.mxu0 0.0
        %4522 = vmatpush1.msra.mxu0 %v4486
        %4523 = vmatprep.subr.mxu0 0.0
        %4524 = vmatpush1.msra.mxu0 %v4487
        %4525 = vmatprep.subr.mxu0 0.0
        %4526 = vmatpush1.msra.mxu0 %v4488
        %4527 = vmatprep.subr.mxu0 0.0
        %4528 = vmatpush1.msra.mxu0 %v4489
        %4529 = vmatprep.subr.mxu0 0.0
        %4530 = vmatpush1.msra.mxu0 %v4490
        %4531 = vmatprep.subr.mxu0 0.0
        %4532 = vmatpush1.msra.mxu0 %v4491
        %4533 = vmatprep.subr.mxu0 0.0
        %4534 = vmatpush1.msra.mxu0 %v4492
        %4535 = vmatprep.subr.mxu0 0.0
        %4536 = vmatpush1.msra.mxu0 %v4493
        %4537 = vmatprep.subr.mxu0 0.0
        %4538 = vmatpush1.msra.mxu0 %v4494
        %4539 = vmatprep.subr.mxu0 0.0
        %4540 = vmatpush1.msra.mxu0 %v4495
        %4541 = vmatprep.subr.mxu0 0.0
        %4542 = vmatpush1.msra.mxu0 %v4496
        %4543 = vmatprep.subr.mxu0 0.0
        %4544 = vmatpush1.msra.mxu0 %v4497
        %4545 = vmatprep.subr.mxu0 0.0
        %4546 = vmatpush1.msra.mxu0 %v4498
        %4547 = vmatprep.subr.mxu0 0.0
        %4548 = vmatpush1.msra.mxu0 %v4499
        %4549 = vmatprep.subr.mxu0 0.0
        %4550 = vmatpush1.msra.mxu0 %v4500
        %4551 = vmatprep.subr.mxu0 0.0
        %4552 = vmatpush1.msra.mxu0 0.0
        %4553 = vmatprep.subr.mxu0 0.0
        %4554 = vmatpush1.msra.mxu0 0.0
        %4555 = vmatprep.subr.mxu0 0.0
        %4556 = vmatpush1.msra.mxu0 0.0
        %4557 = vmatprep.subr.mxu0 0.0
        %4558 = vmatpush1.msra.mxu0 0.0
        %4559 = vmatprep.subr.mxu0 0.0
        %4560 = vmatpush1.msra.mxu0 0.0
        %4561 = vmatprep.subr.mxu0 0.0
        %4562 = vmatpush1.msra.mxu0 0.0
        %4563 = vmatprep.subr.mxu0 0.0
        %4564 = vmatpush1.msra.mxu0 0.0
        %4565 = vmatprep.mubr.f32.mxu0 %v3457
        %4566 = vmatmul.mubr.f32.gmra.mrb[0].mxu0 %v3447
        %v4567 = vpop.f32.mrb[0].mxu0
        %v4568 = vadd.f32 0.0, %v4567
        %v4569 = vpop.f32.mrb[0].mxu0
        %4570 = vmatprep.mubr.f32.mxu0 %v3459
        %4571 = vmatmul.mubr.f32.gmra.mrb[0].mxu0 %v3452
        %v4572 = vpop.f32.mrb[0].mxu0
        %v4573 = vadd.f32 0.0, %v4572
        %v4574 = vpop.f32.mrb[0].mxu0
        %4575 = vdwg.mxu0
        %v4576 = vadd.f32 %v4473, %v4568
        %v4577 = vadd.f32 %v4474, %v4573
        %s4578 = scalar_lea.vmem [#allocation10], 2800
        %v4579 = vld [vmem:[%s4578] sm:$0xff]
        %v4580 = vld [vmem:[%s4578 + $0x8] sm:$0xff]
        %v4581 = vld [vmem:[%s4578 + $0x10] sm:$0xff]
        %v4582 = vld [vmem:[%s4578 + $0x18] sm:$0xff]
        %v4583 = vld [vmem:[%s4578 + $0x20] sm:$0xff]
        %v4584 = vld [vmem:[%s4578 + $0x28] sm:$0xff]
        %v4585 = vld [vmem:[%s4578 + $0x30] sm:$0xff]
        %v4586 = vld [vmem:[%s4578 + $0x38] sm:$0xff]
        %v4587 = vld [vmem:[%s4578 + $0x40] sm:$0xff]
        %v4588 = vld [vmem:[%s4578 + $0x48] sm:$0xff]
        %v4589 = vld [vmem:[%s4578 + $0x50] sm:$0xff]
        %v4590 = vld [vmem:[%s4578 + $0x58] sm:$0xff]
        %v4591 = vld [vmem:[%s4578 + $0x60] sm:$0xff]
        %v4592 = vld [vmem:[%s4578 + $0x68] sm:$0xff]
        %v4593 = vld [vmem:[%s4578 + $0x70] sm:$0xff]
        %v4594 = vld [vmem:[%s4578 + $0x78] sm:$0xff]
        %v4595 = vld [vmem:[%s4578 + $0x80] sm:$0xff]
        %v4596 = vld [vmem:[%s4578 + $0x88] sm:$0xff]
        %v4597 = vld [vmem:[%s4578 + $0x90] sm:$0xff]
        %v4598 = vld [vmem:[%s4578 + $0x98] sm:$0xff]
        %v4599 = vld [vmem:[%s4578 + $0xa0] sm:$0xff]
        %v4600 = vld [vmem:[%s4578 + $0xa8] sm:$0xff]
        %v4601 = vld [vmem:[%s4578 + $0xb0] sm:$0xff]
        %v4602 = vld [vmem:[%s4578 + $0xb8] sm:$0xff]
        %v4603 = vld [vmem:[%s4578 + $0xc0] sm:$0xff]
        %4604 = vmatprep.subr.mxu0 0.0
        %4605 = vmatpush1.msra.mxu0 %v4579
        %4606 = vmatprep.subr.mxu0 0.0
        %4607 = vmatpush1.msra.mxu0 %v4580
        %4608 = vmatprep.subr.mxu0 0.0
        %4609 = vmatpush1.msra.mxu0 %v4581
        %4610 = vmatprep.subr.mxu0 0.0
        %4611 = vmatpush1.msra.mxu0 %v4582
        %4612 = vmatprep.subr.mxu0 0.0
        %4613 = vmatpush1.msra.mxu0 %v4583
        %4614 = vmatprep.subr.mxu0 0.0
        %4615 = vmatpush1.msra.mxu0 %v4584
        %4616 = vmatprep.subr.mxu0 0.0
        %4617 = vmatpush1.msra.mxu0 %v4585
        %4618 = vmatprep.subr.mxu0 0.0
        %4619 = vmatpush1.msra.mxu0 %v4586
        %4620 = vmatprep.subr.mxu0 0.0
        %4621 = vmatpush1.msra.mxu0 %v4587
        %4622 = vmatprep.subr.mxu0 0.0
        %4623 = vmatpush1.msra.mxu0 %v4588
        %4624 = vmatprep.subr.mxu0 0.0
        %4625 = vmatpush1.msra.mxu0 %v4589
        %4626 = vmatprep.subr.mxu0 0.0
        %4627 = vmatpush1.msra.mxu0 %v4590
        %4628 = vmatprep.subr.mxu0 0.0
        %4629 = vmatpush1.msra.mxu0 %v4591
        %4630 = vmatprep.subr.mxu0 0.0
        %4631 = vmatpush1.msra.mxu0 %v4592
        %4632 = vmatprep.subr.mxu0 0.0
        %4633 = vmatpush1.msra.mxu0 %v4593
        %4634 = vmatprep.subr.mxu0 0.0
        %4635 = vmatpush1.msra.mxu0 %v4594
        %4636 = vmatprep.subr.mxu0 0.0
        %4637 = vmatpush1.msra.mxu0 %v4595
        %4638 = vmatprep.subr.mxu0 0.0
        %4639 = vmatpush1.msra.mxu0 %v4596
        %4640 = vmatprep.subr.mxu0 0.0
        %4641 = vmatpush1.msra.mxu0 %v4597
        %4642 = vmatprep.subr.mxu0 0.0
        %4643 = vmatpush1.msra.mxu0 %v4598
        %4644 = vmatprep.subr.mxu0 0.0
        %4645 = vmatpush1.msra.mxu0 %v4599
        %4646 = vmatprep.subr.mxu0 0.0
        %4647 = vmatpush1.msra.mxu0 %v4600
        %4648 = vmatprep.subr.mxu0 0.0
        %4649 = vmatpush1.msra.mxu0 %v4601
        %4650 = vmatprep.subr.mxu0 0.0
        %4651 = vmatpush1.msra.mxu0 %v4602
        %4652 = vmatprep.subr.mxu0 0.0
        %4653 = vmatpush1.msra.mxu0 %v4603
        %4654 = vmatprep.subr.mxu0 0.0
        %4655 = vmatpush1.msra.mxu0 0.0
        %4656 = vmatprep.subr.mxu0 0.0
        %4657 = vmatpush1.msra.mxu0 0.0
        %4658 = vmatprep.subr.mxu0 0.0
        %4659 = vmatpush1.msra.mxu0 0.0
        %4660 = vmatprep.subr.mxu0 0.0
        %4661 = vmatpush1.msra.mxu0 0.0
        %4662 = vmatprep.subr.mxu0 0.0
        %4663 = vmatpush1.msra.mxu0 0.0
        %4664 = vmatprep.subr.mxu0 0.0
        %4665 = vmatpush1.msra.mxu0 0.0
        %4666 = vmatprep.subr.mxu0 0.0
        %4667 = vmatpush1.msra.mxu0 0.0
        %4668 = vmatprep.mubr.f32.mxu0 %v3576
        %4669 = vmatmul.mubr.f32.gmra.mrb[0].mxu0 %v3566
        %v4670 = vpop.f32.mrb[0].mxu0
        %v4671 = vadd.f32 0.0, %v4670
        %v4672 = vpop.f32.mrb[0].mxu0
        %4673 = vmatprep.mubr.f32.mxu0 %v3578
        %4674 = vmatmul.mubr.f32.gmra.mrb[0].mxu0 %v3571
        %v4675 = vpop.f32.mrb[0].mxu0
        %v4676 = vadd.f32 0.0, %v4675
        %v4677 = vpop.f32.mrb[0].mxu0
        %4678 = vdwg.mxu0
        %v4679 = vadd.f32 %v4576, %v4671
        %v4680 = vadd.f32 %v4577, %v4676
        %v4681 = vmax.f32 %v4168, %v4679
        %v4682 = vmax.f32 %v4169, %v4680
        %v4685 = vrot.slane %v4681, 1
        %v4686 = vrot.slane %v4682, 1
        %v4687 = vsel %vm574, %v4685, %v4686
        %v4690 = vmax.f32 %v4681, %v4687
        %v4691 = vmax.f32 %v4682, %v4686
        %v4692 = vrot.slane %v4681, 2
        %v4693 = vrot.slane %v4682, 2
        %v4694 = vsel %vm866, %v4692, %v4693
        %v4697 = vmax.f32 %v4690, %v4694
        %v4698 = vmax.f32 %v4691, %v4693
        %v4699 = vld [vmem:[#allocation13] sm:$0x1f]
        %v4700 = vld [vmem:[#allocation11] sm:$0x1]
        %v4702 = vlaneseq
        %v4703 = vshrl.u32 %v4702, 7
        %v4704 = vsub.s32 0, %v4703
        %v4705 = vrot.slane %v4700, %v4704
        %vm4707 = vcmask 113664
        %v4709 = vsel %vm4707, %v4699, 0
        %v4712 = vsel %vm866, %v4698, 0
        %4714 = vmatprep.subr.mxu0 0.0
        %4715 = vmatpush1.msra.mxu0 %v4697
        %4716 = vmatprep.subr.mxu0 0.0
        %4717 = vmatpush1.msra.mxu0 %v4712
        %4718 = vmatprep.subr.mxu0 0.0
        %4719 = vmatpush1.msra.mxu0 0.0
        %4720 = vmatprep.subr.mxu0 0.0
        %4721 = vmatpush1.msra.mxu0 0.0
        %4722 = vmatprep.subr.mxu0 0.0
        %4723 = vmatpush1.msra.mxu0 0.0
        %4724 = vmatprep.subr.mxu0 0.0
        %4725 = vmatpush1.msra.mxu0 0.0
        %4726 = vmatprep.subr.mxu0 0.0
        %4727 = vmatpush1.msra.mxu0 0.0
        %4728 = vmatprep.subr.mxu0 0.0
        %4729 = vmatpush1.msra.mxu0 0.0
        %4730 = vmatprep.subr.mxu0 0.0
        %4731 = vmatpush1.msra.mxu0 0.0
        %4732 = vmatprep.subr.mxu0 0.0
        %4733 = vmatpush1.msra.mxu0 0.0
        %4734 = vmatprep.subr.mxu0 0.0
        %4735 = vmatpush1.msra.mxu0 0.0
        %4736 = vmatprep.subr.mxu0 0.0
        %4737 = vmatpush1.msra.mxu0 0.0
        %4738 = vmatprep.subr.mxu0 0.0
        %4739 = vmatpush1.msra.mxu0 0.0
        %4740 = vmatprep.subr.mxu0 0.0
        %4741 = vmatpush1.msra.mxu0 0.0
        %4742 = vmatprep.subr.mxu0 0.0
        %4743 = vmatpush1.msra.mxu0 0.0
        %4744 = vmatprep.subr.mxu0 0.0
        %4745 = vmatpush1.msra.mxu0 0.0
        %4746 = vmatprep.subr.mxu0 0.0
        %4747 = vmatpush1.msra.mxu0 0.0
        %4748 = vmatprep.subr.mxu0 0.0
        %4749 = vmatpush1.msra.mxu0 0.0
        %4750 = vmatprep.subr.mxu0 0.0
        %4751 = vmatpush1.msra.mxu0 0.0
        %4752 = vmatprep.subr.mxu0 0.0
        %4753 = vmatpush1.msra.mxu0 0.0
        %4754 = vmatprep.subr.mxu0 0.0
        %4755 = vmatpush1.msra.mxu0 0.0
        %4756 = vmatprep.subr.mxu0 0.0
        %4757 = vmatpush1.msra.mxu0 0.0
        %4758 = vmatprep.subr.mxu0 0.0
        %4759 = vmatpush1.msra.mxu0 0.0
        %4760 = vmatprep.subr.mxu0 0.0
        %4761 = vmatpush1.msra.mxu0 0.0
        %4762 = vmatprep.subr.mxu0 0.0
        %4763 = vmatpush1.msra.mxu0 0.0
        %4764 = vmatprep.subr.mxu0 0.0
        %4765 = vmatpush1.msra.mxu0 0.0
        %4766 = vmatprep.subr.mxu0 0.0
        %4767 = vmatpush1.msra.mxu0 0.0
        %4768 = vmatprep.subr.mxu0 0.0
        %4769 = vmatpush1.msra.mxu0 0.0
        %4770 = vmatprep.subr.mxu0 0.0
        %4771 = vmatpush1.msra.mxu0 0.0
        %4772 = vmatprep.subr.mxu0 0.0
        %4773 = vmatpush1.msra.mxu0 0.0
        %4774 = vmatprep.subr.mxu0 0.0
        %4775 = vmatpush1.msra.mxu0 0.0
        %4776 = vmatprep.subr.mxu0 0.0
        %4777 = vmatpush1.msra.mxu0 0.0
        %4778 = vmatprep.mubr.f32.mxu0 0.0
        %4779 = vmatmul.mubr.f32.gmra.mrb[0].mxu0 %v4709
        %v4780 = vpop.f32.mrb[0].mxu0
        %v4781 = vadd.f32 %v4705, %v4780
        %v4782 = vpop.f32.mrb[0].mxu0
        %4783 = vdwg.mxu0
        %v4784 = vmax.f32 %v4781, 0.0
        %v4785 = vld [vmem:[#allocation14] sm:$0xff]
        %v4786 = vld [vmem:[#allocation14 + $0x8] sm:$0xff]
        %v4787 = vld [vmem:[#allocation14 + $0x10] sm:$0xff]
        %v4788 = vld [vmem:[#allocation14 + $0x18] sm:$0xff]
        %v4789 = vld [vmem:[#allocation14 + $0x20] sm:$0xff]
        %v4790 = vld [vmem:[#allocation14 + $0x28] sm:$0xff]
        %v4791 = vld [vmem:[#allocation14 + $0x30] sm:$0xff]
        %v4792 = vld [vmem:[#allocation14 + $0x38] sm:$0xff]
        %v4793 = vld [vmem:[#allocation14 + $0x40] sm:$0xff]
        %v4794 = vld [vmem:[#allocation14 + $0x48] sm:$0xff]
        %v4795 = vld [vmem:[#allocation14 + $0x50] sm:$0xff]
        %v4796 = vld [vmem:[#allocation14 + $0x58] sm:$0xff]
        %v4797 = vld [vmem:[#allocation14 + $0x60] sm:$0xff]
        %v4798 = vld [vmem:[#allocation14 + $0x68] sm:$0xff]
        %v4799 = vld [vmem:[#allocation14 + $0x70] sm:$0xff]
        %v4800 = vld [vmem:[#allocation14 + $0x78] sm:$0xff]
        %v4801 = vld [vmem:[#allocation14 + $0x80] sm:$0xff]
        %v4802 = vld [vmem:[#allocation14 + $0x88] sm:$0xff]
        %v4803 = vld [vmem:[#allocation14 + $0x90] sm:$0xff]
        %v4804 = vld [vmem:[#allocation14 + $0x98] sm:$0xff]
        %v4805 = vld [vmem:[#allocation14 + $0xa0] sm:$0xff]
        %v4806 = vld [vmem:[#allocation14 + $0xa8] sm:$0xff]
        %v4807 = vld [vmem:[#allocation14 + $0xb0] sm:$0xff]
        %v4808 = vld [vmem:[#allocation14 + $0xb8] sm:$0xff]
        %v4809 = vld [vmem:[#allocation14 + $0xc0] sm:$0xff]
        %v4810 = vld [vmem:[#allocation14 + $0xc8] sm:$0xff]
        %v4811 = vld [vmem:[#allocation14 + $0xd0] sm:$0xff]
        %v4812 = vld [vmem:[#allocation14 + $0xd8] sm:$0xff]
        %v4813 = vld [vmem:[#allocation14 + $0xe0] sm:$0xff]
        %v4814 = vld [vmem:[#allocation14 + $0xe8] sm:$0xff]
        %v4815 = vld [vmem:[#allocation14 + $0xf0] sm:$0xff]
        %v4816 = vld [vmem:[#allocation14 + $0xf8] sm:$0xff]
        %v4817 = vld [vmem:[#allocation14 + $0x100] sm:$0xff]
        %v4818 = vld [vmem:[#allocation14 + $0x108] sm:$0xff]
        %v4819 = vld [vmem:[#allocation14 + $0x110] sm:$0xff]
        %v4820 = vld [vmem:[#allocation14 + $0x118] sm:$0xff]
        %v4821 = vld [vmem:[#allocation14 + $0x120] sm:$0xff]
        %v4822 = vld [vmem:[#allocation14 + $0x128] sm:$0xff]
        %v4823 = vld [vmem:[#allocation14 + $0x130] sm:$0xff]
        %v4824 = vld [vmem:[#allocation14 + $0x138] sm:$0xff]
        %v4825 = vld [vmem:[#allocation14 + $0x140] sm:$0xff]
        %v4826 = vld [vmem:[#allocation14 + $0x148] sm:$0xff]
        %v4827 = vld [vmem:[#allocation14 + $0x150] sm:$0xff]
        %v4828 = vld [vmem:[#allocation14 + $0x158] sm:$0xff]
        %v4829 = vld [vmem:[#allocation14 + $0x160] sm:$0xff]
        %v4830 = vld [vmem:[#allocation14 + $0x168] sm:$0xff]
        %v4831 = vld [vmem:[#allocation14 + $0x170] sm:$0xff]
        %v4832 = vld [vmem:[#allocation14 + $0x178] sm:$0xff]
        %v4833 = vld [vmem:[#allocation14 + $0x180] sm:$0xff]
        %v4834 = vld [vmem:[#allocation14 + $0x188] sm:$0xff]
        %v4835 = vld [vmem:[#allocation14 + $0x190] sm:$0xff]
        %v4836 = vld [vmem:[#allocation14 + $0x198] sm:$0xff]
        %v4837 = vld [vmem:[#allocation14 + $0x1a0] sm:$0xff]
        %v4838 = vld [vmem:[#allocation14 + $0x1a8] sm:$0xff]
        %v4839 = vld [vmem:[#allocation14 + $0x1b0] sm:$0xff]
        %v4840 = vld [vmem:[#allocation14 + $0x1b8] sm:$0xff]
        %v4841 = vld [vmem:[#allocation14 + $0x1c0] sm:$0xff]
        %v4842 = vld [vmem:[#allocation14 + $0x1c8] sm:$0xff]
        %v4843 = vld [vmem:[#allocation14 + $0x1d0] sm:$0xff]
        %v4844 = vld [vmem:[#allocation14 + $0x1d8] sm:$0xff]
        %v4845 = vld [vmem:[#allocation14 + $0x1e0] sm:$0xf]
        %v4846 = vld [vmem:[#allocation14 + $0x1e8] sm:$0xf]
        %v4847 = vld [vmem:[#allocation14 + $0x1f0] sm:$0xf]
        %v4848 = vld [vmem:[#allocation14 + $0x1f8] sm:$0xf]
        %v4849 = vld [vmem:[#allocation14 + $0x200] sm:$0xf]
        %vm4850 = vcmask 818176
        %v4852 = vsel %vm4850, %v4784, 0
        %v4855 = vsel %vm1222, %v4845, 0
        %v4858 = vsel %vm1222, %v4846, 0
        %v4861 = vsel %vm1222, %v4847, 0
        %v4864 = vsel %vm1222, %v4848, 0
        %v4867 = vsel %vm1222, %v4849, 0
        %4869 = vmatprep.subr.mxu0 %v4786
        %4870 = vmatpush1.msra.mxu0 %v4785
        %4871 = vmatprep.subr.mxu0 %v4791
        %4872 = vmatpush1.msra.mxu0 %v4790
        %4873 = vmatprep.subr.mxu0 %v4796
        %4874 = vmatpush1.msra.mxu0 %v4795
        %4875 = vmatprep.subr.mxu0 %v4801
        %4876 = vmatpush1.msra.mxu0 %v4800
        %4877 = vmatprep.subr.mxu0 %v4806
        %4878 = vmatpush1.msra.mxu0 %v4805
        %4879 = vmatprep.subr.mxu0 %v4811
        %4880 = vmatpush1.msra.mxu0 %v4810
        %4881 = vmatprep.subr.mxu0 %v4816
        %4882 = vmatpush1.msra.mxu0 %v4815
        %4883 = vmatprep.subr.mxu0 %v4821
        %4884 = vmatpush1.msra.mxu0 %v4820
        %4885 = vmatprep.subr.mxu0 %v4826
        %4886 = vmatpush1.msra.mxu0 %v4825
        %4887 = vmatprep.subr.mxu0 %v4831
        %4888 = vmatpush1.msra.mxu0 %v4830
        %4889 = vmatprep.subr.mxu0 %v4836
        %4890 = vmatpush1.msra.mxu0 %v4835
        %4891 = vmatprep.subr.mxu0 %v4841
        %4892 = vmatpush1.msra.mxu0 %v4840
        %4893 = vmatprep.subr.mxu0 %v4858
        %4894 = vmatpush1.msra.mxu0 %v4855
        %4895 = vmatprep.subr.mxu0 0.0
        %4896 = vmatpush1.msra.mxu0 0.0
        %4897 = vmatprep.subr.mxu0 0.0
        %4898 = vmatpush1.msra.mxu0 0.0
        %4899 = vmatprep.subr.mxu0 0.0
        %4900 = vmatpush1.msra.mxu0 0.0
        %4901 = vmatprep.subr.mxu0 0.0
        %4902 = vmatpush1.msra.mxu0 0.0
        %4903 = vmatprep.subr.mxu0 0.0
        %4904 = vmatpush1.msra.mxu0 0.0
        %4905 = vmatprep.subr.mxu0 0.0
        %4906 = vmatpush1.msra.mxu0 0.0
        %4907 = vmatprep.subr.mxu0 0.0
        %4908 = vmatpush1.msra.mxu0 0.0
        %4909 = vmatprep.subr.mxu0 0.0
        %4910 = vmatpush1.msra.mxu0 0.0
        %4911 = vmatprep.subr.mxu0 0.0
        %4912 = vmatpush1.msra.mxu0 0.0
        %4913 = vmatprep.subr.mxu0 0.0
        %4914 = vmatpush1.msra.mxu0 0.0
        %4915 = vmatprep.subr.mxu0 0.0
        %4916 = vmatpush1.msra.mxu0 0.0
        %4917 = vmatprep.subr.mxu0 0.0
        %4918 = vmatpush1.msra.mxu0 0.0
        %4919 = vmatprep.subr.mxu0 0.0
        %4920 = vmatpush1.msra.mxu0 0.0
        %4921 = vmatprep.subr.mxu0 0.0
        %4922 = vmatpush1.msra.mxu0 0.0
        %4923 = vmatprep.subr.mxu0 0.0
        %4924 = vmatpush1.msra.mxu0 0.0
        %4925 = vmatprep.subr.mxu0 0.0
        %4926 = vmatpush1.msra.mxu0 0.0
        %4927 = vmatprep.subr.mxu0 0.0
        %4928 = vmatpush1.msra.mxu0 0.0
        %4929 = vmatprep.subr.mxu0 0.0
        %4930 = vmatpush1.msra.mxu0 0.0
        %4931 = vmatprep.subr.mxu0 0.0
        %4932 = vmatpush1.msra.mxu0 0.0
        %4933 = vmatprep.mubr.f32.mxu0 0.0
        %4934 = vmatmul.mubr.f32.gmra.mrb[0].mxu0 %v4852
        %v4935 = vpop.f32.mrb[0].mxu0
        %v4936 = vadd.f32 0.0, %v4935
        %v4937 = vpop.f32.mrb[0].mxu0
        %v4938 = vadd.f32 0.0, %v4937
        %4939 = vdwg.mxu0
        %4940 = vmatprep.subr.mxu0 %v4788
        %4941 = vmatpush1.msra.mxu0 %v4787
        %4942 = vmatprep.subr.mxu0 %v4793
        %4943 = vmatpush1.msra.mxu0 %v4792
        %4944 = vmatprep.subr.mxu0 %v4798
        %4945 = vmatpush1.msra.mxu0 %v4797
        %4946 = vmatprep.subr.mxu0 %v4803
        %4947 = vmatpush1.msra.mxu0 %v4802
        %4948 = vmatprep.subr.mxu0 %v4808
        %4949 = vmatpush1.msra.mxu0 %v4807
        %4950 = vmatprep.subr.mxu0 %v4813
        %4951 = vmatpush1.msra.mxu0 %v4812
        %4952 = vmatprep.subr.mxu0 %v4818
        %4953 = vmatpush1.msra.mxu0 %v4817
        %4954 = vmatprep.subr.mxu0 %v4823
        %4955 = vmatpush1.msra.mxu0 %v4822
        %4956 = vmatprep.subr.mxu0 %v4828
        %4957 = vmatpush1.msra.mxu0 %v4827
        %4958 = vmatprep.subr.mxu0 %v4833
        %4959 = vmatpush1.msra.mxu0 %v4832
        %4960 = vmatprep.subr.mxu0 %v4838
        %4961 = vmatpush1.msra.mxu0 %v4837
        %4962 = vmatprep.subr.mxu0 %v4843
        %4963 = vmatpush1.msra.mxu0 %v4842
        %4964 = vmatprep.subr.mxu0 %v4864
        %4965 = vmatpush1.msra.mxu0 %v4861
        %4966 = vmatprep.subr.mxu0 0.0
        %4967 = vmatpush1.msra.mxu0 0.0
        %4968 = vmatprep.subr.mxu0 0.0
        %4969 = vmatpush1.msra.mxu0 0.0
        %4970 = vmatprep.subr.mxu0 0.0
        %4971 = vmatpush1.msra.mxu0 0.0
        %4972 = vmatprep.subr.mxu0 0.0
        %4973 = vmatpush1.msra.mxu0 0.0
        %4974 = vmatprep.subr.mxu0 0.0
        %4975 = vmatpush1.msra.mxu0 0.0
        %4976 = vmatprep.subr.mxu0 0.0
        %4977 = vmatpush1.msra.mxu0 0.0
        %4978 = vmatprep.subr.mxu0 0.0
        %4979 = vmatpush1.msra.mxu0 0.0
        %4980 = vmatprep.subr.mxu0 0.0
        %4981 = vmatpush1.msra.mxu0 0.0
        %4982 = vmatprep.subr.mxu0 0.0
        %4983 = vmatpush1.msra.mxu0 0.0
        %4984 = vmatprep.subr.mxu0 0.0
        %4985 = vmatpush1.msra.mxu0 0.0
        %4986 = vmatprep.subr.mxu0 0.0
        %4987 = vmatpush1.msra.mxu0 0.0
        %4988 = vmatprep.subr.mxu0 0.0
        %4989 = vmatpush1.msra.mxu0 0.0
        %4990 = vmatprep.subr.mxu0 0.0
        %4991 = vmatpush1.msra.mxu0 0.0
        %4992 = vmatprep.subr.mxu0 0.0
        %4993 = vmatpush1.msra.mxu0 0.0
        %4994 = vmatprep.subr.mxu0 0.0
        %4995 = vmatpush1.msra.mxu0 0.0
        %4996 = vmatprep.subr.mxu0 0.0
        %4997 = vmatpush1.msra.mxu0 0.0
        %4998 = vmatprep.subr.mxu0 0.0
        %4999 = vmatpush1.msra.mxu0 0.0
        %5000 = vmatprep.subr.mxu0 0.0
        %5001 = vmatpush1.msra.mxu0 0.0
        %5002 = vmatprep.subr.mxu0 0.0
        %5003 = vmatpush1.msra.mxu0 0.0
        %5004 = vmatprep.mubr.f32.mxu0 0.0
        %5005 = vmatmul.mubr.f32.gmra.mrb[0].mxu0 %v4852
        %v5006 = vpop.f32.mrb[0].mxu0
        %v5007 = vadd.f32 0.0, %v5006
        %v5008 = vpop.f32.mrb[0].mxu0
        %v5009 = vadd.f32 0.0, %v5008
        %5010 = vdwg.mxu0
        %5011 = vmatprep.subr.mxu0 0.0
        %5012 = vmatpush1.msra.mxu0 %v4789
        %5013 = vmatprep.subr.mxu0 0.0
        %5014 = vmatpush1.msra.mxu0 %v4794
        %5015 = vmatprep.subr.mxu0 0.0
        %5016 = vmatpush1.msra.mxu0 %v4799
        %5017 = vmatprep.subr.mxu0 0.0
        %5018 = vmatpush1.msra.mxu0 %v4804
        %5019 = vmatprep.subr.mxu0 0.0
        %5020 = vmatpush1.msra.mxu0 %v4809
        %5021 = vmatprep.subr.mxu0 0.0
        %5022 = vmatpush1.msra.mxu0 %v4814
        %5023 = vmatprep.subr.mxu0 0.0
        %5024 = vmatpush1.msra.mxu0 %v4819
        %5025 = vmatprep.subr.mxu0 0.0
        %5026 = vmatpush1.msra.mxu0 %v4824
        %5027 = vmatprep.subr.mxu0 0.0
        %5028 = vmatpush1.msra.mxu0 %v4829
        %5029 = vmatprep.subr.mxu0 0.0
        %5030 = vmatpush1.msra.mxu0 %v4834
        %5031 = vmatprep.subr.mxu0 0.0
        %5032 = vmatpush1.msra.mxu0 %v4839
        %5033 = vmatprep.subr.mxu0 0.0
        %5034 = vmatpush1.msra.mxu0 %v4844
        %5035 = vmatprep.subr.mxu0 0.0
        %5036 = vmatpush1.msra.mxu0 %v4867
        %5037 = vmatprep.subr.mxu0 0.0
        %5038 = vmatpush1.msra.mxu0 0.0
        %5039 = vmatprep.subr.mxu0 0.0
        %5040 = vmatpush1.msra.mxu0 0.0
        %5041 = vmatprep.subr.mxu0 0.0
        %5042 = vmatpush1.msra.mxu0 0.0
        %5043 = vmatprep.subr.mxu0 0.0
        %5044 = vmatpush1.msra.mxu0 0.0
        %5045 = vmatprep.subr.mxu0 0.0
        %5046 = vmatpush1.msra.mxu0 0.0
        %5047 = vmatprep.subr.mxu0 0.0
        %5048 = vmatpush1.msra.mxu0 0.0
        %5049 = vmatprep.subr.mxu0 0.0
        %5050 = vmatpush1.msra.mxu0 0.0
        %5051 = vmatprep.subr.mxu0 0.0
        %5052 = vmatpush1.msra.mxu0 0.0
        %5053 = vmatprep.subr.mxu0 0.0
        %5054 = vmatpush1.msra.mxu0 0.0
        %5055 = vmatprep.subr.mxu0 0.0
        %5056 = vmatpush1.msra.mxu0 0.0
        %5057 = vmatprep.subr.mxu0 0.0
        %5058 = vmatpush1.msra.mxu0 0.0
        %5059 = vmatprep.subr.mxu0 0.0
        %5060 = vmatpush1.msra.mxu0 0.0
        %5061 = vmatprep.subr.mxu0 0.0
        %5062 = vmatpush1.msra.mxu0 0.0
        %5063 = vmatprep.subr.mxu0 0.0
        %5064 = vmatpush1.msra.mxu0 0.0
        %5065 = vmatprep.subr.mxu0 0.0
        %5066 = vmatpush1.msra.mxu0 0.0
        %5067 = vmatprep.subr.mxu0 0.0
        %5068 = vmatpush1.msra.mxu0 0.0
        %5069 = vmatprep.subr.mxu0 0.0
        %5070 = vmatpush1.msra.mxu0 0.0
        %5071 = vmatprep.subr.mxu0 0.0
        %5072 = vmatpush1.msra.mxu0 0.0
        %5073 = vmatprep.subr.mxu0 0.0
        %5074 = vmatpush1.msra.mxu0 0.0
        %5075 = vmatprep.mubr.f32.mxu0 0.0
        %5076 = vmatmul.mubr.f32.gmra.mrb[0].mxu0 %v4852
        %v5077 = vpop.f32.mrb[0].mxu0
        %v5078 = vadd.f32 0.0, %v5077
        %v5079 = vpop.f32.mrb[0].mxu0
        %5080 = vdwg.mxu0
        %v5082 = vrot.slane %v4938, 1
        %v5084 = vadd.f32 %v4936, %v5082
        %v5086 = vrot.slane %v5007, 2
        %v5088 = vadd.f32 %v5084, %v5086
        %v5090 = vrot.slane %v5009, 3
        %v5092 = vadd.f32 %v5088, %v5090
        %v5094 = vrot.slane %v5078, 4
        %v5096 = vadd.f32 %v5092, %v5094
        %v5097 = vld [vmem:[#allocation16] sm:$0x1]
        %v5098 = vadd.f32 %v5096, %v5097
        %v5099 = vmax.f32 %v5098, 0.0
        %v5100 = vld [vmem:[%s9] sm:$0xff]
        %v5101 = vld [vmem:[%s9 + $0x8] sm:$0xff]
        %v5102 = vld [vmem:[%s9 + $0x10] sm:$0xff]
        %v5103 = vld [vmem:[%s9 + $0x18] sm:$0xff]
        %v5104 = vld [vmem:[%s9 + $0x20] sm:$0xff]
        %v5105 = vld [vmem:[%s9 + $0x28] sm:$0xff]
        %v5106 = vld [vmem:[%s9 + $0x30] sm:$0xff]
        %v5107 = vld [vmem:[%s9 + $0x38] sm:$0xff]
        %v5108 = vld [vmem:[%s9 + $0x40] sm:$0xff]
        %v5109 = vld [vmem:[%s9 + $0x48] sm:$0xff]
        %v5110 = vld [vmem:[%s9 + $0x50] sm:$0xff]
        %v5111 = vld [vmem:[%s9 + $0x58] sm:$0xff]
        %v5112 = vld [vmem:[%s9 + $0x60] sm:$0xff]
        %v5113 = vld [vmem:[%s9 + $0x68] sm:$0xff]
        %v5114 = vld [vmem:[%s9 + $0x70] sm:$0xff]
        %v5115 = vld [vmem:[%s9 + $0x78] sm:$0xff]
        %v5116 = vld [vmem:[#allocation17] sm:$0x1]
        %5117 = vmatprep.subr.mxu0 0.0
        %5118 = vmatpush1.msra.mxu0 %v5100
        %5119 = vmatprep.subr.mxu0 0.0
        %5120 = vmatpush1.msra.mxu0 %v5101
        %5121 = vmatprep.subr.mxu0 0.0
        %5122 = vmatpush1.msra.mxu0 %v5102
        %5123 = vmatprep.subr.mxu0 0.0
        %5124 = vmatpush1.msra.mxu0 %v5103
        %5125 = vmatprep.subr.mxu0 0.0
        %5126 = vmatpush1.msra.mxu0 %v5104
        %5127 = vmatprep.subr.mxu0 0.0
        %5128 = vmatpush1.msra.mxu0 %v5105
        %5129 = vmatprep.subr.mxu0 0.0
        %5130 = vmatpush1.msra.mxu0 %v5106
        %5131 = vmatprep.subr.mxu0 0.0
        %5132 = vmatpush1.msra.mxu0 %v5107
        %5133 = vmatprep.subr.mxu0 0.0
        %5134 = vmatpush1.msra.mxu0 %v5108
        %5135 = vmatprep.subr.mxu0 0.0
        %5136 = vmatpush1.msra.mxu0 %v5109
        %5137 = vmatprep.subr.mxu0 0.0
        %5138 = vmatpush1.msra.mxu0 %v5110
        %5139 = vmatprep.subr.mxu0 0.0
        %5140 = vmatpush1.msra.mxu0 %v5111
        %5141 = vmatprep.subr.mxu0 0.0
        %5142 = vmatpush1.msra.mxu0 %v5112
        %5143 = vmatprep.subr.mxu0 0.0
        %5144 = vmatpush1.msra.mxu0 %v5113
        %5145 = vmatprep.subr.mxu0 0.0
        %5146 = vmatpush1.msra.mxu0 %v5114
        %5147 = vmatprep.subr.mxu0 0.0
        %5148 = vmatpush1.msra.mxu0 %v5115
        %5149 = vmatprep.subr.mxu0 0.0
        %5150 = vmatpush1.msra.mxu0 0.0
        %5151 = vmatprep.subr.mxu0 0.0
        %5152 = vmatpush1.msra.mxu0 0.0
        %5153 = vmatprep.subr.mxu0 0.0
        %5154 = vmatpush1.msra.mxu0 0.0
        %5155 = vmatprep.subr.mxu0 0.0
        %5156 = vmatpush1.msra.mxu0 0.0
        %5157 = vmatprep.subr.mxu0 0.0
        %5158 = vmatpush1.msra.mxu0 0.0
        %5159 = vmatprep.subr.mxu0 0.0
        %5160 = vmatpush1.msra.mxu0 0.0
        %5161 = vmatprep.subr.mxu0 0.0
        %5162 = vmatpush1.msra.mxu0 0.0
        %5163 = vmatprep.subr.mxu0 0.0
        %5164 = vmatpush1.msra.mxu0 0.0
        %5165 = vmatprep.subr.mxu0 0.0
        %5166 = vmatpush1.msra.mxu0 0.0
        %5167 = vmatprep.subr.mxu0 0.0
        %5168 = vmatpush1.msra.mxu0 0.0
        %5169 = vmatprep.subr.mxu0 0.0
        %5170 = vmatpush1.msra.mxu0 0.0
        %5171 = vmatprep.subr.mxu0 0.0
        %5172 = vmatpush1.msra.mxu0 0.0
        %5173 = vmatprep.subr.mxu0 0.0
        %5174 = vmatpush1.msra.mxu0 0.0
        %5175 = vmatprep.subr.mxu0 0.0
        %5176 = vmatpush1.msra.mxu0 0.0
        %5177 = vmatprep.subr.mxu0 0.0
        %5178 = vmatpush1.msra.mxu0 0.0
        %5179 = vmatprep.subr.mxu0 0.0
        %5180 = vmatpush1.msra.mxu0 0.0
        %5181 = vmatprep.mubr.f32.mxu0 0.0
        %5182 = vmatmul.mubr.f32.gmra.mrb[0].mxu0 %v5099
        %v5183 = vpop.f32.mrb[0].mxu0
        %v5184 = vadd.f32 %v5116, %v5183
        %v5185 = vpop.f32.mrb[0].mxu0
        %5186 = vdwg.mxu0
        %vm5187 = vcmask 114688
        %5188 = vst.msk [vmem:[%s524] sm:$0x1] %vm5187, %v5184
        %s5189 = sand.u32 %s277, 1
        %s5190 = scalar_lea.sflag [#allocation4], %s5189
        %s5191 = sand.u32 %s277, 1
        %s5192 = scalar_lea.vmem [#allocation19], %s5191
        // Predicated region
        $region105: #{simple_net_forward.1} parent=63 // pred_check
          %p5193 = pneg %p287
        $region106: #{simple_net_forward.1} parent=63 // pred_check_branch
          %5195 = sbr.rel (%p5193) target = $region108
        $region107: #{simple_net_forward.1} parent=63 // pred_region
          %s5197 = ssub.s32 16, 16
          %5198 = vsyncadd %s5190, %s5197
          %s5199 = smul.addr %s33, 16
          %s5200 = scalar_lea.hbm %s11, %s5199
          %s5202 = sshll.u32 %s5192, 4
          %s5203 = int_to_ptr.vmem [resolvable:$true] %s5202
          %5205 = dma.vmem_to_hbm [thread:$0]  %s5203, 16, %s5200, %s5190
        $region108: #{simple_net_forward.1} parent=63 // pred_fallthru
          _
      $region64: #{simple_net_forward.1} parent=5 // pred_fallthru
        _
      %p5206 = scmp.le.s32.totalorder 2, %s28
      // Predicated region
      $region109: #{simple_net_forward.1} parent=5 // pred_check
        %p5207 = pneg %p5206
      $region110: #{simple_net_forward.1} parent=5 // pred_check_branch
        %5209 = sbr.rel (%p5207) target = $region112
      $region111: #{simple_net_forward.1} parent=5 // pred_region
        %s5210 = ssub.s32 %s28, 2
        // Predicated region
        $region113: #{simple_net_forward.1} parent=111 // pred_check
          %p5211 = pneg %p293
        $region114: #{simple_net_forward.1} parent=111 // pred_check_branch
          %5213 = sbr.rel (%p5211) target = $region116
        $region115: #{simple_net_forward.1} parent=111 // pred_region
          %s5214 = sand.u32 %s278, 1
          %s5215 = scalar_lea.sflag [#allocation4], %s5214
          %s5216 = sand.u32 %s278, 1
          %s5217 = scalar_lea.vmem [#allocation19], %s5216
          %5218 = dma.done %s5215, 16
        $region116: #{simple_net_forward.1} parent=111 // pred_fallthru
          _
      $region112: #{simple_net_forward.1} parent=5 // pred_fallthru
        _
    $region6: #{simple_net_forward.1} parent=1 // loop_footer
      %s32 = sadd.s32 1, %s28
    $region7: #{simple_net_forward.1} parent=1 // loop_footer_branch
      %27 = sbr.rel target = $region3
    $region8: #{simple_net_forward.1} parent=1 // loop_exit
      _
    %5219 = vsyncpa [#allocation3], 1
    %s5220 = scalar_lea.sflag [#allocation3], 1
    %5221 = vsyncpa %s5220, 1
    %5222 = vsyncpa [#allocation6], 1
    %5223 = vsyncpa [#allocation9], 1
    %5224 = vsyncpa [#allocation12], 1
    %5225 = vsyncpa [#allocation15], 1
    %5226 = vsyncpa [#allocation18], 1
    %5227 = vsyncpa [#allocation4], 1
    %s5228 = scalar_lea.sflag [#allocation4], 1
    %5229 = vsyncpa %s5228, 1

</llo_original>
